<compile_context>
chip_gen: v7x
topology: tpu7x:2x2x1
jax: 0.10.0
libtpu: 0.0.40
codegen_flags: <defaults>
</compile_context>

<pallas_src>
import functools
import math

import jax
import jax.numpy as jnp
import numpy as np
from jax.experimental import pallas as pl
from jax.experimental.pallas import tpu as pltpu


# ----------------------------------------------------------------------------
# Fused Pallas kernel: one grid step == one image
# ----------------------------------------------------------------------------

def _pointgen_kernel(patch1_ref, mask2_ref,
                     w1_ref, b1_ref, w2_ref, b2_ref,
                     dw1_ref, db1_ref, dwpt_ref, dbpt_ref,
                     wq_ref, bq_ref, wkv_ref, bkv_ref, wo_ref, bo_ref, eye_ref,
                     pts_out_ref, ref_out_ref,
                     *, H, W, F, N, scale):
    HW = H * W

    # ---- conv1: single wide GEMM on the wrapper-built zero-padded patch matrix ----
    h1 = jnp.maximum(
        jnp.dot(patch1_ref[...], w1_ref[...], preferred_element_type=jnp.float32)
        + b1_ref[...], 0.0)                                               # [HW, F] f32

    # ---- conv2: 9 rolled taps -> [HW, 9F] patch matrix -> single K=288 GEMM ----
    # pltpu.roll is circular; every destination row whose rolled source row wraps around
    # [0, HW) is zeroed by mask2 (invariant asserted in _conv2_tap_mask), so this equals a
    # zero-padded shift within the image.
    taps = []
    for dy in (-1, 0, 1):
        for dx in (-1, 0, 1):
            off = dy * W + dx
            taps.append(h1 if off == 0 else pltpu.roll(h1, shift=(-off) % HW, axis=0))
    patches2 = (jnp.concatenate(taps, axis=1) * mask2_ref[...]).astype(jnp.bfloat16)
    enc = jnp.maximum(
        jnp.dot(patches2, w2_ref[...], preferred_element_type=jnp.float32)
        + b2_ref[...], 0.0)                                               # [HW, F] f32

    # ---- CoarseDecoder: mean pool (MXU) -> MLP -> fused point/transform head (tiny, f32) ----
    pool_row = jnp.full((1, HW), 1.0 / HW, dtype=jnp.float32)
    pooled = jnp.dot(pool_row, enc, preferred_element_type=jnp.float32)   # [1, F]
    hdec = jnp.maximum(
        jnp.dot(pooled, dw1_ref[...], preferred_element_type=jnp.float32) + db1_ref[...],
        0.0)                                                              # [1, hid]
    dec = jnp.dot(hdec, dwpt_ref[...], preferred_element_type=jnp.float32) + dbpt_ref[...]
    # dec: [1, 3N+9] = [x-coords | y-coords | z-coords | row-major 3x3 transform]

    pts_t = jnp.tanh(jnp.concatenate(
        [dec[:, 0:N], dec[:, N:2 * N], dec[:, 2 * N:3 * N]], axis=0))     # [3, N]
    traw = jnp.concatenate(
        [dec[:, 3 * N:3 * N + 3], dec[:, 3 * N + 3:3 * N + 6],
         dec[:, 3 * N + 6:3 * N + 9]], axis=0)                            # [3, 3]
    t = eye_ref[...] + 0.1 * traw                                         # near-identity

    # ---- AttentionFold: k/v in one fused GEMM; bf16 MXU operands, f32 accumulation ----
    enc16 = enc.astype(jnp.bfloat16)
    kv = jnp.dot(enc16, wkv_ref[...], preferred_element_type=jnp.float32) + bkv_ref[...]
    k = kv[:, 0:F].astype(jnp.bfloat16)                                   # [HW, F]
    v = kv[:, F:2 * F].astype(jnp.bfloat16)                               # [HW, F]

    # Fold the softmax scale into the tiny [3,F] q projection instead of the [N,HW] scores.
    wq_s = wq_ref[...] * scale
    bq_s = bq_ref[...] * scale
    q = jax.lax.dot_general(pts_t, wq_s, (((0,), (0,)), ((), ())),
                            preferred_element_type=jnp.float32) + bq_s    # [N, F]

    s = jax.lax.dot_general(q.astype(jnp.bfloat16), k, (((1,), (1,)), ((), ())),
                            preferred_element_type=jnp.float32)           # [N, HW]
    s = s - jnp.max(s, axis=-1, keepdims=True)
    p = jnp.exp(s)
    p = p * pl.reciprocal(jnp.sum(p, axis=-1, keepdims=True), approx=True)
    attn = jnp.dot(p.astype(jnp.bfloat16), v, preferred_element_type=jnp.float32)  # [N, F]

    # off_t[j, n] = sum_d wo[d, j] * attn[n, d] + bo[j]      (tiny GEMMs kept f32)
    off_t = jax.lax.dot_general(wo_ref[...], attn, (((0,), (1,)), ((), ())),
                                preferred_element_type=jnp.float32) + bo_ref[...]  # [3, N]
    delta_t = pts_t + jnp.tanh(off_t)                                     # [3, N]
    # refined_t[j, n] = sum_i t[i, j] * delta_t[i, n]  ==  ((pts + tanh(off)) @ t)^T
    refined_t = jax.lax.dot_general(t, delta_t, (((0,), (0,)), ((), ())),
                                    preferred_element_type=jnp.float32)   # [3, N]

    pts_out_ref[0, :, :] = pts_t.astype(pts_out_ref.dtype)
    ref_out_ref[0, :, :] = refined_t.astype(ref_out_ref.dtype)


# ----------------------------------------------------------------------------
# Wrapper
# ----------------------------------------------------------------------------

def _conv2_tap_mask(H, W, F):
    """[HW, 9F] 0/1 tap-validity mask for the in-kernel (rolled) 3x3 conv.

    Asserts the roll invariant: every destination row whose rolled source row wraps around
    [0, HW) is masked to zero, so circular roll == zero-padded shift.  Changing H, W, padding
    or the token layout must preserve this.
    """
    HW = H * W
    h = np.repeat(np.arange(H), W)
    w = np.tile(np.arange(W), H)
    blocks = []
    for dy in (-1, 0, 1):
        for dx in (-1, 0, 1):
            ok = ((h + dy >= 0) & (h + dy < H) & (w + dx >= 0) & (w + dx < W))
            src = np.arange(HW) + dy * W + dx
            assert not np.any(ok & ((src < 0) | (src >= HW))), \
                "3x3 roll invariant broken: an unmasked row wraps around the image"
            blocks.append(np.repeat(ok.astype(np.float32)[:, None], F, axis=1))
    return np.concatenate(blocks, axis=1)


@jax.jit
def point_gen_forward(params, img_nchw):
    """PointGen forward: img [B,C,H,W] -> (points [B,N,3], refined [B,N,3])."""
    B, C, H, W = img_nchw.shape
    F = params["conv1_w"].shape[1]
    HID = params["dec_w1"].shape[1]
    N = (params["dec_wpt"].shape[1] - 9) // 3
    HW = H * W

    # conv1 im2col in the wrapper: zero-padded [B*HW, 9*C] patch matrix (bf16 MXU operand).
    x = jnp.transpose(img_nchw, (0, 2, 3, 1))                             # NCHW -> NHWC
    xp = jnp.pad(x, ((0, 0), (1, 1), (1, 1), (0, 0)))
    cols = [xp[:, dy:dy + H, dx:dx + W, :] for dy in range(3) for dx in range(3)]
    patches1 = jnp.concatenate(cols, axis=-1).reshape(B * HW, 9 * C).astype(jnp.bfloat16)

    mask2 = jnp.asarray(_conv2_tap_mask(H, W, F))                         # [HW, 9F] f32
    eye3 = jnp.eye(3, dtype=jnp.float32)

    full = lambda b: (0, 0)                 # weights / mask: constant block -> fetched once
    kernel = functools.partial(_pointgen_kernel, H=H, W=W, F=F, N=N,
                               scale=1.0 / math.sqrt(F))

    pts_bt, ref_bt = pl.pallas_call(
        kernel,
        grid_spec=pltpu.PrefetchScalarGridSpec(
            num_scalar_prefetch=0,
            grid=(B,),
            in_specs=[
                pl.BlockSpec((HW, 9 * C), lambda b: (b, 0)),              # per-image patches
                pl.BlockSpec((HW, 9 * F), full),                          # conv2 tap mask
                pl.BlockSpec((9 * C, F), full), pl.BlockSpec((1, F), full),
                pl.BlockSpec((9 * F, F), full), pl.BlockSpec((1, F), full),
                pl.BlockSpec((F, HID), full), pl.BlockSpec((1, HID), full),
                pl.BlockSpec((HID, 3 * N + 9), full), pl.BlockSpec((1, 3 * N + 9), full),
                pl.BlockSpec((3, F), full), pl.BlockSpec((1, F), full),
                pl.BlockSpec((F, 2 * F), full), pl.BlockSpec((1, 2 * F), full),
                pl.BlockSpec((F, 3), full), pl.BlockSpec((3, 1), full),
                pl.BlockSpec((3, 3), full),
            ],
            out_specs=[
                pl.BlockSpec((1, 3, N), lambda b: (b, 0, 0)),
                pl.BlockSpec((1, 3, N), lambda b: (b, 0, 0)),
            ],
        ),
        out_shape=(jax.ShapeDtypeStruct((B, 3, N), jnp.float32),
                   jax.ShapeDtypeStruct((B, 3, N), jnp.float32)),
        compiler_params=pltpu.CompilerParams(
            dimension_semantics=("parallel",)),       # v7x: one image per TensorCore
    )(patches1, mask2,
      params["conv1_w"].astype(jnp.bfloat16), params["conv1_b"],
      params["conv2_w"].astype(jnp.bfloat16), params["conv2_b"],
      params["dec_w1"], params["dec_b1"], params["dec_wpt"], params["dec_bpt"],
      params["wq"], params["bq"],
      params["wkv"].astype(jnp.bfloat16), params["bkv"],
      params["wo"], params["bo"], eye3)

    points = jnp.transpose(pts_bt, (0, 2, 1))                             # [B, N, 3]
    refined = jnp.transpose(ref_bt, (0, 2, 1))
    return points, refined


# ----------------------------------------------------------------------------
# Parameters (deterministic synthetic init)
# ----------------------------------------------------------------------------

def init_params(key, *, c_in=3, feat=32, hidden=64, n_pts=64):
    ks = jax.random.split(key, 14)

    def w(k, shape, scale=0.1):
        return jax.random.normal(k, shape, jnp.float32) * scale

    return dict(
        # Encoder: two 3x3 convs; weights stored as [9*cin, F] (tap-major, channel-minor).
        conv1_w=w(ks[0], (9 * c_in, feat)), conv1_b=w(ks[1], (1, feat), 0.05),
        conv2_w=w(ks[2], (9 * feat, feat)), conv2_b=w(ks[3], (1, feat), 0.05),
        # CoarseDecoder MLP; point head is coordinate-grouped [x | y | z] and fused with the
        # row-major 3x3 transform head into one lane-wide GEMM.
        dec_w1=w(ks[4], (feat, hidden)), dec_b1=w(ks[5], (1, hidden), 0.05),
        dec_wpt=w(ks[6], (hidden, 3 * n_pts + 9)), dec_bpt=w(ks[7], (1, 3 * n_pts + 9), 0.05),
        # AttentionFold projections; wk|wv fused into one [F, 2F] weight.
        wq=w(ks[8], (3, feat)), bq=w(ks[9], (1, feat), 0.05),
        wkv=w(ks[10], (feat, 2 * feat)), bkv=w(ks[11], (1, 2 * feat), 0.05),
        wo=w(ks[12], (feat, 3)), bo=w(ks[13], (3, 1), 0.05),
    )


# ----------------------------------------------------------------------------
# Pure-JAX reference (for correctness check only)
# ----------------------------------------------------------------------------

def reference_forward(params, img_nchw):
    B, C, H, W = img_nchw.shape
    F = params["conv1_w"].shape[1]
    N = (params["dec_wpt"].shape[1] - 9) // 3
    x = jnp.transpose(img_nchw, (0, 2, 3, 1))

    def conv3x3_ref(xs, wmat, bias):
        b_, h_, w_, cin = xs.shape
        xp = jnp.pad(xs, ((0, 0), (1, 1), (1, 1), (0, 0)))
        cols = [xp[:, dy:dy + h_, dx:dx + w_, :] for dy in range(3) for dx in range(3)]
        patches = jnp.concatenate(cols, axis=-1).reshape(b_ * h_ * w_, 9 * cin)
        y = jnp.maximum(patches @ wmat + bias, 0.0)
        return y.reshape(b_, h_, w_, -1)

    with jax.default_matmul_precision("float32"):
        h1 = conv3x3_ref(x, params["conv1_w"], params["conv1_b"])
        enc = conv3x3_ref(h1, params["conv2_w"], params["conv2_b"]).reshape(B, H * W, F)
        pooled = enc.mean(axis=1)
        hdec = jnp.maximum(pooled @ params["dec_w1"] + params["dec_b1"], 0.0)
        dec = hdec @ params["dec_wpt"] + params["dec_bpt"]
        pts = jnp.tanh(jnp.stack(
            [dec[:, 0:N], dec[:, N:2 * N], dec[:, 2 * N:3 * N]], axis=-1))       # [B, N, 3]
        transform = jnp.eye(3, dtype=jnp.float32)[None] + 0.1 * dec[:, 3 * N:].reshape(B, 3, 3)
        wk, wv = params["wkv"][:, :F], params["wkv"][:, F:]
        bk, bv = params["bkv"][:, :F], params["bkv"][:, F:]
        q = pts @ params["wq"] + params["bq"]
        k = enc @ wk + bk
        v = enc @ wv + bv
        s = jnp.einsum("bnd,bmd->bnm", q, k) * (1.0 / math.sqrt(F))
        p = jax.nn.softmax(s, axis=-1)
        attn = jnp.einsum("bnm,bmd->bnd", p, v)
        off = attn @ params["wo"] + params["bo"][:, 0]
        refined = jnp.einsum("bnc,bcj->bnj", pts + jnp.tanh(off), transform)
    return pts, refined


# ----------------------------------------------------------------------------
# Main
# ----------------------------------------------------------------------------

if __name__ == "__main__":
    key = jax.random.PRNGKey(0)
    k_img, k_par = jax.random.split(key)

    B, C, H, W = 2, 3, 16, 16
    N_PTS = 64
    img = jax.random.normal(k_img, (B, C, H, W), jnp.float32)   # PyTorch-style NCHW input
    params = init_params(k_par, c_in=C, feat=32, hidden=64, n_pts=N_PTS)

    points, refined = point_gen_forward(params, img)
    jax.block_until_ready((points, refined))

    assert points.shape == (B, N_PTS, 3) and refined.shape == (B, N_PTS, 3)
    assert points.dtype == jnp.float32 and refined.dtype == jnp.float32

    # Cross-check against a pure-JAX f32 reference (tolerance covers bf16 MXU operands and
    # the approximate softmax reciprocal; estimated worst-case error ~5e-3).
    ref_pts, ref_ref = reference_forward(params, img)
    assert bool(jnp.allclose(points, ref_pts, atol=3e-2, rtol=3e-2)), "points mismatch vs reference"
    assert bool(jnp.allclose(refined, ref_ref, atol=3e-2, rtol=3e-2)), "refined mismatch vs reference"

    print("KERNEL_OK")
</pallas_src>

<mosaic_0001>
module attributes {stable_mosaic.version = 11 : i64} {
  func.func @_pointgen_kernel(%arg0: i32, %arg1: memref<256x27xbf16, #tpu.memory_space<vmem>>, %arg2: memref<256x288xf32, #tpu.memory_space<vmem>>, %arg3: memref<27x32xbf16, #tpu.memory_space<vmem>>, %arg4: memref<1x32xf32, #tpu.memory_space<vmem>>, %arg5: memref<288x32xbf16, #tpu.memory_space<vmem>>, %arg6: memref<1x32xf32, #tpu.memory_space<vmem>>, %arg7: memref<32x64xf32, #tpu.memory_space<vmem>>, %arg8: memref<1x64xf32, #tpu.memory_space<vmem>>, %arg9: memref<64x201xf32, #tpu.memory_space<vmem>>, %arg10: memref<1x201xf32, #tpu.memory_space<vmem>>, %arg11: memref<3x32xf32, #tpu.memory_space<vmem>>, %arg12: memref<1x32xf32, #tpu.memory_space<vmem>>, %arg13: memref<32x64xbf16, #tpu.memory_space<vmem>>, %arg14: memref<1x64xf32, #tpu.memory_space<vmem>>, %arg15: memref<32x3xf32, #tpu.memory_space<vmem>>, %arg16: memref<3x1xf32, #tpu.memory_space<vmem>>, %arg17: memref<3x3xf32, #tpu.memory_space<vmem>>, %arg18: memref<1x3x64xf32, #tpu.memory_space<vmem>>, %arg19: memref<1x3x64xf32, #tpu.memory_space<vmem>>) attributes {dimension_semantics = [#tpu.dimension_semantics<parallel>], iteration_bounds = array<i64: 2>, scalar_prefetch = 0 : i64, scratch_operands = 0 : i64, tpu.core_type = #tpu.core_type<tc>, window_params = [{transform_indices = @transform_0, window_bounds = array<i64: 256, 27>}, {pipeline_mode = #tpu.pipeline_mode<synchronous>, transform_indices = @transform_1, window_bounds = array<i64: 256, 288>}, {pipeline_mode = #tpu.pipeline_mode<synchronous>, transform_indices = @transform_2, window_bounds = array<i64: 27, 32>}, {pipeline_mode = #tpu.pipeline_mode<synchronous>, transform_indices = @transform_3, window_bounds = array<i64: 1, 32>}, {pipeline_mode = #tpu.pipeline_mode<synchronous>, transform_indices = @transform_4, window_bounds = array<i64: 288, 32>}, {pipeline_mode = #tpu.pipeline_mode<synchronous>, transform_indices = @transform_5, window_bounds = array<i64: 1, 32>}, {pipeline_mode = #tpu.pipeline_mode<synchronous>, transform_indices = @transform_6, window_bounds = array<i64: 32, 64>}, {pipeline_mode = #tpu.pipeline_mode<synchronous>, transform_indices = @transform_7, window_bounds = array<i64: 1, 64>}, {pipeline_mode = #tpu.pipeline_mode<synchronous>, transform_indices = @transform_8, window_bounds = array<i64: 64, 201>}, {pipeline_mode = #tpu.pipeline_mode<synchronous>, transform_indices = @transform_9, window_bounds = array<i64: 1, 201>}, {pipeline_mode = #tpu.pipeline_mode<synchronous>, transform_indices = @transform_10, window_bounds = array<i64: 3, 32>}, {pipeline_mode = #tpu.pipeline_mode<synchronous>, transform_indices = @transform_11, window_bounds = array<i64: 1, 32>}, {pipeline_mode = #tpu.pipeline_mode<synchronous>, transform_indices = @transform_12, window_bounds = array<i64: 32, 64>}, {pipeline_mode = #tpu.pipeline_mode<synchronous>, transform_indices = @transform_13, window_bounds = array<i64: 1, 64>}, {pipeline_mode = #tpu.pipeline_mode<synchronous>, transform_indices = @transform_14, window_bounds = array<i64: 32, 3>}, {pipeline_mode = #tpu.pipeline_mode<synchronous>, transform_indices = @transform_15, window_bounds = array<i64: 3, 1>}, {pipeline_mode = #tpu.pipeline_mode<synchronous>, transform_indices = @transform_16, window_bounds = array<i64: 3, 3>}, {transform_indices = @transform_17, window_bounds = array<i64: 1, 3, 64>}, {transform_indices = @transform_18, window_bounds = array<i64: 1, 3, 64>}]} {
    %c0 = arith.constant 0 : index
    %c0_0 = arith.constant 0 : index
    %0 = vector.load %arg1[%c0, %c0_0] : memref<256x27xbf16, #tpu.memory_space<vmem>>, vector<256x27xbf16>
    %c0_1 = arith.constant 0 : index
    %c0_2 = arith.constant 0 : index
    %1 = vector.load %arg3[%c0_1, %c0_2] : memref<27x32xbf16, #tpu.memory_space<vmem>>, vector<27x32xbf16>
    %cst = arith.constant dense<0.000000e+00> : vector<256x32xf32>
    %2 = tpu.matmul %0, %1, %cst {dimension_numbers = #tpu.dot_dimension_numbers<[1], [0], [0], [1], [0, 0, 1, 1], [], []>} : vector<256x27xbf16>, vector<27x32xbf16>, vector<256x32xf32> -> vector<256x32xf32>
    %c0_3 = arith.constant 0 : index
    %c0_4 = arith.constant 0 : index
    %3 = vector.load %arg4[%c0_3, %c0_4] : memref<1x32xf32, #tpu.memory_space<vmem>>, vector<1x32xf32>
    %4 = vector.broadcast %3 : vector<1x32xf32> to vector<256x32xf32>
    %5 = arith.addf %2, %4 : vector<256x32xf32>
    %cst_5 = arith.constant 0.000000e+00 : f32
    %6 = vector.broadcast %cst_5 : f32 to vector<256x32xf32>
    %7 = arith.maximumf %5, %6 : vector<256x32xf32>
    %c17_i32 = arith.constant 17 : i32
    %8 = tpu.dynamic_rotate %7 by %c17_i32 dim 0 : vector<256x32xf32>, i32 -> vector<256x32xf32>
    %c16_i32 = arith.constant 16 : i32
    %9 = tpu.dynamic_rotate %7 by %c16_i32 dim 0 : vector<256x32xf32>, i32 -> vector<256x32xf32>
    %c15_i32 = arith.constant 15 : i32
    %10 = tpu.dynamic_rotate %7 by %c15_i32 dim 0 : vector<256x32xf32>, i32 -> vector<256x32xf32>
    %c1_i32 = arith.constant 1 : i32
    %11 = tpu.dynamic_rotate %7 by %c1_i32 dim 0 : vector<256x32xf32>, i32 -> vector<256x32xf32>
    %c255_i32 = arith.constant 255 : i32
    %12 = tpu.dynamic_rotate %7 by %c255_i32 dim 0 : vector<256x32xf32>, i32 -> vector<256x32xf32>
    %c241_i32 = arith.constant 241 : i32
    %13 = tpu.dynamic_rotate %7 by %c241_i32 dim 0 : vector<256x32xf32>, i32 -> vector<256x32xf32>
    %c240_i32 = arith.constant 240 : i32
    %14 = tpu.dynamic_rotate %7 by %c240_i32 dim 0 : vector<256x32xf32>, i32 -> vector<256x32xf32>
    %c239_i32 = arith.constant 239 : i32
    %15 = tpu.dynamic_rotate %7 by %c239_i32 dim 0 : vector<256x32xf32>, i32 -> vector<256x32xf32>
    %16 = tpu.concatenate %8, %9, %10, %11, %7, %12, %13, %14, %15 in 1 : vector<256x32xf32>, vector<256x32xf32>, vector<256x32xf32>, vector<256x32xf32>, vector<256x32xf32>, vector<256x32xf32>, vector<256x32xf32>, vector<256x32xf32>, vector<256x32xf32> -> vector<256x288xf32>
    %c0_6 = arith.constant 0 : index
    %c0_7 = arith.constant 0 : index
    %17 = vector.load %arg2[%c0_6, %c0_7] : memref<256x288xf32, #tpu.memory_space<vmem>>, vector<256x288xf32>
    %18 = arith.mulf %16, %17 : vector<256x288xf32>
    %19 = arith.truncf %18 : vector<256x288xf32> to vector<256x288xbf16>
    %c0_8 = arith.constant 0 : index
    %c0_9 = arith.constant 0 : index
    %20 = vector.load %arg5[%c0_8, %c0_9] : memref<288x32xbf16, #tpu.memory_space<vmem>>, vector<288x32xbf16>
    %cst_10 = arith.constant dense<0.000000e+00> : vector<256x32xf32>
    %21 = tpu.matmul %19, %20, %cst_10 {dimension_numbers = #tpu.dot_dimension_numbers<[1], [0], [0], [1], [0, 0, 1, 1], [], []>} : vector<256x288xbf16>, vector<288x32xbf16>, vector<256x32xf32> -> vector<256x32xf32>
    %c0_11 = arith.constant 0 : index
    %c0_12 = arith.constant 0 : index
    %22 = vector.load %arg6[%c0_11, %c0_12] : memref<1x32xf32, #tpu.memory_space<vmem>>, vector<1x32xf32>
    %23 = vector.broadcast %22 : vector<1x32xf32> to vector<256x32xf32>
    %24 = arith.addf %21, %23 : vector<256x32xf32>
    %cst_13 = arith.constant 0.000000e+00 : f32
    %25 = vector.broadcast %cst_13 : f32 to vector<256x32xf32>
    %26 = arith.maximumf %24, %25 : vector<256x32xf32>
    %cst_14 = arith.constant 3.906250e-03 : f32
    %27 = vector.broadcast %cst_14 : f32 to vector<1x256xf32>
    %cst_15 = arith.constant dense<0.000000e+00> : vector<1x32xf32>
    %28 = tpu.matmul %27, %26, %cst_15 {dimension_numbers = #tpu.dot_dimension_numbers<[1], [0], [0], [1], [0, 0, 1, 1], [], []>} : vector<1x256xf32>, vector<256x32xf32>, vector<1x32xf32> -> vector<1x32xf32>
    %c0_16 = arith.constant 0 : index
    %c0_17 = arith.constant 0 : index
    %29 = vector.load %arg7[%c0_16, %c0_17] : memref<32x64xf32, #tpu.memory_space<vmem>>, vector<32x64xf32>
    %cst_18 = arith.constant dense<0.000000e+00> : vector<1x64xf32>
    %30 = tpu.matmul %28, %29, %cst_18 {dimension_numbers = #tpu.dot_dimension_numbers<[1], [0], [0], [1], [0, 0, 1, 1], [], []>} : vector<1x32xf32>, vector<32x64xf32>, vector<1x64xf32> -> vector<1x64xf32>
    %c0_19 = arith.constant 0 : index
    %c0_20 = arith.constant 0 : index
    %31 = vector.load %arg8[%c0_19, %c0_20] : memref<1x64xf32, #tpu.memory_space<vmem>>, vector<1x64xf32>
    %32 = arith.addf %30, %31 : vector<1x64xf32>
    %cst_21 = arith.constant 0.000000e+00 : f32
    %33 = vector.broadcast %cst_21 : f32 to vector<1x64xf32>
    %34 = arith.maximumf %32, %33 : vector<1x64xf32>
    %c0_22 = arith.constant 0 : index
    %c0_23 = arith.constant 0 : index
    %35 = vector.load %arg9[%c0_22, %c0_23] : memref<64x201xf32, #tpu.memory_space<vmem>>, vector<64x201xf32>
    %cst_24 = arith.constant dense<0.000000e+00> : vector<1x201xf32>
    %36 = tpu.matmul %34, %35, %cst_24 {dimension_numbers = #tpu.dot_dimension_numbers<[1], [0], [0], [1], [0, 0, 1, 1], [], []>} : vector<1x64xf32>, vector<64x201xf32>, vector<1x201xf32> -> vector<1x201xf32>
    %c0_25 = arith.constant 0 : index
    %c0_26 = arith.constant 0 : index
    %37 = vector.load %arg10[%c0_25, %c0_26] : memref<1x201xf32, #tpu.memory_space<vmem>>, vector<1x201xf32>
    %38 = arith.addf %36, %37 : vector<1x201xf32>
    %39 = vector.extract_strided_slice %38 {offsets = [0, 0], sizes = [1, 64], strides = [1, 1]} : vector<1x201xf32> to vector<1x64xf32>
    %40 = vector.extract_strided_slice %38 {offsets = [0, 64], sizes = [1, 64], strides = [1, 1]} : vector<1x201xf32> to vector<1x64xf32>
    %41 = vector.extract_strided_slice %38 {offsets = [0, 128], sizes = [1, 64], strides = [1, 1]} : vector<1x201xf32> to vector<1x64xf32>
    %42 = tpu.concatenate %39, %40, %41 in 0 : vector<1x64xf32>, vector<1x64xf32>, vector<1x64xf32> -> vector<3x64xf32>
    %43 = math.tanh %42 : vector<3x64xf32>
    %44 = vector.extract_strided_slice %38 {offsets = [0, 192], sizes = [1, 3], strides = [1, 1]} : vector<1x201xf32> to vector<1x3xf32>
    %45 = vector.extract_strided_slice %38 {offsets = [0, 195], sizes = [1, 3], strides = [1, 1]} : vector<1x201xf32> to vector<1x3xf32>
    %46 = vector.extract_strided_slice %38 {offsets = [0, 198], sizes = [1, 3], strides = [1, 1]} : vector<1x201xf32> to vector<1x3xf32>
    %47 = tpu.concatenate %44, %45, %46 in 0 : vector<1x3xf32>, vector<1x3xf32>, vector<1x3xf32> -> vector<3x3xf32>
    %c0_27 = arith.constant 0 : index
    %c0_28 = arith.constant 0 : index
    %48 = vector.load %arg17[%c0_27, %c0_28] : memref<3x3xf32, #tpu.memory_space<vmem>>, vector<3x3xf32>
    %cst_29 = arith.constant 1.000000e-01 : f32
    %49 = vector.broadcast %cst_29 : f32 to vector<3x3xf32>
    %50 = arith.mulf %49, %47 : vector<3x3xf32>
    %51 = arith.addf %48, %50 : vector<3x3xf32>
    %52 = arith.truncf %26 : vector<256x32xf32> to vector<256x32xbf16>
    %c0_30 = arith.constant 0 : index
    %c0_31 = arith.constant 0 : index
    %53 = vector.load %arg13[%c0_30, %c0_31] : memref<32x64xbf16, #tpu.memory_space<vmem>>, vector<32x64xbf16>
    %cst_32 = arith.constant dense<0.000000e+00> : vector<256x64xf32>
    %54 = tpu.matmul %52, %53, %cst_32 {dimension_numbers = #tpu.dot_dimension_numbers<[1], [0], [0], [1], [0, 0, 1, 1], [], []>} : vector<256x32xbf16>, vector<32x64xbf16>, vector<256x64xf32> -> vector<256x64xf32>
    %c0_33 = arith.constant 0 : index
    %c0_34 = arith.constant 0 : index
    %55 = vector.load %arg14[%c0_33, %c0_34] : memref<1x64xf32, #tpu.memory_space<vmem>>, vector<1x64xf32>
    %56 = vector.broadcast %55 : vector<1x64xf32> to vector<256x64xf32>
    %57 = arith.addf %54, %56 : vector<256x64xf32>
    %58 = vector.extract_strided_slice %57 {offsets = [0, 0], sizes = [256, 32], strides = [1, 1]} : vector<256x64xf32> to vector<256x32xf32>
    %59 = arith.truncf %58 : vector<256x32xf32> to vector<256x32xbf16>
    %60 = vector.extract_strided_slice %57 {offsets = [0, 32], sizes = [256, 32], strides = [1, 1]} : vector<256x64xf32> to vector<256x32xf32>
    %61 = arith.truncf %60 : vector<256x32xf32> to vector<256x32xbf16>
    %c0_35 = arith.constant 0 : index
    %c0_36 = arith.constant 0 : index
    %62 = vector.load %arg11[%c0_35, %c0_36] : memref<3x32xf32, #tpu.memory_space<vmem>>, vector<3x32xf32>
    %cst_37 = arith.constant 0.176776692 : f32
    %63 = vector.broadcast %cst_37 : f32 to vector<3x32xf32>
    %64 = arith.mulf %62, %63 : vector<3x32xf32>
    %c0_38 = arith.constant 0 : index
    %c0_39 = arith.constant 0 : index
    %65 = vector.load %arg12[%c0_38, %c0_39] : memref<1x32xf32, #tpu.memory_space<vmem>>, vector<1x32xf32>
    %cst_40 = arith.constant 0.176776692 : f32
    %66 = vector.broadcast %cst_40 : f32 to vector<1x32xf32>
    %67 = arith.mulf %65, %66 : vector<1x32xf32>
    %cst_41 = arith.constant dense<0.000000e+00> : vector<64x32xf32>
    %68 = tpu.matmul %43, %64, %cst_41 {dimension_numbers = #tpu.dot_dimension_numbers<[0], [0], [1], [1], [0, 1, 1, 1], [], []>} : vector<3x64xf32>, vector<3x32xf32>, vector<64x32xf32> -> vector<64x32xf32>
    %69 = vector.broadcast %67 : vector<1x32xf32> to vector<64x32xf32>
    %70 = arith.addf %68, %69 : vector<64x32xf32>
    %71 = arith.truncf %70 : vector<64x32xf32> to vector<64x32xbf16>
    %cst_42 = arith.constant dense<0.000000e+00> : vector<64x256xf32>
    %72 = tpu.matmul %71, %59, %cst_42 {dimension_numbers = #tpu.dot_dimension_numbers<[1], [1], [0], [0], [0, 0, 1, 0], [], []>} : vector<64x32xbf16>, vector<256x32xbf16>, vector<64x256xf32> -> vector<64x256xf32>
    %cst_43 = arith.constant dense<0xFF800000> : vector<64xf32>
    %73 = vector.multi_reduction <maximumf>, %72, %cst_43 [1] : vector<64x256xf32> to vector<64xf32>
    %74 = vector.shape_cast %73 : vector<64xf32> to vector<64x1xf32>
    %75 = vector.broadcast %74 : vector<64x1xf32> to vector<64x256xf32>
    %76 = arith.subf %72, %75 : vector<64x256xf32>
    %77 = math.exp %76 : vector<64x256xf32>
    %cst_44 = arith.constant dense<0.000000e+00> : vector<64xf32>
    %78 = vector.multi_reduction <add>, %77, %cst_44 [1] : vector<64x256xf32> to vector<64xf32>
    %79 = vector.shape_cast %78 : vector<64xf32> to vector<64x1xf32>
    %80 = tpu.reciprocal %79 {approx = true} : vector<64x1xf32> -> vector<64x1xf32>
    %81 = vector.broadcast %80 : vector<64x1xf32> to vector<64x256xf32>
    %82 = arith.mulf %77, %81 : vector<64x256xf32>
    %83 = arith.truncf %82 : vector<64x256xf32> to vector<64x256xbf16>
    %cst_45 = arith.constant dense<0.000000e+00> : vector<64x32xf32>
    %84 = tpu.matmul %83, %61, %cst_45 {dimension_numbers = #tpu.dot_dimension_numbers<[1], [0], [0], [1], [0, 0, 1, 1], [], []>} : vector<64x256xbf16>, vector<256x32xbf16>, vector<64x32xf32> -> vector<64x32xf32>
    %c0_46 = arith.constant 0 : index
    %c0_47 = arith.constant 0 : index
    %85 = vector.load %arg15[%c0_46, %c0_47] : memref<32x3xf32, #tpu.memory_space<vmem>>, vector<32x3xf32>
    %cst_48 = arith.constant dense<0.000000e+00> : vector<3x64xf32>
    %86 = tpu.matmul %85, %84, %cst_48 {dimension_numbers = #tpu.dot_dimension_numbers<[0], [1], [1], [0], [0, 1, 1, 0], [], []>} : vector<32x3xf32>, vector<64x32xf32>, vector<3x64xf32> -> vector<3x64xf32>
    %c0_49 = arith.constant 0 : index
    %c0_50 = arith.constant 0 : index
    %87 = vector.load %arg16[%c0_49, %c0_50] : memref<3x1xf32, #tpu.memory_space<vmem>>, vector<3x1xf32>
    %88 = vector.broadcast %87 : vector<3x1xf32> to vector<3x64xf32>
    %89 = arith.addf %86, %88 : vector<3x64xf32>
    %90 = math.tanh %89 : vector<3x64xf32>
    %91 = arith.addf %43, %90 : vector<3x64xf32>
    %cst_51 = arith.constant dense<0.000000e+00> : vector<3x64xf32>
    %92 = tpu.matmul %51, %91, %cst_51 {dimension_numbers = #tpu.dot_dimension_numbers<[0], [0], [1], [1], [0, 1, 1, 1], [], []>} : vector<3x3xf32>, vector<3x64xf32>, vector<3x64xf32> -> vector<3x64xf32>
    %c0_52 = arith.constant 0 : index
    %c0_53 = arith.constant 0 : index
    %c0_54 = arith.constant 0 : index
    %93 = vector.load %arg18[%c0_52, %c0_53, %c0_54] : memref<1x3x64xf32, #tpu.memory_space<vmem>>, vector<1x3x64xf32>
    %94 = vector.shape_cast %93 : vector<1x3x64xf32> to vector<3x64xf32>
    %95 = vector.shape_cast %43 : vector<3x64xf32> to vector<1x3x64xf32>
    tpu.vector_store %arg18[%c0_52, %c0_53, %c0_54], %95 {strides = array<i32>} : memref<1x3x64xf32, #tpu.memory_space<vmem>>, vector<1x3x64xf32>,
    %c0_55 = arith.constant 0 : index
    %c0_56 = arith.constant 0 : index
    %c0_57 = arith.constant 0 : index
    %96 = vector.load %arg19[%c0_55, %c0_56, %c0_57] : memref<1x3x64xf32, #tpu.memory_space<vmem>>, vector<1x3x64xf32>
    %97 = vector.shape_cast %96 : vector<1x3x64xf32> to vector<3x64xf32>
    %98 = vector.shape_cast %92 : vector<3x64xf32> to vector<1x3x64xf32>
    tpu.vector_store %arg19[%c0_55, %c0_56, %c0_57], %98 {strides = array<i32>} : memref<1x3x64xf32, #tpu.memory_space<vmem>>, vector<1x3x64xf32>,
    return
  }
  func.func @transform_0(%arg0: i32) -> (i32, i32) {
    %c0_i32 = arith.constant 0 : i32
    %c0_i32_0 = arith.constant 0 : i32
    return %arg0, %c0_i32 : i32, i32
  }
  func.func @transform_1(%arg0: i32) -> (i32, i32) {
    %c0_i32 = arith.constant 0 : i32
    %c0_i32_0 = arith.constant 0 : i32
    %c0_i32_1 = arith.constant 0 : i32
    return %c0_i32, %c0_i32_0 : i32, i32
  }
  func.func @transform_2(%arg0: i32) -> (i32, i32) {
    %c0_i32 = arith.constant 0 : i32
    %c0_i32_0 = arith.constant 0 : i32
    %c0_i32_1 = arith.constant 0 : i32
    return %c0_i32, %c0_i32_0 : i32, i32
  }
  func.func @transform_3(%arg0: i32) -> (i32, i32) {
    %c0_i32 = arith.constant 0 : i32
    %c0_i32_0 = arith.constant 0 : i32
    %c0_i32_1 = arith.constant 0 : i32
    return %c0_i32, %c0_i32_0 : i32, i32
  }
  func.func @transform_4(%arg0: i32) -> (i32, i32) {
    %c0_i32 = arith.constant 0 : i32
    %c0_i32_0 = arith.constant 0 : i32
    %c0_i32_1 = arith.constant 0 : i32
    return %c0_i32, %c0_i32_0 : i32, i32
  }
  func.func @transform_5(%arg0: i32) -> (i32, i32) {
    %c0_i32 = arith.constant 0 : i32
    %c0_i32_0 = arith.constant 0 : i32
    %c0_i32_1 = arith.constant 0 : i32
    return %c0_i32, %c0_i32_0 : i32, i32
  }
  func.func @transform_6(%arg0: i32) -> (i32, i32) {
    %c0_i32 = arith.constant 0 : i32
    %c0_i32_0 = arith.constant 0 : i32
    %c0_i32_1 = arith.constant 0 : i32
    return %c0_i32, %c0_i32_0 : i32, i32
  }
  func.func @transform_7(%arg0: i32) -> (i32, i32) {
    %c0_i32 = arith.constant 0 : i32
    %c0_i32_0 = arith.constant 0 : i32
    %c0_i32_1 = arith.constant 0 : i32
    return %c0_i32, %c0_i32_0 : i32, i32
  }
  func.func @transform_8(%arg0: i32) -> (i32, i32) {
    %c0_i32 = arith.constant 0 : i32
    %c0_i32_0 = arith.constant 0 : i32
    %c0_i32_1 = arith.constant 0 : i32
    return %c0_i32, %c0_i32_0 : i32, i32
  }
  func.func @transform_9(%arg0: i32) -> (i32, i32) {
    %c0_i32 = arith.constant 0 : i32
    %c0_i32_0 = arith.constant 0 : i32
    %c0_i32_1 = arith.constant 0 : i32
    return %c0_i32, %c0_i32_0 : i32, i32
  }
  func.func @transform_10(%arg0: i32) -> (i32, i32) {
    %c0_i32 = arith.constant 0 : i32
    %c0_i32_0 = arith.constant 0 : i32
    %c0_i32_1 = arith.constant 0 : i32
    return %c0_i32, %c0_i32_0 : i32, i32
  }
  func.func @transform_11(%arg0: i32) -> (i32, i32) {
    %c0_i32 = arith.constant 0 : i32
    %c0_i32_0 = arith.constant 0 : i32
    %c0_i32_1 = arith.constant 0 : i32
    return %c0_i32, %c0_i32_0 : i32, i32
  }
  func.func @transform_12(%arg0: i32) -> (i32, i32) {
    %c0_i32 = arith.constant 0 : i32
    %c0_i32_0 = arith.constant 0 : i32
    %c0_i32_1 = arith.constant 0 : i32
    return %c0_i32, %c0_i32_0 : i32, i32
  }
  func.func @transform_13(%arg0: i32) -> (i32, i32) {
    %c0_i32 = arith.constant 0 : i32
    %c0_i32_0 = arith.constant 0 : i32
    %c0_i32_1 = arith.constant 0 : i32
    return %c0_i32, %c0_i32_0 : i32, i32
  }
  func.func @transform_14(%arg0: i32) -> (i32, i32) {
    %c0_i32 = arith.constant 0 : i32
    %c0_i32_0 = arith.constant 0 : i32
    %c0_i32_1 = arith.constant 0 : i32
    return %c0_i32, %c0_i32_0 : i32, i32
  }
  func.func @transform_15(%arg0: i32) -> (i32, i32) {
    %c0_i32 = arith.constant 0 : i32
    %c0_i32_0 = arith.constant 0 : i32
    %c0_i32_1 = arith.constant 0 : i32
    return %c0_i32, %c0_i32_0 : i32, i32
  }
  func.func @transform_16(%arg0: i32) -> (i32, i32) {
    %c0_i32 = arith.constant 0 : i32
    %c0_i32_0 = arith.constant 0 : i32
    %c0_i32_1 = arith.constant 0 : i32
    return %c0_i32, %c0_i32_0 : i32, i32
  }
  func.func @transform_17(%arg0: i32) -> (i32, i32, i32) {
    %c0_i32 = arith.constant 0 : i32
    %c0_i32_0 = arith.constant 0 : i32
    %c0_i32_1 = arith.constant 0 : i32
    return %arg0, %c0_i32, %c0_i32_0 : i32, i32, i32
  }
  func.func @transform_18(%arg0: i32) -> (i32, i32, i32) {
    %c0_i32 = arith.constant 0 : i32
    %c0_i32_0 = arith.constant 0 : i32
    %c0_i32_1 = arith.constant 0 : i32
    return %arg0, %c0_i32, %c0_i32_0 : i32, i32, i32
  }
}

</mosaic_0001>

<llo_original>
// kernel: point_gen_forward.1
$region0: #{point_gen_forward.1}
  #allocation0 [shape = 'u32[]', space=smem, size = 0x4, offset = 0x4, fixed_abs, tag = 'smem constant byte address 0x4 - core index']
  #allocation1 [shape = 'u32[144,128]{1,0:T(1,128)}', space=vmem, size = 0x12000, scoped, tag = 'internal scratch']
  %s0 = inlined_call_operand.vmem [shape: bf16[512,27], index: 0, kind: input, shape index: {}]
  %s1 = inlined_call_operand.vmem [shape: f32[256,288], index: 1, kind: input, shape index: {}]
  %s2 = inlined_call_operand.vmem [shape: bf16[27,32], index: 2, kind: input, shape index: {}]
  %s3 = inlined_call_operand.vmem [shape: f32[1,32], index: 3, kind: input, shape index: {}]
  %s4 = inlined_call_operand.vmem [shape: bf16[288,32], index: 4, kind: input, shape index: {}]
  %s5 = inlined_call_operand.vmem [shape: f32[1,32], index: 5, kind: input, shape index: {}]
  %s6 = inlined_call_operand.vmem [shape: f32[32,64], index: 6, kind: input, shape index: {}]
  %s7 = inlined_call_operand.vmem [shape: f32[1,64], index: 7, kind: input, shape index: {}]
  %s8 = inlined_call_operand.vmem [shape: f32[64,201], index: 8, kind: input, shape index: {}]
  %s9 = inlined_call_operand.vmem [shape: f32[1,201], index: 9, kind: input, shape index: {}]
  %s10 = inlined_call_operand.vmem [shape: f32[3,32], index: 10, kind: input, shape index: {}]
  %s11 = inlined_call_operand.vmem [shape: f32[1,32], index: 11, kind: input, shape index: {}]
  %s12 = inlined_call_operand.vmem [shape: bf16[32,64], index: 12, kind: input, shape index: {}]
  %s13 = inlined_call_operand.vmem [shape: f32[1,64], index: 13, kind: input, shape index: {}]
  %s14 = inlined_call_operand.vmem [shape: f32[32,3], index: 14, kind: input, shape index: {}]
  %s15 = inlined_call_operand.vmem [shape: f32[3,1], index: 15, kind: input, shape index: {}]
  %s16 = inlined_call_operand.vmem [shape: f32[3,3], index: 16, kind: input, shape index: {}]
  %s17 = inlined_call_operand.vmem [shape: f32[2,3,64], index: 17, kind: output, shape index: {0}]
  %s18 = inlined_call_operand.vmem [shape: f32[2,3,64], index: 18, kind: output, shape index: {1}]
  %19 = xla_tuple %s17, %s18
  %s20 = sld [smem:[#allocation0]]
  $region109: #{point_gen_forward.1} parent=0
    _
  %s22 = ssub.s32 1, %s20
  %s23 = scalar_select 0, %s22, %s20
  loop: start=0, step=1, limit=4
  $region2: #{point_gen_forward.1} parent=0 // loop_pre_header
    _
  $region3: #{point_gen_forward.1} parent=0 // loop_header
    %s25 = sphi 0, %s29
    %p26 = scmp.ge.s32.totalorder %s25, 4
    %s35 = sphi 0, %s37
    %s38 = sphi 0, %s35
    %s39 = sphi 0, %s38
    %s55 = sphi 0, %s39
    %s59 = sphi 0, %s59
    %s61 = sphi 0, %s59
    %s62 = sphi 0, %s61
    %s76 = sphi 0, %s62
    %s80 = sphi 0, %s80
    %s82 = sphi 0, %s80
    %s83 = sphi 0, %s82
    %s97 = sphi 0, %s83
    %s101 = sphi 0, %s101
    %s103 = sphi 0, %s101
    %s104 = sphi 0, %s103
    %s118 = sphi 0, %s104
    %s122 = sphi 0, %s122
    %s124 = sphi 0, %s122
    %s125 = sphi 0, %s124
    %s139 = sphi 0, %s125
    %s143 = sphi 0, %s143
    %s145 = sphi 0, %s143
    %s146 = sphi 0, %s145
    %s160 = sphi 0, %s146
    %s164 = sphi 0, %s164
    %s166 = sphi 0, %s164
    %s167 = sphi 0, %s166
    %s181 = sphi 0, %s167
    %s185 = sphi 0, %s185
    %s187 = sphi 0, %s185
    %s188 = sphi 0, %s187
    %s202 = sphi 0, %s188
    %s206 = sphi 0, %s206
    %s208 = sphi 0, %s206
    %s209 = sphi 0, %s208
    %s223 = sphi 0, %s209
    %s227 = sphi 0, %s227
    %s229 = sphi 0, %s227
    %s230 = sphi 0, %s229
    %s244 = sphi 0, %s230
    %s248 = sphi 0, %s248
    %s250 = sphi 0, %s248
    %s251 = sphi 0, %s250
    %s265 = sphi 0, %s251
    %s269 = sphi 0, %s269
    %s271 = sphi 0, %s269
    %s272 = sphi 0, %s271
    %s286 = sphi 0, %s272
    %s290 = sphi 0, %s290
    %s292 = sphi 0, %s290
    %s293 = sphi 0, %s292
    %s307 = sphi 0, %s293
    %s311 = sphi 0, %s311
    %s313 = sphi 0, %s311
    %s314 = sphi 0, %s313
    %s328 = sphi 0, %s314
    %s332 = sphi 0, %s332
    %s334 = sphi 0, %s332
    %s335 = sphi 0, %s334
    %s349 = sphi 0, %s335
    %s353 = sphi 0, %s353
    %s355 = sphi 0, %s353
    %s356 = sphi 0, %s355
    %s370 = sphi 0, %s356
    %s374 = sphi 0, %s374
    %s376 = sphi 0, %s374
    %s377 = sphi 0, %s376
    %s391 = sphi 0, %s377
    %s397 = sphi 0, %s399
    %s400 = sphi 0, %s397
    %s401 = sphi 0, %s400
    %s417 = sphi 0, %s401
    %s423 = sphi 0, %s425
    %s426 = sphi 0, %s423
    %s427 = sphi 0, %s426
    %s443 = sphi 0, %s427
  $region4: #{point_gen_forward.1} parent=0 // loop_header_branch
    %28 = sbr.rel (%p26) target = $region8
  $region5: #{point_gen_forward.1} parent=0 // loop_body
    %s30 = ssub.s32 %s25, 1
    %s31 = ssub.s32 %s25, 2
    %s32 = sadd.s32 %s25, 1
    %s33 = ssub.s32 %s25, %s32
    %p34 = scmp.eq.s32.totalorder %s33, 0
    %s36 = sadd.s32 %s35, 1
    %s37 = scalar_select %p34, %s35, %s36
    %p40 = pneg %p34
    %p41 = scmp.eq.s32.totalorder %s25, 1
    %p42 = por %p40, %p41
    %p43 = scmp.ne.s32.totalorder %s35, %s38
    %p44 = scmp.eq.s32.totalorder %s25, 0
    %p45 = por %p43, %p44
    %p46 = scmp.ne.s32.totalorder %s35, %s38
    %p47 = scmp.eq.s32.totalorder %s30, 1
    %p48 = por %p46, %p47
    %p49 = scmp.ne.s32.totalorder %s38, %s39
    %p50 = scmp.eq.s32.totalorder %s30, 0
    %p51 = por %p49, %p50
    %p52 = scmp.ne.s32.totalorder %s38, %s39
    %p53 = scmp.eq.s32.totalorder %s31, 1
    %p54 = por %p52, %p53
    %p56 = scmp.ne.s32.totalorder %s39, %s55
    %p57 = scmp.eq.s32.totalorder %s31, 0
    %p58 = por %p56, %p57
    %s60 = sadd.s32 %s59, 1
    %p63 = scmp.eq.s32.totalorder %s25, 1
    %p64 = scmp.ne.s32.totalorder %s59, %s61
    %p65 = scmp.eq.s32.totalorder %s25, 0
    %p66 = por %p64, %p65
    %p67 = scmp.ne.s32.totalorder %s59, %s61
    %p68 = scmp.eq.s32.totalorder %s30, 1
    %p69 = por %p67, %p68
    %p70 = scmp.ne.s32.totalorder %s61, %s62
    %p71 = scmp.eq.s32.totalorder %s30, 0
    %p72 = por %p70, %p71
    %p73 = scmp.ne.s32.totalorder %s61, %s62
    %p74 = scmp.eq.s32.totalorder %s31, 1
    %p75 = por %p73, %p74
    %p77 = scmp.ne.s32.totalorder %s62, %s76
    %p78 = scmp.eq.s32.totalorder %s31, 0
    %p79 = por %p77, %p78
    %s81 = sadd.s32 %s80, 1
    %p84 = scmp.eq.s32.totalorder %s25, 1
    %p85 = scmp.ne.s32.totalorder %s80, %s82
    %p86 = scmp.eq.s32.totalorder %s25, 0
    %p87 = por %p85, %p86
    %p88 = scmp.ne.s32.totalorder %s80, %s82
    %p89 = scmp.eq.s32.totalorder %s30, 1
    %p90 = por %p88, %p89
    %p91 = scmp.ne.s32.totalorder %s82, %s83
    %p92 = scmp.eq.s32.totalorder %s30, 0
    %p93 = por %p91, %p92
    %p94 = scmp.ne.s32.totalorder %s82, %s83
    %p95 = scmp.eq.s32.totalorder %s31, 1
    %p96 = por %p94, %p95
    %p98 = scmp.ne.s32.totalorder %s83, %s97
    %p99 = scmp.eq.s32.totalorder %s31, 0
    %p100 = por %p98, %p99
    %s102 = sadd.s32 %s101, 1
    %p105 = scmp.eq.s32.totalorder %s25, 1
    %p106 = scmp.ne.s32.totalorder %s101, %s103
    %p107 = scmp.eq.s32.totalorder %s25, 0
    %p108 = por %p106, %p107
    %p109 = scmp.ne.s32.totalorder %s101, %s103
    %p110 = scmp.eq.s32.totalorder %s30, 1
    %p111 = por %p109, %p110
    %p112 = scmp.ne.s32.totalorder %s103, %s104
    %p113 = scmp.eq.s32.totalorder %s30, 0
    %p114 = por %p112, %p113
    %p115 = scmp.ne.s32.totalorder %s103, %s104
    %p116 = scmp.eq.s32.totalorder %s31, 1
    %p117 = por %p115, %p116
    %p119 = scmp.ne.s32.totalorder %s104, %s118
    %p120 = scmp.eq.s32.totalorder %s31, 0
    %p121 = por %p119, %p120
    %s123 = sadd.s32 %s122, 1
    %p126 = scmp.eq.s32.totalorder %s25, 1
    %p127 = scmp.ne.s32.totalorder %s122, %s124
    %p128 = scmp.eq.s32.totalorder %s25, 0
    %p129 = por %p127, %p128
    %p130 = scmp.ne.s32.totalorder %s122, %s124
    %p131 = scmp.eq.s32.totalorder %s30, 1
    %p132 = por %p130, %p131
    %p133 = scmp.ne.s32.totalorder %s124, %s125
    %p134 = scmp.eq.s32.totalorder %s30, 0
    %p135 = por %p133, %p134
    %p136 = scmp.ne.s32.totalorder %s124, %s125
    %p137 = scmp.eq.s32.totalorder %s31, 1
    %p138 = por %p136, %p137
    %p140 = scmp.ne.s32.totalorder %s125, %s139
    %p141 = scmp.eq.s32.totalorder %s31, 0
    %p142 = por %p140, %p141
    %s144 = sadd.s32 %s143, 1
    %p147 = scmp.eq.s32.totalorder %s25, 1
    %p148 = scmp.ne.s32.totalorder %s143, %s145
    %p149 = scmp.eq.s32.totalorder %s25, 0
    %p150 = por %p148, %p149
    %p151 = scmp.ne.s32.totalorder %s143, %s145
    %p152 = scmp.eq.s32.totalorder %s30, 1
    %p153 = por %p151, %p152
    %p154 = scmp.ne.s32.totalorder %s145, %s146
    %p155 = scmp.eq.s32.totalorder %s30, 0
    %p156 = por %p154, %p155
    %p157 = scmp.ne.s32.totalorder %s145, %s146
    %p158 = scmp.eq.s32.totalorder %s31, 1
    %p159 = por %p157, %p158
    %p161 = scmp.ne.s32.totalorder %s146, %s160
    %p162 = scmp.eq.s32.totalorder %s31, 0
    %p163 = por %p161, %p162
    %s165 = sadd.s32 %s164, 1
    %p168 = scmp.eq.s32.totalorder %s25, 1
    %p169 = scmp.ne.s32.totalorder %s164, %s166
    %p170 = scmp.eq.s32.totalorder %s25, 0
    %p171 = por %p169, %p170
    %p172 = scmp.ne.s32.totalorder %s164, %s166
    %p173 = scmp.eq.s32.totalorder %s30, 1
    %p174 = por %p172, %p173
    %p175 = scmp.ne.s32.totalorder %s166, %s167
    %p176 = scmp.eq.s32.totalorder %s30, 0
    %p177 = por %p175, %p176
    %p178 = scmp.ne.s32.totalorder %s166, %s167
    %p179 = scmp.eq.s32.totalorder %s31, 1
    %p180 = por %p178, %p179
    %p182 = scmp.ne.s32.totalorder %s167, %s181
    %p183 = scmp.eq.s32.totalorder %s31, 0
    %p184 = por %p182, %p183
    %s186 = sadd.s32 %s185, 1
    %p189 = scmp.eq.s32.totalorder %s25, 1
    %p190 = scmp.ne.s32.totalorder %s185, %s187
    %p191 = scmp.eq.s32.totalorder %s25, 0
    %p192 = por %p190, %p191
    %p193 = scmp.ne.s32.totalorder %s185, %s187
    %p194 = scmp.eq.s32.totalorder %s30, 1
    %p195 = por %p193, %p194
    %p196 = scmp.ne.s32.totalorder %s187, %s188
    %p197 = scmp.eq.s32.totalorder %s30, 0
    %p198 = por %p196, %p197
    %p199 = scmp.ne.s32.totalorder %s187, %s188
    %p200 = scmp.eq.s32.totalorder %s31, 1
    %p201 = por %p199, %p200
    %p203 = scmp.ne.s32.totalorder %s188, %s202
    %p204 = scmp.eq.s32.totalorder %s31, 0
    %p205 = por %p203, %p204
    %s207 = sadd.s32 %s206, 1
    %p210 = scmp.eq.s32.totalorder %s25, 1
    %p211 = scmp.ne.s32.totalorder %s206, %s208
    %p212 = scmp.eq.s32.totalorder %s25, 0
    %p213 = por %p211, %p212
    %p214 = scmp.ne.s32.totalorder %s206, %s208
    %p215 = scmp.eq.s32.totalorder %s30, 1
    %p216 = por %p214, %p215
    %p217 = scmp.ne.s32.totalorder %s208, %s209
    %p218 = scmp.eq.s32.totalorder %s30, 0
    %p219 = por %p217, %p218
    %p220 = scmp.ne.s32.totalorder %s208, %s209
    %p221 = scmp.eq.s32.totalorder %s31, 1
    %p222 = por %p220, %p221
    %p224 = scmp.ne.s32.totalorder %s209, %s223
    %p225 = scmp.eq.s32.totalorder %s31, 0
    %p226 = por %p224, %p225
    %s228 = sadd.s32 %s227, 1
    %p231 = scmp.eq.s32.totalorder %s25, 1
    %p232 = scmp.ne.s32.totalorder %s227, %s229
    %p233 = scmp.eq.s32.totalorder %s25, 0
    %p234 = por %p232, %p233
    %p235 = scmp.ne.s32.totalorder %s227, %s229
    %p236 = scmp.eq.s32.totalorder %s30, 1
    %p237 = por %p235, %p236
    %p238 = scmp.ne.s32.totalorder %s229, %s230
    %p239 = scmp.eq.s32.totalorder %s30, 0
    %p240 = por %p238, %p239
    %p241 = scmp.ne.s32.totalorder %s229, %s230
    %p242 = scmp.eq.s32.totalorder %s31, 1
    %p243 = por %p241, %p242
    %p245 = scmp.ne.s32.totalorder %s230, %s244
    %p246 = scmp.eq.s32.totalorder %s31, 0
    %p247 = por %p245, %p246
    %s249 = sadd.s32 %s248, 1
    %p252 = scmp.eq.s32.totalorder %s25, 1
    %p253 = scmp.ne.s32.totalorder %s248, %s250
    %p254 = scmp.eq.s32.totalorder %s25, 0
    %p255 = por %p253, %p254
    %p256 = scmp.ne.s32.totalorder %s248, %s250
    %p257 = scmp.eq.s32.totalorder %s30, 1
    %p258 = por %p256, %p257
    %p259 = scmp.ne.s32.totalorder %s250, %s251
    %p260 = scmp.eq.s32.totalorder %s30, 0
    %p261 = por %p259, %p260
    %p262 = scmp.ne.s32.totalorder %s250, %s251
    %p263 = scmp.eq.s32.totalorder %s31, 1
    %p264 = por %p262, %p263
    %p266 = scmp.ne.s32.totalorder %s251, %s265
    %p267 = scmp.eq.s32.totalorder %s31, 0
    %p268 = por %p266, %p267
    %s270 = sadd.s32 %s269, 1
    %p273 = scmp.eq.s32.totalorder %s25, 1
    %p274 = scmp.ne.s32.totalorder %s269, %s271
    %p275 = scmp.eq.s32.totalorder %s25, 0
    %p276 = por %p274, %p275
    %p277 = scmp.ne.s32.totalorder %s269, %s271
    %p278 = scmp.eq.s32.totalorder %s30, 1
    %p279 = por %p277, %p278
    %p280 = scmp.ne.s32.totalorder %s271, %s272
    %p281 = scmp.eq.s32.totalorder %s30, 0
    %p282 = por %p280, %p281
    %p283 = scmp.ne.s32.totalorder %s271, %s272
    %p284 = scmp.eq.s32.totalorder %s31, 1
    %p285 = por %p283, %p284
    %p287 = scmp.ne.s32.totalorder %s272, %s286
    %p288 = scmp.eq.s32.totalorder %s31, 0
    %p289 = por %p287, %p288
    %s291 = sadd.s32 %s290, 1
    %p294 = scmp.eq.s32.totalorder %s25, 1
    %p295 = scmp.ne.s32.totalorder %s290, %s292
    %p296 = scmp.eq.s32.totalorder %s25, 0
    %p297 = por %p295, %p296
    %p298 = scmp.ne.s32.totalorder %s290, %s292
    %p299 = scmp.eq.s32.totalorder %s30, 1
    %p300 = por %p298, %p299
    %p301 = scmp.ne.s32.totalorder %s292, %s293
    %p302 = scmp.eq.s32.totalorder %s30, 0
    %p303 = por %p301, %p302
    %p304 = scmp.ne.s32.totalorder %s292, %s293
    %p305 = scmp.eq.s32.totalorder %s31, 1
    %p306 = por %p304, %p305
    %p308 = scmp.ne.s32.totalorder %s293, %s307
    %p309 = scmp.eq.s32.totalorder %s31, 0
    %p310 = por %p308, %p309
    %s312 = sadd.s32 %s311, 1
    %p315 = scmp.eq.s32.totalorder %s25, 1
    %p316 = scmp.ne.s32.totalorder %s311, %s313
    %p317 = scmp.eq.s32.totalorder %s25, 0
    %p318 = por %p316, %p317
    %p319 = scmp.ne.s32.totalorder %s311, %s313
    %p320 = scmp.eq.s32.totalorder %s30, 1
    %p321 = por %p319, %p320
    %p322 = scmp.ne.s32.totalorder %s313, %s314
    %p323 = scmp.eq.s32.totalorder %s30, 0
    %p324 = por %p322, %p323
    %p325 = scmp.ne.s32.totalorder %s313, %s314
    %p326 = scmp.eq.s32.totalorder %s31, 1
    %p327 = por %p325, %p326
    %p329 = scmp.ne.s32.totalorder %s314, %s328
    %p330 = scmp.eq.s32.totalorder %s31, 0
    %p331 = por %p329, %p330
    %s333 = sadd.s32 %s332, 1
    %p336 = scmp.eq.s32.totalorder %s25, 1
    %p337 = scmp.ne.s32.totalorder %s332, %s334
    %p338 = scmp.eq.s32.totalorder %s25, 0
    %p339 = por %p337, %p338
    %p340 = scmp.ne.s32.totalorder %s332, %s334
    %p341 = scmp.eq.s32.totalorder %s30, 1
    %p342 = por %p340, %p341
    %p343 = scmp.ne.s32.totalorder %s334, %s335
    %p344 = scmp.eq.s32.totalorder %s30, 0
    %p345 = por %p343, %p344
    %p346 = scmp.ne.s32.totalorder %s334, %s335
    %p347 = scmp.eq.s32.totalorder %s31, 1
    %p348 = por %p346, %p347
    %p350 = scmp.ne.s32.totalorder %s335, %s349
    %p351 = scmp.eq.s32.totalorder %s31, 0
    %p352 = por %p350, %p351
    %s354 = sadd.s32 %s353, 1
    %p357 = scmp.eq.s32.totalorder %s25, 1
    %p358 = scmp.ne.s32.totalorder %s353, %s355
    %p359 = scmp.eq.s32.totalorder %s25, 0
    %p360 = por %p358, %p359
    %p361 = scmp.ne.s32.totalorder %s353, %s355
    %p362 = scmp.eq.s32.totalorder %s30, 1
    %p363 = por %p361, %p362
    %p364 = scmp.ne.s32.totalorder %s355, %s356
    %p365 = scmp.eq.s32.totalorder %s30, 0
    %p366 = por %p364, %p365
    %p367 = scmp.ne.s32.totalorder %s355, %s356
    %p368 = scmp.eq.s32.totalorder %s31, 1
    %p369 = por %p367, %p368
    %p371 = scmp.ne.s32.totalorder %s356, %s370
    %p372 = scmp.eq.s32.totalorder %s31, 0
    %p373 = por %p371, %p372
    %s375 = sadd.s32 %s374, 1
    %p378 = scmp.eq.s32.totalorder %s25, 1
    %p379 = scmp.ne.s32.totalorder %s374, %s376
    %p380 = scmp.eq.s32.totalorder %s25, 0
    %p381 = por %p379, %p380
    %p382 = scmp.ne.s32.totalorder %s374, %s376
    %p383 = scmp.eq.s32.totalorder %s30, 1
    %p384 = por %p382, %p383
    %p385 = scmp.ne.s32.totalorder %s376, %s377
    %p386 = scmp.eq.s32.totalorder %s30, 0
    %p387 = por %p385, %p386
    %p388 = scmp.ne.s32.totalorder %s376, %s377
    %p389 = scmp.eq.s32.totalorder %s31, 1
    %p390 = por %p388, %p389
    %p392 = scmp.ne.s32.totalorder %s377, %s391
    %p393 = scmp.eq.s32.totalorder %s31, 0
    %p394 = por %p392, %p393
    %s395 = ssub.s32 %s25, %s32
    %p396 = scmp.eq.s32.totalorder %s395, 0
    %s398 = sadd.s32 %s397, 1
    %s399 = scalar_select %p396, %s397, %s398
    %p402 = pneg %p396
    %p403 = scmp.eq.s32.totalorder %s25, 1
    %p404 = por %p402, %p403
    %p405 = scmp.ne.s32.totalorder %s397, %s400
    %p406 = scmp.eq.s32.totalorder %s25, 0
    %p407 = por %p405, %p406
    %p408 = scmp.ne.s32.totalorder %s397, %s400
    %p409 = scmp.eq.s32.totalorder %s30, 1
    %p410 = por %p408, %p409
    %p411 = scmp.ne.s32.totalorder %s400, %s401
    %p412 = scmp.eq.s32.totalorder %s30, 0
    %p413 = por %p411, %p412
    %p414 = scmp.ne.s32.totalorder %s400, %s401
    %p415 = scmp.eq.s32.totalorder %s31, 1
    %p416 = por %p414, %p415
    %p418 = scmp.ne.s32.totalorder %s401, %s417
    %p419 = scmp.eq.s32.totalorder %s31, 0
    %p420 = por %p418, %p419
    %s421 = ssub.s32 %s25, %s32
    %p422 = scmp.eq.s32.totalorder %s421, 0
    %s424 = sadd.s32 %s423, 1
    %s425 = scalar_select %p422, %s423, %s424
    %p428 = pneg %p422
    %p429 = scmp.eq.s32.totalorder %s25, 1
    %p430 = por %p428, %p429
    %p431 = scmp.ne.s32.totalorder %s423, %s426
    %p432 = scmp.eq.s32.totalorder %s25, 0
    %p433 = por %p431, %p432
    %p434 = scmp.ne.s32.totalorder %s423, %s426
    %p435 = scmp.eq.s32.totalorder %s30, 1
    %p436 = por %p434, %p435
    %p437 = scmp.ne.s32.totalorder %s426, %s427
    %p438 = scmp.eq.s32.totalorder %s30, 0
    %p439 = por %p437, %p438
    %p440 = scmp.ne.s32.totalorder %s426, %s427
    %p441 = scmp.eq.s32.totalorder %s31, 1
    %p442 = por %p440, %p441
    %p444 = scmp.ne.s32.totalorder %s427, %s443
    %p445 = scmp.eq.s32.totalorder %s31, 0
    %p446 = por %p444, %p445
    %p447 = scmp.le.s32.totalorder 1, %s25
    %p448 = scmp.lt.s32.totalorder %s25, 3
    %p449 = pnand %p447, %p448
    %p450 = pneg %p449
    // Predicated region
    $region9: #{point_gen_forward.1} parent=5 // pred_check
      _
    $region10: #{point_gen_forward.1} parent=5 // pred_check_branch
      %452 = sbr.rel (%p449) target = $region12
    $region11: #{point_gen_forward.1} parent=5 // pred_region
      %s453 = ssub.s32 %s25, 1
      // Predicated region
      $region13: #{point_gen_forward.1} parent=11 // pred_check
        %p454 = pneg %p72
      $region14: #{point_gen_forward.1} parent=11 // pred_check_branch
        %456 = sbr.rel (%p454) target = $region16
      $region15: #{point_gen_forward.1} parent=11 // pred_region
        _
      $region16: #{point_gen_forward.1} parent=11 // pred_fallthru
        _
      // Predicated region
      $region17: #{point_gen_forward.1} parent=11 // pred_check
        %p457 = pneg %p93
      $region18: #{point_gen_forward.1} parent=11 // pred_check_branch
        %459 = sbr.rel (%p457) target = $region20
      $region19: #{point_gen_forward.1} parent=11 // pred_region
        _
      $region20: #{point_gen_forward.1} parent=11 // pred_fallthru
        _
      // Predicated region
      $region21: #{point_gen_forward.1} parent=11 // pred_check
        %p460 = pneg %p114
      $region22: #{point_gen_forward.1} parent=11 // pred_check_branch
        %462 = sbr.rel (%p460) target = $region24
      $region23: #{point_gen_forward.1} parent=11 // pred_region
        _
      $region24: #{point_gen_forward.1} parent=11 // pred_fallthru
        _
      // Predicated region
      $region25: #{point_gen_forward.1} parent=11 // pred_check
        %p463 = pneg %p135
      $region26: #{point_gen_forward.1} parent=11 // pred_check_branch
        %465 = sbr.rel (%p463) target = $region28
      $region27: #{point_gen_forward.1} parent=11 // pred_region
        _
      $region28: #{point_gen_forward.1} parent=11 // pred_fallthru
        _
      // Predicated region
      $region29: #{point_gen_forward.1} parent=11 // pred_check
        %p466 = pneg %p156
      $region30: #{point_gen_forward.1} parent=11 // pred_check_branch
        %468 = sbr.rel (%p466) target = $region32
      $region31: #{point_gen_forward.1} parent=11 // pred_region
        _
      $region32: #{point_gen_forward.1} parent=11 // pred_fallthru
        _
      // Predicated region
      $region33: #{point_gen_forward.1} parent=11 // pred_check
        %p469 = pneg %p177
      $region34: #{point_gen_forward.1} parent=11 // pred_check_branch
        %471 = sbr.rel (%p469) target = $region36
      $region35: #{point_gen_forward.1} parent=11 // pred_region
        _
      $region36: #{point_gen_forward.1} parent=11 // pred_fallthru
        _
      // Predicated region
      $region37: #{point_gen_forward.1} parent=11 // pred_check
        %p472 = pneg %p198
      $region38: #{point_gen_forward.1} parent=11 // pred_check_branch
        %474 = sbr.rel (%p472) target = $region40
      $region39: #{point_gen_forward.1} parent=11 // pred_region
        _
      $region40: #{point_gen_forward.1} parent=11 // pred_fallthru
        _
      // Predicated region
      $region41: #{point_gen_forward.1} parent=11 // pred_check
        %p475 = pneg %p219
      $region42: #{point_gen_forward.1} parent=11 // pred_check_branch
        %477 = sbr.rel (%p475) target = $region44
      $region43: #{point_gen_forward.1} parent=11 // pred_region
        _
      $region44: #{point_gen_forward.1} parent=11 // pred_fallthru
        _
      // Predicated region
      $region45: #{point_gen_forward.1} parent=11 // pred_check
        %p478 = pneg %p240
      $region46: #{point_gen_forward.1} parent=11 // pred_check_branch
        %480 = sbr.rel (%p478) target = $region48
      $region47: #{point_gen_forward.1} parent=11 // pred_region
        _
      $region48: #{point_gen_forward.1} parent=11 // pred_fallthru
        _
      // Predicated region
      $region49: #{point_gen_forward.1} parent=11 // pred_check
        %p481 = pneg %p261
      $region50: #{point_gen_forward.1} parent=11 // pred_check_branch
        %483 = sbr.rel (%p481) target = $region52
      $region51: #{point_gen_forward.1} parent=11 // pred_region
        _
      $region52: #{point_gen_forward.1} parent=11 // pred_fallthru
        _
      // Predicated region
      $region53: #{point_gen_forward.1} parent=11 // pred_check
        %p484 = pneg %p282
      $region54: #{point_gen_forward.1} parent=11 // pred_check_branch
        %486 = sbr.rel (%p484) target = $region56
      $region55: #{point_gen_forward.1} parent=11 // pred_region
        _
      $region56: #{point_gen_forward.1} parent=11 // pred_fallthru
        _
      // Predicated region
      $region57: #{point_gen_forward.1} parent=11 // pred_check
        %p487 = pneg %p303
      $region58: #{point_gen_forward.1} parent=11 // pred_check_branch
        %489 = sbr.rel (%p487) target = $region60
      $region59: #{point_gen_forward.1} parent=11 // pred_region
        _
      $region60: #{point_gen_forward.1} parent=11 // pred_fallthru
        _
      // Predicated region
      $region61: #{point_gen_forward.1} parent=11 // pred_check
        %p490 = pneg %p324
      $region62: #{point_gen_forward.1} parent=11 // pred_check_branch
        %492 = sbr.rel (%p490) target = $region64
      $region63: #{point_gen_forward.1} parent=11 // pred_region
        _
      $region64: #{point_gen_forward.1} parent=11 // pred_fallthru
        _
      // Predicated region
      $region65: #{point_gen_forward.1} parent=11 // pred_check
        %p493 = pneg %p345
      $region66: #{point_gen_forward.1} parent=11 // pred_check_branch
        %495 = sbr.rel (%p493) target = $region68
      $region67: #{point_gen_forward.1} parent=11 // pred_region
        _
      $region68: #{point_gen_forward.1} parent=11 // pred_fallthru
        _
      // Predicated region
      $region69: #{point_gen_forward.1} parent=11 // pred_check
        %p496 = pneg %p366
      $region70: #{point_gen_forward.1} parent=11 // pred_check_branch
        %498 = sbr.rel (%p496) target = $region72
      $region71: #{point_gen_forward.1} parent=11 // pred_region
        _
      $region72: #{point_gen_forward.1} parent=11 // pred_fallthru
        _
      // Predicated region
      $region73: #{point_gen_forward.1} parent=11 // pred_check
        %p499 = pneg %p387
      $region74: #{point_gen_forward.1} parent=11 // pred_check_branch
        %501 = sbr.rel (%p499) target = $region76
      $region75: #{point_gen_forward.1} parent=11 // pred_region
        _
      $region76: #{point_gen_forward.1} parent=11 // pred_fallthru
        _
    $region12: #{point_gen_forward.1} parent=5 // pred_fallthru
      _
    %p502 = scmp.lt.s32.totalorder %s25, 2
    // Predicated region
    $region77: #{point_gen_forward.1} parent=5 // pred_check
      %p503 = pneg %p502
    $region78: #{point_gen_forward.1} parent=5 // pred_check_branch
      %505 = sbr.rel (%p503) target = $region80
    $region79: #{point_gen_forward.1} parent=5 // pred_region
      // Predicated region
      $region81: #{point_gen_forward.1} parent=79 // pred_check
        %p506 = pneg %p45
      $region82: #{point_gen_forward.1} parent=79 // pred_check_branch
        %508 = sbr.rel (%p506) target = $region84
      $region83: #{point_gen_forward.1} parent=79 // pred_region
        %s509 = smul.u32 32, %s25
        %p510 = scmp.lt.s32.totalorder %s509, 63
        %s511 = scalar_select %p510, %s509, 63
        %s512 = smul.addr %s511, 4
        %s513 = scalar_lea.vmem %s0, %s512
        %s514 = smul.u32 32, %s25
      $region84: #{point_gen_forward.1} parent=79 // pred_fallthru
        _
    $region80: #{point_gen_forward.1} parent=5 // pred_fallthru
      _
    %p515 = scmp.le.s32.totalorder 1, %s25
    %p516 = scmp.lt.s32.totalorder %s25, 3
    %p517 = pnand %p515, %p516
    %p518 = pneg %p517
    // Predicated region
    $region85: #{point_gen_forward.1} parent=5 // pred_check
      _
    $region86: #{point_gen_forward.1} parent=5 // pred_check_branch
      %520 = sbr.rel (%p517) target = $region88
    $region87: #{point_gen_forward.1} parent=5 // pred_region
      %s521 = ssub.s32 %s25, 1
      %s522 = smul.u32 32, %s30
      %p523 = scmp.lt.s32.totalorder %s522, 63
      %s524 = scalar_select %p523, %s522, 63
      %s525 = smul.addr %s524, 4
      %s526 = scalar_lea.vmem %s0, %s525
      %p527 = pneg %p51
      %p528 = pneg %p48
      %p529 = pneg %p72
      %p530 = pneg %p69
      %p531 = pneg %p93
      %p532 = pneg %p90
      %p533 = pneg %p114
      %p534 = pneg %p111
      %p535 = pneg %p135
      %p536 = pneg %p132
      %p537 = pneg %p156
      %p538 = pneg %p153
      %p539 = pneg %p177
      %p540 = pneg %p174
      %p541 = pneg %p198
      %p542 = pneg %p195
      %p543 = pneg %p219
      %p544 = pneg %p216
      %p545 = pneg %p240
      %p546 = pneg %p237
      %p547 = pneg %p261
      %p548 = pneg %p258
      %p549 = pneg %p282
      %p550 = pneg %p279
      %p551 = pneg %p303
      %p552 = pneg %p300
      %p553 = pneg %p324
      %p554 = pneg %p321
      %p555 = pneg %p345
      %p556 = pneg %p342
      %p557 = pneg %p366
      %p558 = pneg %p363
      %p559 = pneg %p387
      %p560 = pneg %p384
      %p561 = pneg %p413
      %p562 = pneg %p410
      %p563 = scmp.lt.s32.totalorder %s30, 1
      %s564 = scalar_select %p563, %s30, 1
      %s565 = smul.addr %s564, 4
      %s566 = scalar_lea.vmem %s17, %s565
      %p567 = pneg %p439
      %p568 = pneg %p436
      %p569 = scmp.lt.s32.totalorder %s30, 1
      %s570 = scalar_select %p569, %s30, 1
      %s571 = smul.addr %s570, 4
      %s572 = scalar_lea.vmem %s18, %s571
      %s573 = smul.u32 32, %s30
      %p574 = scmp.lt.s32.totalorder %s573, 63
      %s575 = scalar_select %p574, %s573, 63
      %s576 = smul.addr %s575, 4
      %s577 = scalar_lea.vmem %s0, %s576
      %s578 = smul.u32 32, %s30
      %p579 = scmp.lt.s32.totalorder %s30, 1
      %s580 = scalar_select %p579, %s30, 1
      %s581 = smul.addr %s580, 4
      %s582 = scalar_lea.vmem %s17, %s581
      %p583 = scmp.lt.s32.totalorder %s30, 1
      %s584 = scalar_select %p583, %s30, 1
      %s585 = smul.addr %s584, 4
      %s586 = scalar_lea.vmem %s18, %s585
      %v588 = vld [vmem:[%s577] sm:$0xf]
      %v589 = vld [vmem:[%s577 + $0x4] sm:$0xf]
      %v590 = vld [vmem:[%s577 + $0x8] sm:$0xf]
      %v591 = vld [vmem:[%s577 + $0xc] sm:$0xf]
      %v592 = vld [vmem:[%s577 + $0x10] sm:$0xf]
      %v593 = vld [vmem:[%s577 + $0x14] sm:$0xf]
      %v594 = vld [vmem:[%s577 + $0x18] sm:$0xf]
      %v595 = vld [vmem:[%s577 + $0x1c] sm:$0xf]
      %v596 = vld [vmem:[%s577 + $0x20] sm:$0xf]
      %v597 = vld [vmem:[%s577 + $0x24] sm:$0xf]
      %v598 = vld [vmem:[%s577 + $0x28] sm:$0xf]
      %v599 = vld [vmem:[%s577 + $0x2c] sm:$0xf]
      %v600 = vld [vmem:[%s577 + $0x30] sm:$0xf]
      %v601 = vld [vmem:[%s577 + $0x34] sm:$0xf]
      %v602 = vld [vmem:[%s577 + $0x38] sm:$0xf]
      %v603 = vld [vmem:[%s577 + $0x3c] sm:$0xf]
      %v604 = vld [vmem:[%s577 + $0x40] sm:$0xf]
      %v605 = vld [vmem:[%s577 + $0x44] sm:$0xf]
      %v606 = vld [vmem:[%s577 + $0x48] sm:$0xf]
      %v607 = vld [vmem:[%s577 + $0x4c] sm:$0xf]
      %v608 = vld [vmem:[%s577 + $0x50] sm:$0xf]
      %v609 = vld [vmem:[%s577 + $0x54] sm:$0xf]
      %v610 = vld [vmem:[%s577 + $0x58] sm:$0xf]
      %v611 = vld [vmem:[%s577 + $0x5c] sm:$0xf]
      %v612 = vld [vmem:[%s577 + $0x60] sm:$0xf]
      %v613 = vld [vmem:[%s577 + $0x64] sm:$0xf]
      %v614 = vld [vmem:[%s577 + $0x68] sm:$0xf]
      %v615 = vld [vmem:[%s577 + $0x6c] sm:$0xf]
      %v616 = vld [vmem:[%s577 + $0x70] sm:$0xf]
      %v617 = vld [vmem:[%s577 + $0x74] sm:$0xf]
      %v618 = vld [vmem:[%s577 + $0x78] sm:$0xf]
      %v619 = vld [vmem:[%s577 + $0x7c] sm:$0xf]
      %v620 = vld [vmem:[%s2] sm:$0xf]
      %v621 = vld [vmem:[%s2 + $0x4] sm:$0xf]
      %v622 = vld [vmem:[%s2 + $0x8] sm:$0xf]
      %v623 = vld [vmem:[%s2 + $0xc] sm:$0x3]
      %v624 = vld [vmem:[%s3] sm:$0x1]
      %v626 = vlaneseq
      %v627 = vshrl.u32 %v626, 7
      %v628 = vsub.s32 0, %v627
      %v629 = vrot.slane %v624, %v628
      %v663 = vunpack.c.l.b16 %v588
      %v664 = vunpack.c.l.b16 %v589
      %v665 = vunpack.c.l.b16 %v590
      %v666 = vunpack.c.l.b16 %v591
      %v667 = vunpack.c.l.b16 %v592
      %v668 = vunpack.c.l.b16 %v593
      %v669 = vunpack.c.l.b16 %v594
      %v670 = vunpack.c.l.b16 %v595
      %v671 = vunpack.c.l.b16 %v596
      %v672 = vunpack.c.l.b16 %v597
      %v673 = vunpack.c.l.b16 %v598
      %v674 = vunpack.c.l.b16 %v599
      %v675 = vunpack.c.l.b16 %v600
      %v676 = vunpack.c.l.b16 %v601
      %v677 = vunpack.c.l.b16 %v602
      %v678 = vunpack.c.l.b16 %v603
      %v679 = vunpack.c.l.b16 %v604
      %v680 = vunpack.c.l.b16 %v605
      %v681 = vunpack.c.l.b16 %v606
      %v682 = vunpack.c.l.b16 %v607
      %v683 = vunpack.c.l.b16 %v608
      %v684 = vunpack.c.l.b16 %v609
      %v685 = vunpack.c.l.b16 %v610
      %v686 = vunpack.c.l.b16 %v611
      %v687 = vunpack.c.l.b16 %v612
      %v688 = vunpack.c.l.b16 %v613
      %v689 = vunpack.c.l.b16 %v614
      %v690 = vunpack.c.l.b16 %v615
      %v691 = vunpack.c.l.b16 %v616
      %v692 = vunpack.c.l.b16 %v617
      %v693 = vunpack.c.l.b16 %v618
      %v694 = vunpack.c.l.b16 %v619
      %v695 = vpack.c.b16 %v664, %v663
      %v696 = vpack.c.b16 %v666, %v665
      %v697 = vpack.c.b16 %v668, %v667
      %v698 = vpack.c.b16 %v670, %v669
      %v699 = vpack.c.b16 %v672, %v671
      %v700 = vpack.c.b16 %v674, %v673
      %v701 = vpack.c.b16 %v676, %v675
      %v702 = vpack.c.b16 %v678, %v677
      %v703 = vpack.c.b16 %v680, %v679
      %v704 = vpack.c.b16 %v682, %v681
      %v705 = vpack.c.b16 %v684, %v683
      %v706 = vpack.c.b16 %v686, %v685
      %v707 = vpack.c.b16 %v688, %v687
      %v708 = vpack.c.b16 %v690, %v689
      %v709 = vpack.c.b16 %v692, %v691
      %v710 = vpack.c.b16 %v694, %v693
      %v715 = vunpack.c.l.b16 %v620
      %v716 = vunpack.c.l.b16 %v621
      %v717 = vunpack.c.l.b16 %v622
      %v718 = vunpack.c.l.b16 %v623
      %v719 = vpack.c.b16 %v716, %v715
      %v720 = vpack.c.b16 %v718, %v717
      %vm722 = vcmask 220160
      %v724 = vsel %vm722, %v695, 0
      %v727 = vsel %vm722, %v696, 0
      %v730 = vsel %vm722, %v697, 0
      %v733 = vsel %vm722, %v698, 0
      %v736 = vsel %vm722, %v699, 0
      %v739 = vsel %vm722, %v700, 0
      %v742 = vsel %vm722, %v701, 0
      %v745 = vsel %vm722, %v702, 0
      %v748 = vsel %vm722, %v703, 0
      %v751 = vsel %vm722, %v704, 0
      %v754 = vsel %vm722, %v705, 0
      %v757 = vsel %vm722, %v706, 0
      %v760 = vsel %vm722, %v707, 0
      %v763 = vsel %vm722, %v708, 0
      %v766 = vsel %vm722, %v709, 0
      %v769 = vsel %vm722, %v710, 0
      %vm771 = vcmask 1044480
      %vm772 = vcmask 1045504
      %v773 = vsel %vm771, 4294967295, 65535
      %v774 = vsel %vm772, %v773, 0
      %v776 = vand.u32 %v720, %v774
      %778 = vmatprep.subr.bf16.mxu0 0
      %779 = vmatpush1.bf16.msra.mxu0 %v719
      %780 = vmatprep.subr.bf16.mxu0 0
      %781 = vmatpush1.bf16.msra.mxu0 %v776
      %782 = vmatprep.subr.bf16.mxu0 0
      %783 = vmatpush1.bf16.msra.mxu0 0
      %784 = vmatprep.subr.bf16.mxu0 0
      %785 = vmatpush1.bf16.msra.mxu0 0
      %786 = vmatprep.subr.bf16.mxu0 0
      %787 = vmatpush1.bf16.msra.mxu0 0
      %788 = vmatprep.subr.bf16.mxu0 0
      %789 = vmatpush1.bf16.msra.mxu0 0
      %790 = vmatprep.subr.bf16.mxu0 0
      %791 = vmatpush1.bf16.msra.mxu0 0
      %792 = vmatprep.subr.bf16.mxu0 0
      %793 = vmatpush1.bf16.msra.mxu0 0
      %794 = vmatprep.subr.bf16.mxu0 0
      %795 = vmatpush1.bf16.msra.mxu0 0
      %796 = vmatprep.subr.bf16.mxu0 0
      %797 = vmatpush1.bf16.msra.mxu0 0
      %798 = vmatprep.subr.bf16.mxu0 0
      %799 = vmatpush1.bf16.msra.mxu0 0
      %800 = vmatprep.subr.bf16.mxu0 0
      %801 = vmatpush1.bf16.msra.mxu0 0
      %802 = vmatprep.subr.bf16.mxu0 0
      %803 = vmatpush1.bf16.msra.mxu0 0
      %804 = vmatprep.subr.bf16.mxu0 0
      %805 = vmatpush1.bf16.msra.mxu0 0
      %806 = vmatprep.subr.bf16.mxu0 0
      %807 = vmatpush1.bf16.msra.mxu0 0
      %808 = vmatprep.subr.bf16.mxu0 0
      %809 = vmatpush1.bf16.msra.mxu0 0
      %810 = vmatprep.mubr.bf16.mxu0 0
      %811 = vmatmul.mubr.bf16.gmra.mrb[0].mxu0 %v724
      %v812 = vpop.f32.mrb[0].mxu0
      %v813 = vadd.f32 %v629, %v812
      %v814 = vpop.f32.mrb[0].mxu0
      %v815 = vpop.f32.mrb[0].mxu0
      %v816 = vadd.f32 %v629, %v815
      %v817 = vpop.f32.mrb[0].mxu0
      %818 = vmatprep.mubr.bf16.mxu0 0
      %819 = vmatmul.mubr.bf16.gmra.mrb[0].mxu0 %v727
      %v820 = vpop.f32.mrb[0].mxu0
      %v821 = vadd.f32 %v629, %v820
      %v822 = vpop.f32.mrb[0].mxu0
      %v823 = vpop.f32.mrb[0].mxu0
      %v824 = vadd.f32 %v629, %v823
      %v825 = vpop.f32.mrb[0].mxu0
      %826 = vmatprep.mubr.bf16.mxu0 0
      %827 = vmatmul.mubr.bf16.gmra.mrb[0].mxu0 %v730
      %v828 = vpop.f32.mrb[0].mxu0
      %v829 = vadd.f32 %v629, %v828
      %v830 = vpop.f32.mrb[0].mxu0
      %v831 = vpop.f32.mrb[0].mxu0
      %v832 = vadd.f32 %v629, %v831
      %v833 = vpop.f32.mrb[0].mxu0
      %834 = vmatprep.mubr.bf16.mxu0 0
      %835 = vmatmul.mubr.bf16.gmra.mrb[0].mxu0 %v733
      %v836 = vpop.f32.mrb[0].mxu0
      %v837 = vadd.f32 %v629, %v836
      %v838 = vpop.f32.mrb[0].mxu0
      %v839 = vpop.f32.mrb[0].mxu0
      %v840 = vadd.f32 %v629, %v839
      %v841 = vpop.f32.mrb[0].mxu0
      %842 = vmatprep.mubr.bf16.mxu0 0
      %843 = vmatmul.mubr.bf16.gmra.mrb[0].mxu0 %v736
      %v844 = vpop.f32.mrb[0].mxu0
      %v845 = vadd.f32 %v629, %v844
      %v846 = vpop.f32.mrb[0].mxu0
      %v847 = vpop.f32.mrb[0].mxu0
      %v848 = vadd.f32 %v629, %v847
      %v849 = vpop.f32.mrb[0].mxu0
      %850 = vmatprep.mubr.bf16.mxu0 0
      %851 = vmatmul.mubr.bf16.gmra.mrb[0].mxu0 %v739
      %v852 = vpop.f32.mrb[0].mxu0
      %v853 = vadd.f32 %v629, %v852
      %v854 = vpop.f32.mrb[0].mxu0
      %v855 = vpop.f32.mrb[0].mxu0
      %v856 = vadd.f32 %v629, %v855
      %v857 = vpop.f32.mrb[0].mxu0
      %858 = vmatprep.mubr.bf16.mxu0 0
      %859 = vmatmul.mubr.bf16.gmra.mrb[0].mxu0 %v742
      %v860 = vpop.f32.mrb[0].mxu0
      %v861 = vadd.f32 %v629, %v860
      %v862 = vpop.f32.mrb[0].mxu0
      %v863 = vpop.f32.mrb[0].mxu0
      %v864 = vadd.f32 %v629, %v863
      %v865 = vpop.f32.mrb[0].mxu0
      %866 = vmatprep.mubr.bf16.mxu0 0
      %867 = vmatmul.mubr.bf16.gmra.mrb[0].mxu0 %v745
      %v868 = vpop.f32.mrb[0].mxu0
      %v869 = vadd.f32 %v629, %v868
      %v870 = vpop.f32.mrb[0].mxu0
      %v871 = vpop.f32.mrb[0].mxu0
      %v872 = vadd.f32 %v629, %v871
      %v873 = vpop.f32.mrb[0].mxu0
      %874 = vmatprep.mubr.bf16.mxu0 0
      %875 = vmatmul.mubr.bf16.gmra.mrb[0].mxu0 %v748
      %v876 = vpop.f32.mrb[0].mxu0
      %v877 = vadd.f32 %v629, %v876
      %v878 = vpop.f32.mrb[0].mxu0
      %v879 = vpop.f32.mrb[0].mxu0
      %v880 = vadd.f32 %v629, %v879
      %v881 = vpop.f32.mrb[0].mxu0
      %882 = vmatprep.mubr.bf16.mxu0 0
      %883 = vmatmul.mubr.bf16.gmra.mrb[0].mxu0 %v751
      %v884 = vpop.f32.mrb[0].mxu0
      %v885 = vadd.f32 %v629, %v884
      %v886 = vpop.f32.mrb[0].mxu0
      %v887 = vpop.f32.mrb[0].mxu0
      %v888 = vadd.f32 %v629, %v887
      %v889 = vpop.f32.mrb[0].mxu0
      %890 = vmatprep.mubr.bf16.mxu0 0
      %891 = vmatmul.mubr.bf16.gmra.mrb[0].mxu0 %v754
      %v892 = vpop.f32.mrb[0].mxu0
      %v893 = vadd.f32 %v629, %v892
      %v894 = vpop.f32.mrb[0].mxu0
      %v895 = vpop.f32.mrb[0].mxu0
      %v896 = vadd.f32 %v629, %v895
      %v897 = vpop.f32.mrb[0].mxu0
      %898 = vmatprep.mubr.bf16.mxu0 0
      %899 = vmatmul.mubr.bf16.gmra.mrb[0].mxu0 %v757
      %v900 = vpop.f32.mrb[0].mxu0
      %v901 = vadd.f32 %v629, %v900
      %v902 = vpop.f32.mrb[0].mxu0
      %v903 = vpop.f32.mrb[0].mxu0
      %v904 = vadd.f32 %v629, %v903
      %v905 = vpop.f32.mrb[0].mxu0
      %906 = vmatprep.mubr.bf16.mxu0 0
      %907 = vmatmul.mubr.bf16.gmra.mrb[0].mxu0 %v760
      %v908 = vpop.f32.mrb[0].mxu0
      %v909 = vadd.f32 %v629, %v908
      %v910 = vpop.f32.mrb[0].mxu0
      %v911 = vpop.f32.mrb[0].mxu0
      %v912 = vadd.f32 %v629, %v911
      %v913 = vpop.f32.mrb[0].mxu0
      %914 = vmatprep.mubr.bf16.mxu0 0
      %915 = vmatmul.mubr.bf16.gmra.mrb[0].mxu0 %v763
      %v916 = vpop.f32.mrb[0].mxu0
      %v917 = vadd.f32 %v629, %v916
      %v918 = vpop.f32.mrb[0].mxu0
      %v919 = vpop.f32.mrb[0].mxu0
      %v920 = vadd.f32 %v629, %v919
      %v921 = vpop.f32.mrb[0].mxu0
      %922 = vmatprep.mubr.bf16.mxu0 0
      %923 = vmatmul.mubr.bf16.gmra.mrb[0].mxu0 %v766
      %v924 = vpop.f32.mrb[0].mxu0
      %v925 = vadd.f32 %v629, %v924
      %v926 = vpop.f32.mrb[0].mxu0
      %v927 = vpop.f32.mrb[0].mxu0
      %v928 = vadd.f32 %v629, %v927
      %v929 = vpop.f32.mrb[0].mxu0
      %930 = vmatprep.mubr.bf16.mxu0 0
      %931 = vmatmul.mubr.bf16.gmra.mrb[0].mxu0 %v769
      %v932 = vpop.f32.mrb[0].mxu0
      %v933 = vadd.f32 %v629, %v932
      %v934 = vpop.f32.mrb[0].mxu0
      %v935 = vpop.f32.mrb[0].mxu0
      %v936 = vadd.f32 %v629, %v935
      %v937 = vpop.f32.mrb[0].mxu0
      %938 = vdwg.mxu0
      %v939 = vmax.f32 %v813, 0.0
      %v940 = vmax.f32 %v816, 0.0
      %v941 = vmax.f32 %v821, 0.0
      %v942 = vmax.f32 %v824, 0.0
      %v943 = vmax.f32 %v829, 0.0
      %v944 = vmax.f32 %v832, 0.0
      %v945 = vmax.f32 %v837, 0.0
      %v946 = vmax.f32 %v840, 0.0
      %v947 = vmax.f32 %v845, 0.0
      %v948 = vmax.f32 %v848, 0.0
      %v949 = vmax.f32 %v853, 0.0
      %v950 = vmax.f32 %v856, 0.0
      %v951 = vmax.f32 %v861, 0.0
      %v952 = vmax.f32 %v864, 0.0
      %v953 = vmax.f32 %v869, 0.0
      %v954 = vmax.f32 %v872, 0.0
      %v955 = vmax.f32 %v877, 0.0
      %v956 = vmax.f32 %v880, 0.0
      %v957 = vmax.f32 %v885, 0.0
      %v958 = vmax.f32 %v888, 0.0
      %v959 = vmax.f32 %v893, 0.0
      %v960 = vmax.f32 %v896, 0.0
      %v961 = vmax.f32 %v901, 0.0
      %v962 = vmax.f32 %v904, 0.0
      %v963 = vmax.f32 %v909, 0.0
      %v964 = vmax.f32 %v912, 0.0
      %v965 = vmax.f32 %v917, 0.0
      %v966 = vmax.f32 %v920, 0.0
      %v967 = vmax.f32 %v925, 0.0
      %v968 = vmax.f32 %v928, 0.0
      %v969 = vmax.f32 %v933, 0.0
      %v970 = vmax.f32 %v936, 0.0
      %v971 = vrot.slane %v939, 7
      %v972 = vrot.slane %v940, 7
      %v973 = vrot.slane %v941, 7
      %v974 = vrot.slane %v942, 7
      %v975 = vrot.slane %v943, 7
      %v976 = vrot.slane %v944, 7
      %v977 = vrot.slane %v945, 7
      %v978 = vrot.slane %v946, 7
      %v979 = vrot.slane %v947, 7
      %v980 = vrot.slane %v948, 7
      %v981 = vrot.slane %v949, 7
      %v982 = vrot.slane %v950, 7
      %v983 = vrot.slane %v951, 7
      %v984 = vrot.slane %v952, 7
      %v985 = vrot.slane %v953, 7
      %v986 = vrot.slane %v954, 7
      %v987 = vrot.slane %v955, 7
      %v988 = vrot.slane %v956, 7
      %v989 = vrot.slane %v957, 7
      %v990 = vrot.slane %v958, 7
      %v991 = vrot.slane %v959, 7
      %v992 = vrot.slane %v960, 7
      %v993 = vrot.slane %v961, 7
      %v994 = vrot.slane %v962, 7
      %v995 = vrot.slane %v963, 7
      %v996 = vrot.slane %v964, 7
      %v997 = vrot.slane %v965, 7
      %v998 = vrot.slane %v966, 7
      %v999 = vrot.slane %v967, 7
      %v1000 = vrot.slane %v968, 7
      %v1001 = vrot.slane %v969, 7
      %v1002 = vrot.slane %v970, 7
      %v1003 = vlaneseq
      %v1004 = vshrl.u32 %v1003, 7
      %vm1005 = vcmp.lt.s32.totalorder %v1004, 1
      %v1006 = vsel %vm1005, %v1001, %v1002
      %v1007 = vsel %vm1005, %v1000, %v1001
      %v1008 = vsel %vm1005, %v999, %v1000
      %v1009 = vsel %vm1005, %v998, %v999
      %v1010 = vsel %vm1005, %v997, %v998
      %v1011 = vsel %vm1005, %v996, %v997
      %v1012 = vsel %vm1005, %v995, %v996
      %v1013 = vsel %vm1005, %v994, %v995
      %v1014 = vsel %vm1005, %v993, %v994
      %v1015 = vsel %vm1005, %v992, %v993
      %v1016 = vsel %vm1005, %v991, %v992
      %v1017 = vsel %vm1005, %v990, %v991
      %v1018 = vsel %vm1005, %v989, %v990
      %v1019 = vsel %vm1005, %v988, %v989
      %v1020 = vsel %vm1005, %v987, %v988
      %v1021 = vsel %vm1005, %v986, %v987
      %v1022 = vsel %vm1005, %v985, %v986
      %v1023 = vsel %vm1005, %v984, %v985
      %v1024 = vsel %vm1005, %v983, %v984
      %v1025 = vsel %vm1005, %v982, %v983
      %v1026 = vsel %vm1005, %v981, %v982
      %v1027 = vsel %vm1005, %v980, %v981
      %v1028 = vsel %vm1005, %v979, %v980
      %v1029 = vsel %vm1005, %v978, %v979
      %v1030 = vsel %vm1005, %v977, %v978
      %v1031 = vsel %vm1005, %v976, %v977
      %v1032 = vsel %vm1005, %v975, %v976
      %v1033 = vsel %vm1005, %v974, %v975
      %v1034 = vsel %vm1005, %v973, %v974
      %v1035 = vsel %vm1005, %v972, %v973
      %v1036 = vsel %vm1005, %v971, %v972
      %v1037 = vsel %vm1005, %v1002, %v971
      %v1038 = vrot.slane %v939, 1
      %v1039 = vrot.slane %v940, 1
      %v1040 = vrot.slane %v941, 1
      %v1041 = vrot.slane %v942, 1
      %v1042 = vrot.slane %v943, 1
      %v1043 = vrot.slane %v944, 1
      %v1044 = vrot.slane %v945, 1
      %v1045 = vrot.slane %v946, 1
      %v1046 = vrot.slane %v947, 1
      %v1047 = vrot.slane %v948, 1
      %v1048 = vrot.slane %v949, 1
      %v1049 = vrot.slane %v950, 1
      %v1050 = vrot.slane %v951, 1
      %v1051 = vrot.slane %v952, 1
      %v1052 = vrot.slane %v953, 1
      %v1053 = vrot.slane %v954, 1
      %v1054 = vrot.slane %v955, 1
      %v1055 = vrot.slane %v956, 1
      %v1056 = vrot.slane %v957, 1
      %v1057 = vrot.slane %v958, 1
      %v1058 = vrot.slane %v959, 1
      %v1059 = vrot.slane %v960, 1
      %v1060 = vrot.slane %v961, 1
      %v1061 = vrot.slane %v962, 1
      %v1062 = vrot.slane %v963, 1
      %v1063 = vrot.slane %v964, 1
      %v1064 = vrot.slane %v965, 1
      %v1065 = vrot.slane %v966, 1
      %v1066 = vrot.slane %v967, 1
      %v1067 = vrot.slane %v968, 1
      %v1068 = vrot.slane %v969, 1
      %v1069 = vrot.slane %v970, 1
      %vm1070 = vcmp.lt.s32.totalorder %v1004, 7
      %v1071 = vsel %vm1070, %v1068, %v1069
      %v1072 = vsel %vm1070, %v1067, %v1068
      %v1073 = vsel %vm1070, %v1066, %v1067
      %v1074 = vsel %vm1070, %v1065, %v1066
      %v1075 = vsel %vm1070, %v1064, %v1065
      %v1076 = vsel %vm1070, %v1063, %v1064
      %v1077 = vsel %vm1070, %v1062, %v1063
      %v1078 = vsel %vm1070, %v1061, %v1062
      %v1079 = vsel %vm1070, %v1060, %v1061
      %v1080 = vsel %vm1070, %v1059, %v1060
      %v1081 = vsel %vm1070, %v1058, %v1059
      %v1082 = vsel %vm1070, %v1057, %v1058
      %v1083 = vsel %vm1070, %v1056, %v1057
      %v1084 = vsel %vm1070, %v1055, %v1056
      %v1085 = vsel %vm1070, %v1054, %v1055
      %v1086 = vsel %vm1070, %v1053, %v1054
      %v1087 = vsel %vm1070, %v1052, %v1053
      %v1088 = vsel %vm1070, %v1051, %v1052
      %v1089 = vsel %vm1070, %v1050, %v1051
      %v1090 = vsel %vm1070, %v1049, %v1050
      %v1091 = vsel %vm1070, %v1048, %v1049
      %v1092 = vsel %vm1070, %v1047, %v1048
      %v1093 = vsel %vm1070, %v1046, %v1047
      %v1094 = vsel %vm1070, %v1045, %v1046
      %v1095 = vsel %vm1070, %v1044, %v1045
      %v1096 = vsel %vm1070, %v1043, %v1044
      %v1097 = vsel %vm1070, %v1042, %v1043
      %v1098 = vsel %vm1070, %v1041, %v1042
      %v1099 = vsel %vm1070, %v1040, %v1041
      %v1100 = vsel %vm1070, %v1039, %v1040
      %v1101 = vsel %vm1070, %v1038, %v1039
      %v1102 = vsel %vm1070, %v1069, %v1038
      %1135 = vrot.lane.b32.xlu0 %v969, 32
      %v1136 = vpop.permute.xlu0 %1135
      %1137 = vrot.lane.b32.xlu0 %v970, 32
      %v1138 = vpop.permute.xlu0 %1137
      %1139 = vrot.lane.b32.xlu0 %v939, 32
      %v1140 = vpop.permute.xlu0 %1139
      %1141 = vrot.lane.b32.xlu0 %v940, 32
      %v1142 = vpop.permute.xlu0 %1141
      %1143 = vrot.lane.b32.xlu0 %v941, 32
      %v1144 = vpop.permute.xlu0 %1143
      %1145 = vrot.lane.b32.xlu0 %v942, 32
      %v1146 = vpop.permute.xlu0 %1145
      %1147 = vrot.lane.b32.xlu0 %v943, 32
      %v1148 = vpop.permute.xlu0 %1147
      %1149 = vrot.lane.b32.xlu0 %v944, 32
      %v1150 = vpop.permute.xlu0 %1149
      %1151 = vrot.lane.b32.xlu0 %v945, 32
      %v1152 = vpop.permute.xlu0 %1151
      %1153 = vrot.lane.b32.xlu0 %v946, 32
      %v1154 = vpop.permute.xlu0 %1153
      %1155 = vrot.lane.b32.xlu0 %v947, 32
      %v1156 = vpop.permute.xlu0 %1155
      %1157 = vrot.lane.b32.xlu0 %v948, 32
      %v1158 = vpop.permute.xlu0 %1157
      %1159 = vrot.lane.b32.xlu0 %v949, 32
      %v1160 = vpop.permute.xlu0 %1159
      %1161 = vrot.lane.b32.xlu0 %v950, 32
      %v1162 = vpop.permute.xlu0 %1161
      %1163 = vrot.lane.b32.xlu0 %v951, 32
      %v1164 = vpop.permute.xlu0 %1163
      %1165 = vrot.lane.b32.xlu0 %v952, 32
      %v1166 = vpop.permute.xlu0 %1165
      %1167 = vrot.lane.b32.xlu0 %v953, 32
      %v1168 = vpop.permute.xlu0 %1167
      %1169 = vrot.lane.b32.xlu0 %v954, 32
      %v1170 = vpop.permute.xlu0 %1169
      %1171 = vrot.lane.b32.xlu0 %v955, 32
      %v1172 = vpop.permute.xlu0 %1171
      %1173 = vrot.lane.b32.xlu0 %v956, 32
      %v1174 = vpop.permute.xlu0 %1173
      %1175 = vrot.lane.b32.xlu0 %v957, 32
      %v1176 = vpop.permute.xlu0 %1175
      %1177 = vrot.lane.b32.xlu0 %v958, 32
      %v1178 = vpop.permute.xlu0 %1177
      %1179 = vrot.lane.b32.xlu0 %v959, 32
      %v1180 = vpop.permute.xlu0 %1179
      %1181 = vrot.lane.b32.xlu0 %v960, 32
      %v1182 = vpop.permute.xlu0 %1181
      %1183 = vrot.lane.b32.xlu0 %v961, 32
      %v1184 = vpop.permute.xlu0 %1183
      %1185 = vrot.lane.b32.xlu0 %v962, 32
      %v1186 = vpop.permute.xlu0 %1185
      %1187 = vrot.lane.b32.xlu0 %v963, 32
      %v1188 = vpop.permute.xlu0 %1187
      %1189 = vrot.lane.b32.xlu0 %v964, 32
      %v1190 = vpop.permute.xlu0 %1189
      %1191 = vrot.lane.b32.xlu0 %v965, 32
      %v1192 = vpop.permute.xlu0 %1191
      %1193 = vrot.lane.b32.xlu0 %v966, 32
      %v1194 = vpop.permute.xlu0 %1193
      %1195 = vrot.lane.b32.xlu0 %v967, 32
      %v1196 = vpop.permute.xlu0 %1195
      %1197 = vrot.lane.b32.xlu0 %v968, 32
      %v1198 = vpop.permute.xlu0 %1197
      %1263 = vrot.lane.b32.xlu0 %v1071, 64
      %v1264 = vpop.permute.xlu0 %1263
      %1265 = vrot.lane.b32.xlu0 %v1102, 64
      %v1266 = vpop.permute.xlu0 %1265
      %1267 = vrot.lane.b32.xlu0 %v1101, 64
      %v1268 = vpop.permute.xlu0 %1267
      %1269 = vrot.lane.b32.xlu0 %v1100, 64
      %v1270 = vpop.permute.xlu0 %1269
      %1271 = vrot.lane.b32.xlu0 %v1099, 64
      %v1272 = vpop.permute.xlu0 %1271
      %1273 = vrot.lane.b32.xlu0 %v1098, 64
      %v1274 = vpop.permute.xlu0 %1273
      %1275 = vrot.lane.b32.xlu0 %v1097, 64
      %v1276 = vpop.permute.xlu0 %1275
      %1277 = vrot.lane.b32.xlu0 %v1096, 64
      %v1278 = vpop.permute.xlu0 %1277
      %1279 = vrot.lane.b32.xlu0 %v1095, 64
      %v1280 = vpop.permute.xlu0 %1279
      %1281 = vrot.lane.b32.xlu0 %v1094, 64
      %v1282 = vpop.permute.xlu0 %1281
      %1283 = vrot.lane.b32.xlu0 %v1093, 64
      %v1284 = vpop.permute.xlu0 %1283
      %1285 = vrot.lane.b32.xlu0 %v1092, 64
      %v1286 = vpop.permute.xlu0 %1285
      %1287 = vrot.lane.b32.xlu0 %v1091, 64
      %v1288 = vpop.permute.xlu0 %1287
      %1289 = vrot.lane.b32.xlu0 %v1090, 64
      %v1290 = vpop.permute.xlu0 %1289
      %1291 = vrot.lane.b32.xlu0 %v1089, 64
      %v1292 = vpop.permute.xlu0 %1291
      %1293 = vrot.lane.b32.xlu0 %v1088, 64
      %v1294 = vpop.permute.xlu0 %1293
      %1295 = vrot.lane.b32.xlu0 %v1087, 64
      %v1296 = vpop.permute.xlu0 %1295
      %1297 = vrot.lane.b32.xlu0 %v1086, 64
      %v1298 = vpop.permute.xlu0 %1297
      %1299 = vrot.lane.b32.xlu0 %v1085, 64
      %v1300 = vpop.permute.xlu0 %1299
      %1301 = vrot.lane.b32.xlu0 %v1084, 64
      %v1302 = vpop.permute.xlu0 %1301
      %1303 = vrot.lane.b32.xlu0 %v1083, 64
      %v1304 = vpop.permute.xlu0 %1303
      %1305 = vrot.lane.b32.xlu0 %v1082, 64
      %v1306 = vpop.permute.xlu0 %1305
      %1307 = vrot.lane.b32.xlu0 %v1081, 64
      %v1308 = vpop.permute.xlu0 %1307
      %1309 = vrot.lane.b32.xlu0 %v1080, 64
      %v1310 = vpop.permute.xlu0 %1309
      %1311 = vrot.lane.b32.xlu0 %v1079, 64
      %v1312 = vpop.permute.xlu0 %1311
      %1313 = vrot.lane.b32.xlu0 %v1078, 64
      %v1314 = vpop.permute.xlu0 %1313
      %1315 = vrot.lane.b32.xlu0 %v1077, 64
      %v1316 = vpop.permute.xlu0 %1315
      %1317 = vrot.lane.b32.xlu0 %v1076, 64
      %v1318 = vpop.permute.xlu0 %1317
      %1319 = vrot.lane.b32.xlu0 %v1075, 64
      %v1320 = vpop.permute.xlu0 %1319
      %1321 = vrot.lane.b32.xlu0 %v1074, 64
      %v1322 = vpop.permute.xlu0 %1321
      %1323 = vrot.lane.b32.xlu0 %v1073, 64
      %v1324 = vpop.permute.xlu0 %1323
      %1325 = vrot.lane.b32.xlu0 %v1072, 64
      %v1326 = vpop.permute.xlu0 %1325
      %1391 = vrot.lane.b32.xlu0 %v1037, 96
      %v1392 = vpop.permute.xlu0 %1391
      %1393 = vrot.lane.b32.xlu0 %v1036, 96
      %v1394 = vpop.permute.xlu0 %1393
      %1395 = vrot.lane.b32.xlu0 %v1035, 96
      %v1396 = vpop.permute.xlu0 %1395
      %1397 = vrot.lane.b32.xlu0 %v1034, 96
      %v1398 = vpop.permute.xlu0 %1397
      %1399 = vrot.lane.b32.xlu0 %v1033, 96
      %v1400 = vpop.permute.xlu0 %1399
      %1401 = vrot.lane.b32.xlu0 %v1032, 96
      %v1402 = vpop.permute.xlu0 %1401
      %1403 = vrot.lane.b32.xlu0 %v1031, 96
      %v1404 = vpop.permute.xlu0 %1403
      %1405 = vrot.lane.b32.xlu0 %v1030, 96
      %v1406 = vpop.permute.xlu0 %1405
      %1407 = vrot.lane.b32.xlu0 %v1029, 96
      %v1408 = vpop.permute.xlu0 %1407
      %1409 = vrot.lane.b32.xlu0 %v1028, 96
      %v1410 = vpop.permute.xlu0 %1409
      %1411 = vrot.lane.b32.xlu0 %v1027, 96
      %v1412 = vpop.permute.xlu0 %1411
      %1413 = vrot.lane.b32.xlu0 %v1026, 96
      %v1414 = vpop.permute.xlu0 %1413
      %1415 = vrot.lane.b32.xlu0 %v1025, 96
      %v1416 = vpop.permute.xlu0 %1415
      %1417 = vrot.lane.b32.xlu0 %v1024, 96
      %v1418 = vpop.permute.xlu0 %1417
      %1419 = vrot.lane.b32.xlu0 %v1023, 96
      %v1420 = vpop.permute.xlu0 %1419
      %1421 = vrot.lane.b32.xlu0 %v1022, 96
      %v1422 = vpop.permute.xlu0 %1421
      %1423 = vrot.lane.b32.xlu0 %v1021, 96
      %v1424 = vpop.permute.xlu0 %1423
      %1425 = vrot.lane.b32.xlu0 %v1020, 96
      %v1426 = vpop.permute.xlu0 %1425
      %1427 = vrot.lane.b32.xlu0 %v1019, 96
      %v1428 = vpop.permute.xlu0 %1427
      %1429 = vrot.lane.b32.xlu0 %v1018, 96
      %v1430 = vpop.permute.xlu0 %1429
      %1431 = vrot.lane.b32.xlu0 %v1017, 96
      %v1432 = vpop.permute.xlu0 %1431
      %1433 = vrot.lane.b32.xlu0 %v1016, 96
      %v1434 = vpop.permute.xlu0 %1433
      %1435 = vrot.lane.b32.xlu0 %v1015, 96
      %v1436 = vpop.permute.xlu0 %1435
      %1437 = vrot.lane.b32.xlu0 %v1014, 96
      %v1438 = vpop.permute.xlu0 %1437
      %1439 = vrot.lane.b32.xlu0 %v1013, 96
      %v1440 = vpop.permute.xlu0 %1439
      %1441 = vrot.lane.b32.xlu0 %v1012, 96
      %v1442 = vpop.permute.xlu0 %1441
      %1443 = vrot.lane.b32.xlu0 %v1011, 96
      %v1444 = vpop.permute.xlu0 %1443
      %1445 = vrot.lane.b32.xlu0 %v1010, 96
      %v1446 = vpop.permute.xlu0 %1445
      %1447 = vrot.lane.b32.xlu0 %v1009, 96
      %v1448 = vpop.permute.xlu0 %1447
      %1449 = vrot.lane.b32.xlu0 %v1008, 96
      %v1450 = vpop.permute.xlu0 %1449
      %1451 = vrot.lane.b32.xlu0 %v1007, 96
      %v1452 = vpop.permute.xlu0 %1451
      %1453 = vrot.lane.b32.xlu0 %v1006, 96
      %v1454 = vpop.permute.xlu0 %1453
      %1487 = vrot.lane.b32.xlu0 %v1101, 32
      %v1488 = vpop.permute.xlu0 %1487
      %1489 = vrot.lane.b32.xlu0 %v1100, 32
      %v1490 = vpop.permute.xlu0 %1489
      %1491 = vrot.lane.b32.xlu0 %v1099, 32
      %v1492 = vpop.permute.xlu0 %1491
      %1493 = vrot.lane.b32.xlu0 %v1098, 32
      %v1494 = vpop.permute.xlu0 %1493
      %1495 = vrot.lane.b32.xlu0 %v1097, 32
      %v1496 = vpop.permute.xlu0 %1495
      %1497 = vrot.lane.b32.xlu0 %v1096, 32
      %v1498 = vpop.permute.xlu0 %1497
      %1499 = vrot.lane.b32.xlu0 %v1095, 32
      %v1500 = vpop.permute.xlu0 %1499
      %1501 = vrot.lane.b32.xlu0 %v1094, 32
      %v1502 = vpop.permute.xlu0 %1501
      %1503 = vrot.lane.b32.xlu0 %v1093, 32
      %v1504 = vpop.permute.xlu0 %1503
      %1505 = vrot.lane.b32.xlu0 %v1092, 32
      %v1506 = vpop.permute.xlu0 %1505
      %1507 = vrot.lane.b32.xlu0 %v1091, 32
      %v1508 = vpop.permute.xlu0 %1507
      %1509 = vrot.lane.b32.xlu0 %v1090, 32
      %v1510 = vpop.permute.xlu0 %1509
      %1511 = vrot.lane.b32.xlu0 %v1089, 32
      %v1512 = vpop.permute.xlu0 %1511
      %1513 = vrot.lane.b32.xlu0 %v1088, 32
      %v1514 = vpop.permute.xlu0 %1513
      %1515 = vrot.lane.b32.xlu0 %v1087, 32
      %v1516 = vpop.permute.xlu0 %1515
      %1517 = vrot.lane.b32.xlu0 %v1086, 32
      %v1518 = vpop.permute.xlu0 %1517
      %1519 = vrot.lane.b32.xlu0 %v1085, 32
      %v1520 = vpop.permute.xlu0 %1519
      %1521 = vrot.lane.b32.xlu0 %v1084, 32
      %v1522 = vpop.permute.xlu0 %1521
      %1523 = vrot.lane.b32.xlu0 %v1083, 32
      %v1524 = vpop.permute.xlu0 %1523
      %1525 = vrot.lane.b32.xlu0 %v1082, 32
      %v1526 = vpop.permute.xlu0 %1525
      %1527 = vrot.lane.b32.xlu0 %v1081, 32
      %v1528 = vpop.permute.xlu0 %1527
      %1529 = vrot.lane.b32.xlu0 %v1080, 32
      %v1530 = vpop.permute.xlu0 %1529
      %1531 = vrot.lane.b32.xlu0 %v1079, 32
      %v1532 = vpop.permute.xlu0 %1531
      %1533 = vrot.lane.b32.xlu0 %v1078, 32
      %v1534 = vpop.permute.xlu0 %1533
      %1535 = vrot.lane.b32.xlu0 %v1077, 32
      %v1536 = vpop.permute.xlu0 %1535
      %1537 = vrot.lane.b32.xlu0 %v1076, 32
      %v1538 = vpop.permute.xlu0 %1537
      %1539 = vrot.lane.b32.xlu0 %v1075, 32
      %v1540 = vpop.permute.xlu0 %1539
      %1541 = vrot.lane.b32.xlu0 %v1074, 32
      %v1542 = vpop.permute.xlu0 %1541
      %1543 = vrot.lane.b32.xlu0 %v1073, 32
      %v1544 = vpop.permute.xlu0 %1543
      %1545 = vrot.lane.b32.xlu0 %v1072, 32
      %v1546 = vpop.permute.xlu0 %1545
      %1547 = vrot.lane.b32.xlu0 %v1071, 32
      %v1548 = vpop.permute.xlu0 %1547
      %1549 = vrot.lane.b32.xlu0 %v1102, 32
      %v1550 = vpop.permute.xlu0 %1549
      %1583 = vrot.lane.b32.xlu0 %v1035, 64
      %v1584 = vpop.permute.xlu0 %1583
      %1585 = vrot.lane.b32.xlu0 %v1034, 64
      %v1586 = vpop.permute.xlu0 %1585
      %1587 = vrot.lane.b32.xlu0 %v1033, 64
      %v1588 = vpop.permute.xlu0 %1587
      %1589 = vrot.lane.b32.xlu0 %v1032, 64
      %v1590 = vpop.permute.xlu0 %1589
      %1591 = vrot.lane.b32.xlu0 %v1031, 64
      %v1592 = vpop.permute.xlu0 %1591
      %1593 = vrot.lane.b32.xlu0 %v1030, 64
      %v1594 = vpop.permute.xlu0 %1593
      %1595 = vrot.lane.b32.xlu0 %v1029, 64
      %v1596 = vpop.permute.xlu0 %1595
      %1597 = vrot.lane.b32.xlu0 %v1028, 64
      %v1598 = vpop.permute.xlu0 %1597
      %1599 = vrot.lane.b32.xlu0 %v1027, 64
      %v1600 = vpop.permute.xlu0 %1599
      %1601 = vrot.lane.b32.xlu0 %v1026, 64
      %v1602 = vpop.permute.xlu0 %1601
      %1603 = vrot.lane.b32.xlu0 %v1025, 64
      %v1604 = vpop.permute.xlu0 %1603
      %1605 = vrot.lane.b32.xlu0 %v1024, 64
      %v1606 = vpop.permute.xlu0 %1605
      %1607 = vrot.lane.b32.xlu0 %v1023, 64
      %v1608 = vpop.permute.xlu0 %1607
      %1609 = vrot.lane.b32.xlu0 %v1022, 64
      %v1610 = vpop.permute.xlu0 %1609
      %1611 = vrot.lane.b32.xlu0 %v1021, 64
      %v1612 = vpop.permute.xlu0 %1611
      %1613 = vrot.lane.b32.xlu0 %v1020, 64
      %v1614 = vpop.permute.xlu0 %1613
      %1615 = vrot.lane.b32.xlu0 %v1019, 64
      %v1616 = vpop.permute.xlu0 %1615
      %1617 = vrot.lane.b32.xlu0 %v1018, 64
      %v1618 = vpop.permute.xlu0 %1617
      %1619 = vrot.lane.b32.xlu0 %v1017, 64
      %v1620 = vpop.permute.xlu0 %1619
      %1621 = vrot.lane.b32.xlu0 %v1016, 64
      %v1622 = vpop.permute.xlu0 %1621
      %1623 = vrot.lane.b32.xlu0 %v1015, 64
      %v1624 = vpop.permute.xlu0 %1623
      %1625 = vrot.lane.b32.xlu0 %v1014, 64
      %v1626 = vpop.permute.xlu0 %1625
      %1627 = vrot.lane.b32.xlu0 %v1013, 64
      %v1628 = vpop.permute.xlu0 %1627
      %1629 = vrot.lane.b32.xlu0 %v1012, 64
      %v1630 = vpop.permute.xlu0 %1629
      %1631 = vrot.lane.b32.xlu0 %v1011, 64
      %v1632 = vpop.permute.xlu0 %1631
      %1633 = vrot.lane.b32.xlu0 %v1010, 64
      %v1634 = vpop.permute.xlu0 %1633
      %1635 = vrot.lane.b32.xlu0 %v1009, 64
      %v1636 = vpop.permute.xlu0 %1635
      %1637 = vrot.lane.b32.xlu0 %v1008, 64
      %v1638 = vpop.permute.xlu0 %1637
      %1639 = vrot.lane.b32.xlu0 %v1007, 64
      %v1640 = vpop.permute.xlu0 %1639
      %1641 = vrot.lane.b32.xlu0 %v1006, 64
      %v1642 = vpop.permute.xlu0 %1641
      %1643 = vrot.lane.b32.xlu0 %v1037, 64
      %v1644 = vpop.permute.xlu0 %1643
      %1645 = vrot.lane.b32.xlu0 %v1036, 64
      %v1646 = vpop.permute.xlu0 %1645
      %1679 = vrot.lane.b32.xlu0 %v941, 96
      %v1680 = vpop.permute.xlu0 %1679
      %1681 = vrot.lane.b32.xlu0 %v942, 96
      %v1682 = vpop.permute.xlu0 %1681
      %1683 = vrot.lane.b32.xlu0 %v943, 96
      %v1684 = vpop.permute.xlu0 %1683
      %1685 = vrot.lane.b32.xlu0 %v944, 96
      %v1686 = vpop.permute.xlu0 %1685
      %1687 = vrot.lane.b32.xlu0 %v945, 96
      %v1688 = vpop.permute.xlu0 %1687
      %1689 = vrot.lane.b32.xlu0 %v946, 96
      %v1690 = vpop.permute.xlu0 %1689
      %1691 = vrot.lane.b32.xlu0 %v947, 96
      %v1692 = vpop.permute.xlu0 %1691
      %1693 = vrot.lane.b32.xlu0 %v948, 96
      %v1694 = vpop.permute.xlu0 %1693
      %1695 = vrot.lane.b32.xlu0 %v949, 96
      %v1696 = vpop.permute.xlu0 %1695
      %1697 = vrot.lane.b32.xlu0 %v950, 96
      %v1698 = vpop.permute.xlu0 %1697
      %1699 = vrot.lane.b32.xlu0 %v951, 96
      %v1700 = vpop.permute.xlu0 %1699
      %1701 = vrot.lane.b32.xlu0 %v952, 96
      %v1702 = vpop.permute.xlu0 %1701
      %1703 = vrot.lane.b32.xlu0 %v953, 96
      %v1704 = vpop.permute.xlu0 %1703
      %1705 = vrot.lane.b32.xlu0 %v954, 96
      %v1706 = vpop.permute.xlu0 %1705
      %1707 = vrot.lane.b32.xlu0 %v955, 96
      %v1708 = vpop.permute.xlu0 %1707
      %1709 = vrot.lane.b32.xlu0 %v956, 96
      %v1710 = vpop.permute.xlu0 %1709
      %1711 = vrot.lane.b32.xlu0 %v957, 96
      %v1712 = vpop.permute.xlu0 %1711
      %1713 = vrot.lane.b32.xlu0 %v958, 96
      %v1714 = vpop.permute.xlu0 %1713
      %1715 = vrot.lane.b32.xlu0 %v959, 96
      %v1716 = vpop.permute.xlu0 %1715
      %1717 = vrot.lane.b32.xlu0 %v960, 96
      %v1718 = vpop.permute.xlu0 %1717
      %1719 = vrot.lane.b32.xlu0 %v961, 96
      %v1720 = vpop.permute.xlu0 %1719
      %1721 = vrot.lane.b32.xlu0 %v962, 96
      %v1722 = vpop.permute.xlu0 %1721
      %1723 = vrot.lane.b32.xlu0 %v963, 96
      %v1724 = vpop.permute.xlu0 %1723
      %1725 = vrot.lane.b32.xlu0 %v964, 96
      %v1726 = vpop.permute.xlu0 %1725
      %1727 = vrot.lane.b32.xlu0 %v965, 96
      %v1728 = vpop.permute.xlu0 %1727
      %1729 = vrot.lane.b32.xlu0 %v966, 96
      %v1730 = vpop.permute.xlu0 %1729
      %1731 = vrot.lane.b32.xlu0 %v967, 96
      %v1732 = vpop.permute.xlu0 %1731
      %1733 = vrot.lane.b32.xlu0 %v968, 96
      %v1734 = vpop.permute.xlu0 %1733
      %1735 = vrot.lane.b32.xlu0 %v969, 96
      %v1736 = vpop.permute.xlu0 %1735
      %1737 = vrot.lane.b32.xlu0 %v970, 96
      %v1738 = vpop.permute.xlu0 %1737
      %1739 = vrot.lane.b32.xlu0 %v939, 96
      %v1740 = vpop.permute.xlu0 %1739
      %1741 = vrot.lane.b32.xlu0 %v940, 96
      %v1742 = vpop.permute.xlu0 %1741
      %vm1775 = vcmask 261120
      %v1776 = vsel %vm1775, %v1007, %v1136
      %v1777 = vsel %vm1775, %v1006, %v1138
      %v1778 = vsel %vm1775, %v1037, %v1140
      %v1779 = vsel %vm1775, %v1036, %v1142
      %v1780 = vsel %vm1775, %v1035, %v1144
      %v1781 = vsel %vm1775, %v1034, %v1146
      %v1782 = vsel %vm1775, %v1033, %v1148
      %v1783 = vsel %vm1775, %v1032, %v1150
      %v1784 = vsel %vm1775, %v1031, %v1152
      %v1785 = vsel %vm1775, %v1030, %v1154
      %v1786 = vsel %vm1775, %v1029, %v1156
      %v1787 = vsel %vm1775, %v1028, %v1158
      %v1788 = vsel %vm1775, %v1027, %v1160
      %v1789 = vsel %vm1775, %v1026, %v1162
      %v1790 = vsel %vm1775, %v1025, %v1164
      %v1791 = vsel %vm1775, %v1024, %v1166
      %v1792 = vsel %vm1775, %v1023, %v1168
      %v1793 = vsel %vm1775, %v1022, %v1170
      %v1794 = vsel %vm1775, %v1021, %v1172
      %v1795 = vsel %vm1775, %v1020, %v1174
      %v1796 = vsel %vm1775, %v1019, %v1176
      %v1797 = vsel %vm1775, %v1018, %v1178
      %v1798 = vsel %vm1775, %v1017, %v1180
      %v1799 = vsel %vm1775, %v1016, %v1182
      %v1800 = vsel %vm1775, %v1015, %v1184
      %v1801 = vsel %vm1775, %v1014, %v1186
      %v1802 = vsel %vm1775, %v1013, %v1188
      %v1803 = vsel %vm1775, %v1012, %v1190
      %v1804 = vsel %vm1775, %v1011, %v1192
      %v1805 = vsel %vm1775, %v1010, %v1194
      %v1806 = vsel %vm1775, %v1009, %v1196
      %v1807 = vsel %vm1775, %v1008, %v1198
      %vm1808 = vcmask 523264
      %v1809 = vsel %vm1808, %v1776, %v1264
      %v1810 = vsel %vm1808, %v1777, %v1266
      %v1811 = vsel %vm1808, %v1778, %v1268
      %v1812 = vsel %vm1808, %v1779, %v1270
      %v1813 = vsel %vm1808, %v1780, %v1272
      %v1814 = vsel %vm1808, %v1781, %v1274
      %v1815 = vsel %vm1808, %v1782, %v1276
      %v1816 = vsel %vm1808, %v1783, %v1278
      %v1817 = vsel %vm1808, %v1784, %v1280
      %v1818 = vsel %vm1808, %v1785, %v1282
      %v1819 = vsel %vm1808, %v1786, %v1284
      %v1820 = vsel %vm1808, %v1787, %v1286
      %v1821 = vsel %vm1808, %v1788, %v1288
      %v1822 = vsel %vm1808, %v1789, %v1290
      %v1823 = vsel %vm1808, %v1790, %v1292
      %v1824 = vsel %vm1808, %v1791, %v1294
      %v1825 = vsel %vm1808, %v1792, %v1296
      %v1826 = vsel %vm1808, %v1793, %v1298
      %v1827 = vsel %vm1808, %v1794, %v1300
      %v1828 = vsel %vm1808, %v1795, %v1302
      %v1829 = vsel %vm1808, %v1796, %v1304
      %v1830 = vsel %vm1808, %v1797, %v1306
      %v1831 = vsel %vm1808, %v1798, %v1308
      %v1832 = vsel %vm1808, %v1799, %v1310
      %v1833 = vsel %vm1808, %v1800, %v1312
      %v1834 = vsel %vm1808, %v1801, %v1314
      %v1835 = vsel %vm1808, %v1802, %v1316
      %v1836 = vsel %vm1808, %v1803, %v1318
      %v1837 = vsel %vm1808, %v1804, %v1320
      %v1838 = vsel %vm1808, %v1805, %v1322
      %v1839 = vsel %vm1808, %v1806, %v1324
      %v1840 = vsel %vm1808, %v1807, %v1326
      %vm1841 = vcmask 785408
      %v1842 = vsel %vm1841, %v1809, %v1392
      %v1843 = vsel %vm1841, %v1810, %v1394
      %v1844 = vsel %vm1841, %v1811, %v1396
      %v1845 = vsel %vm1841, %v1812, %v1398
      %v1846 = vsel %vm1841, %v1813, %v1400
      %v1847 = vsel %vm1841, %v1814, %v1402
      %v1848 = vsel %vm1841, %v1815, %v1404
      %v1849 = vsel %vm1841, %v1816, %v1406
      %v1850 = vsel %vm1841, %v1817, %v1408
      %v1851 = vsel %vm1841, %v1818, %v1410
      %v1852 = vsel %vm1841, %v1819, %v1412
      %v1853 = vsel %vm1841, %v1820, %v1414
      %v1854 = vsel %vm1841, %v1821, %v1416
      %v1855 = vsel %vm1841, %v1822, %v1418
      %v1856 = vsel %vm1841, %v1823, %v1420
      %v1857 = vsel %vm1841, %v1824, %v1422
      %v1858 = vsel %vm1841, %v1825, %v1424
      %v1859 = vsel %vm1841, %v1826, %v1426
      %v1860 = vsel %vm1841, %v1827, %v1428
      %v1861 = vsel %vm1841, %v1828, %v1430
      %v1862 = vsel %vm1841, %v1829, %v1432
      %v1863 = vsel %vm1841, %v1830, %v1434
      %v1864 = vsel %vm1841, %v1831, %v1436
      %v1865 = vsel %vm1841, %v1832, %v1438
      %v1866 = vsel %vm1841, %v1833, %v1440
      %v1867 = vsel %vm1841, %v1834, %v1442
      %v1868 = vsel %vm1841, %v1835, %v1444
      %v1869 = vsel %vm1841, %v1836, %v1446
      %v1870 = vsel %vm1841, %v1837, %v1448
      %v1871 = vsel %vm1841, %v1838, %v1450
      %v1872 = vsel %vm1841, %v1839, %v1452
      %v1873 = vsel %vm1841, %v1840, %v1454
      %v1874 = vsel %vm1775, %v939, %v1488
      %v1875 = vsel %vm1775, %v940, %v1490
      %v1876 = vsel %vm1775, %v941, %v1492
      %v1877 = vsel %vm1775, %v942, %v1494
      %v1878 = vsel %vm1775, %v943, %v1496
      %v1879 = vsel %vm1775, %v944, %v1498
      %v1880 = vsel %vm1775, %v945, %v1500
      %v1881 = vsel %vm1775, %v946, %v1502
      %v1882 = vsel %vm1775, %v947, %v1504
      %v1883 = vsel %vm1775, %v948, %v1506
      %v1884 = vsel %vm1775, %v949, %v1508
      %v1885 = vsel %vm1775, %v950, %v1510
      %v1886 = vsel %vm1775, %v951, %v1512
      %v1887 = vsel %vm1775, %v952, %v1514
      %v1888 = vsel %vm1775, %v953, %v1516
      %v1889 = vsel %vm1775, %v954, %v1518
      %v1890 = vsel %vm1775, %v955, %v1520
      %v1891 = vsel %vm1775, %v956, %v1522
      %v1892 = vsel %vm1775, %v957, %v1524
      %v1893 = vsel %vm1775, %v958, %v1526
      %v1894 = vsel %vm1775, %v959, %v1528
      %v1895 = vsel %vm1775, %v960, %v1530
      %v1896 = vsel %vm1775, %v961, %v1532
      %v1897 = vsel %vm1775, %v962, %v1534
      %v1898 = vsel %vm1775, %v963, %v1536
      %v1899 = vsel %vm1775, %v964, %v1538
      %v1900 = vsel %vm1775, %v965, %v1540
      %v1901 = vsel %vm1775, %v966, %v1542
      %v1902 = vsel %vm1775, %v967, %v1544
      %v1903 = vsel %vm1775, %v968, %v1546
      %v1904 = vsel %vm1775, %v969, %v1548
      %v1905 = vsel %vm1775, %v970, %v1550
      %v1906 = vsel %vm1808, %v1874, %v1584
      %v1907 = vsel %vm1808, %v1875, %v1586
      %v1908 = vsel %vm1808, %v1876, %v1588
      %v1909 = vsel %vm1808, %v1877, %v1590
      %v1910 = vsel %vm1808, %v1878, %v1592
      %v1911 = vsel %vm1808, %v1879, %v1594
      %v1912 = vsel %vm1808, %v1880, %v1596
      %v1913 = vsel %vm1808, %v1881, %v1598
      %v1914 = vsel %vm1808, %v1882, %v1600
      %v1915 = vsel %vm1808, %v1883, %v1602
      %v1916 = vsel %vm1808, %v1884, %v1604
      %v1917 = vsel %vm1808, %v1885, %v1606
      %v1918 = vsel %vm1808, %v1886, %v1608
      %v1919 = vsel %vm1808, %v1887, %v1610
      %v1920 = vsel %vm1808, %v1888, %v1612
      %v1921 = vsel %vm1808, %v1889, %v1614
      %v1922 = vsel %vm1808, %v1890, %v1616
      %v1923 = vsel %vm1808, %v1891, %v1618
      %v1924 = vsel %vm1808, %v1892, %v1620
      %v1925 = vsel %vm1808, %v1893, %v1622
      %v1926 = vsel %vm1808, %v1894, %v1624
      %v1927 = vsel %vm1808, %v1895, %v1626
      %v1928 = vsel %vm1808, %v1896, %v1628
      %v1929 = vsel %vm1808, %v1897, %v1630
      %v1930 = vsel %vm1808, %v1898, %v1632
      %v1931 = vsel %vm1808, %v1899, %v1634
      %v1932 = vsel %vm1808, %v1900, %v1636
      %v1933 = vsel %vm1808, %v1901, %v1638
      %v1934 = vsel %vm1808, %v1902, %v1640
      %v1935 = vsel %vm1808, %v1903, %v1642
      %v1936 = vsel %vm1808, %v1904, %v1644
      %v1937 = vsel %vm1808, %v1905, %v1646
      %v1938 = vsel %vm1841, %v1906, %v1680
      %v1939 = vsel %vm1841, %v1907, %v1682
      %v1940 = vsel %vm1841, %v1908, %v1684
      %v1941 = vsel %vm1841, %v1909, %v1686
      %v1942 = vsel %vm1841, %v1910, %v1688
      %v1943 = vsel %vm1841, %v1911, %v1690
      %v1944 = vsel %vm1841, %v1912, %v1692
      %v1945 = vsel %vm1841, %v1913, %v1694
      %v1946 = vsel %vm1841, %v1914, %v1696
      %v1947 = vsel %vm1841, %v1915, %v1698
      %v1948 = vsel %vm1841, %v1916, %v1700
      %v1949 = vsel %vm1841, %v1917, %v1702
      %v1950 = vsel %vm1841, %v1918, %v1704
      %v1951 = vsel %vm1841, %v1919, %v1706
      %v1952 = vsel %vm1841, %v1920, %v1708
      %v1953 = vsel %vm1841, %v1921, %v1710
      %v1954 = vsel %vm1841, %v1922, %v1712
      %v1955 = vsel %vm1841, %v1923, %v1714
      %v1956 = vsel %vm1841, %v1924, %v1716
      %v1957 = vsel %vm1841, %v1925, %v1718
      %v1958 = vsel %vm1841, %v1926, %v1720
      %v1959 = vsel %vm1841, %v1927, %v1722
      %v1960 = vsel %vm1841, %v1928, %v1724
      %v1961 = vsel %vm1841, %v1929, %v1726
      %v1962 = vsel %vm1841, %v1930, %v1728
      %v1963 = vsel %vm1841, %v1931, %v1730
      %v1964 = vsel %vm1841, %v1932, %v1732
      %v1965 = vsel %vm1841, %v1933, %v1734
      %v1966 = vsel %vm1841, %v1934, %v1736
      %v1967 = vsel %vm1841, %v1935, %v1738
      %v1968 = vsel %vm1841, %v1936, %v1740
      %v1969 = vsel %vm1841, %v1937, %v1742
      %v1970 = vld [vmem:[%s1] sm:$0xff]
      %v1971 = vld [vmem:[%s1 + $0x8] sm:$0xff]
      %v1972 = vld [vmem:[%s1 + $0x10] sm:$0xff]
      %v1973 = vld [vmem:[%s1 + $0x18] sm:$0xff]
      %v1974 = vld [vmem:[%s1 + $0x20] sm:$0xff]
      %v1975 = vld [vmem:[%s1 + $0x28] sm:$0xff]
      %v1976 = vld [vmem:[%s1 + $0x30] sm:$0xff]
      %v1977 = vld [vmem:[%s1 + $0x38] sm:$0xff]
      %v1978 = vld [vmem:[%s1 + $0x40] sm:$0xff]
      %v1979 = vld [vmem:[%s1 + $0x48] sm:$0xff]
      %v1980 = vld [vmem:[%s1 + $0x50] sm:$0xff]
      %v1981 = vld [vmem:[%s1 + $0x58] sm:$0xff]
      %v1982 = vld [vmem:[%s1 + $0x60] sm:$0xff]
      %v1983 = vld [vmem:[%s1 + $0x68] sm:$0xff]
      %v1984 = vld [vmem:[%s1 + $0x70] sm:$0xff]
      %v1985 = vld [vmem:[%s1 + $0x78] sm:$0xff]
      %v1986 = vld [vmem:[%s1 + $0x80] sm:$0xff]
      %v1987 = vld [vmem:[%s1 + $0x88] sm:$0xff]
      %v1988 = vld [vmem:[%s1 + $0x90] sm:$0xff]
      %v1989 = vld [vmem:[%s1 + $0x98] sm:$0xff]
      %v1990 = vld [vmem:[%s1 + $0xa0] sm:$0xff]
      %v1991 = vld [vmem:[%s1 + $0xa8] sm:$0xff]
      %v1992 = vld [vmem:[%s1 + $0xb0] sm:$0xff]
      %v1993 = vld [vmem:[%s1 + $0xb8] sm:$0xff]
      %v1994 = vld [vmem:[%s1 + $0xc0] sm:$0xff]
      %v1995 = vld [vmem:[%s1 + $0xc8] sm:$0xff]
      %v1996 = vld [vmem:[%s1 + $0xd0] sm:$0xff]
      %v1997 = vld [vmem:[%s1 + $0xd8] sm:$0xff]
      %v1998 = vld [vmem:[%s1 + $0xe0] sm:$0xff]
      %v1999 = vld [vmem:[%s1 + $0xe8] sm:$0xff]
      %v2000 = vld [vmem:[%s1 + $0xf0] sm:$0xff]
      %v2001 = vld [vmem:[%s1 + $0xf8] sm:$0xff]
      %v2002 = vld [vmem:[%s1 + $0x100] sm:$0xff]
      %v2003 = vld [vmem:[%s1 + $0x108] sm:$0xff]
      %v2004 = vld [vmem:[%s1 + $0x110] sm:$0xff]
      %v2005 = vld [vmem:[%s1 + $0x118] sm:$0xff]
      %v2006 = vld [vmem:[%s1 + $0x120] sm:$0xff]
      %v2007 = vld [vmem:[%s1 + $0x128] sm:$0xff]
      %v2008 = vld [vmem:[%s1 + $0x130] sm:$0xff]
      %v2009 = vld [vmem:[%s1 + $0x138] sm:$0xff]
      %v2010 = vld [vmem:[%s1 + $0x140] sm:$0xff]
      %v2011 = vld [vmem:[%s1 + $0x148] sm:$0xff]
      %v2012 = vld [vmem:[%s1 + $0x150] sm:$0xff]
      %v2013 = vld [vmem:[%s1 + $0x158] sm:$0xff]
      %v2014 = vld [vmem:[%s1 + $0x160] sm:$0xff]
      %v2015 = vld [vmem:[%s1 + $0x168] sm:$0xff]
      %v2016 = vld [vmem:[%s1 + $0x170] sm:$0xff]
      %v2017 = vld [vmem:[%s1 + $0x178] sm:$0xff]
      %v2018 = vld [vmem:[%s1 + $0x180] sm:$0xff]
      %v2019 = vld [vmem:[%s1 + $0x188] sm:$0xff]
      %v2020 = vld [vmem:[%s1 + $0x190] sm:$0xff]
      %v2021 = vld [vmem:[%s1 + $0x198] sm:$0xff]
      %v2022 = vld [vmem:[%s1 + $0x1a0] sm:$0xff]
      %v2023 = vld [vmem:[%s1 + $0x1a8] sm:$0xff]
      %v2024 = vld [vmem:[%s1 + $0x1b0] sm:$0xff]
      %v2025 = vld [vmem:[%s1 + $0x1b8] sm:$0xff]
      %v2026 = vld [vmem:[%s1 + $0x1c0] sm:$0xff]
      %v2027 = vld [vmem:[%s1 + $0x1c8] sm:$0xff]
      %v2028 = vld [vmem:[%s1 + $0x1d0] sm:$0xff]
      %v2029 = vld [vmem:[%s1 + $0x1d8] sm:$0xff]
      %v2030 = vld [vmem:[%s1 + $0x1e0] sm:$0xff]
      %v2031 = vld [vmem:[%s1 + $0x1e8] sm:$0xff]
      %v2032 = vld [vmem:[%s1 + $0x1f0] sm:$0xff]
      %v2033 = vld [vmem:[%s1 + $0x1f8] sm:$0xff]
      %v2034 = vld [vmem:[%s1 + $0x200] sm:$0xff]
      %v2035 = vld [vmem:[%s1 + $0x208] sm:$0xff]
      %v2036 = vld [vmem:[%s1 + $0x210] sm:$0xff]
      %v2037 = vld [vmem:[%s1 + $0x218] sm:$0xff]
      %v2038 = vld [vmem:[%s1 + $0x220] sm:$0xff]
      %v2039 = vld [vmem:[%s1 + $0x228] sm:$0xff]
      %v2040 = vld [vmem:[%s1 + $0x230] sm:$0xff]
      %v2041 = vld [vmem:[%s1 + $0x238] sm:$0xff]
      %v2042 = vld [vmem:[%s1 + $0x240] sm:$0xff]
      %v2043 = vld [vmem:[%s1 + $0x248] sm:$0xff]
      %v2044 = vld [vmem:[%s1 + $0x250] sm:$0xff]
      %v2045 = vld [vmem:[%s1 + $0x258] sm:$0xff]
      %v2046 = vld [vmem:[%s1 + $0x260] sm:$0xff]
      %v2047 = vld [vmem:[%s1 + $0x268] sm:$0xff]
      %v2048 = vld [vmem:[%s1 + $0x270] sm:$0xff]
      %v2049 = vld [vmem:[%s1 + $0x278] sm:$0xff]
      %v2050 = vld [vmem:[%s1 + $0x280] sm:$0xff]
      %v2051 = vld [vmem:[%s1 + $0x288] sm:$0xff]
      %v2052 = vld [vmem:[%s1 + $0x290] sm:$0xff]
      %v2053 = vld [vmem:[%s1 + $0x298] sm:$0xff]
      %v2054 = vld [vmem:[%s1 + $0x2a0] sm:$0xff]
      %v2055 = vld [vmem:[%s1 + $0x2a8] sm:$0xff]
      %v2056 = vld [vmem:[%s1 + $0x2b0] sm:$0xff]
      %v2057 = vld [vmem:[%s1 + $0x2b8] sm:$0xff]
      %v2058 = vld [vmem:[%s1 + $0x2c0] sm:$0xff]
      %v2059 = vld [vmem:[%s1 + $0x2c8] sm:$0xff]
      %v2060 = vld [vmem:[%s1 + $0x2d0] sm:$0xff]
      %v2061 = vld [vmem:[%s1 + $0x2d8] sm:$0xff]
      %v2062 = vld [vmem:[%s1 + $0x2e0] sm:$0xff]
      %v2063 = vld [vmem:[%s1 + $0x2e8] sm:$0xff]
      %v2064 = vld [vmem:[%s1 + $0x2f0] sm:$0xff]
      %v2065 = vld [vmem:[%s1 + $0x2f8] sm:$0xff]
      %v2066 = vmul.f32 %v1842, %v1970
      %v2067 = vmul.f32 %v1938, %v1971
      %v2068 = vmul.f32 %v1099, %v1972
      %v2069 = vmul.f32 %v1843, %v1973
      %v2070 = vmul.f32 %v1939, %v1974
      %v2071 = vmul.f32 %v1098, %v1975
      %v2072 = vmul.f32 %v1844, %v1976
      %v2073 = vmul.f32 %v1940, %v1977
      %v2074 = vmul.f32 %v1097, %v1978
      %v2075 = vmul.f32 %v1845, %v1979
      %v2076 = vmul.f32 %v1941, %v1980
      %v2077 = vmul.f32 %v1096, %v1981
      %v2078 = vmul.f32 %v1846, %v1982
      %v2079 = vmul.f32 %v1942, %v1983
      %v2080 = vmul.f32 %v1095, %v1984
      %v2081 = vmul.f32 %v1847, %v1985
      %v2082 = vmul.f32 %v1943, %v1986
      %v2083 = vmul.f32 %v1094, %v1987
      %v2084 = vmul.f32 %v1848, %v1988
      %v2085 = vmul.f32 %v1944, %v1989
      %v2086 = vmul.f32 %v1093, %v1990
      %v2087 = vmul.f32 %v1849, %v1991
      %v2088 = vmul.f32 %v1945, %v1992
      %v2089 = vmul.f32 %v1092, %v1993
      %v2090 = vmul.f32 %v1850, %v1994
      %v2091 = vmul.f32 %v1946, %v1995
      %v2092 = vmul.f32 %v1091, %v1996
      %v2093 = vmul.f32 %v1851, %v1997
      %v2094 = vmul.f32 %v1947, %v1998
      %v2095 = vmul.f32 %v1090, %v1999
      %v2096 = vmul.f32 %v1852, %v2000
      %v2097 = vmul.f32 %v1948, %v2001
      %v2098 = vmul.f32 %v1089, %v2002
      %v2099 = vmul.f32 %v1853, %v2003
      %v2100 = vmul.f32 %v1949, %v2004
      %v2101 = vmul.f32 %v1088, %v2005
      %v2102 = vmul.f32 %v1854, %v2006
      %v2103 = vmul.f32 %v1950, %v2007
      %v2104 = vmul.f32 %v1087, %v2008
      %v2105 = vmul.f32 %v1855, %v2009
      %v2106 = vmul.f32 %v1951, %v2010
      %v2107 = vmul.f32 %v1086, %v2011
      %v2108 = vmul.f32 %v1856, %v2012
      %v2109 = vmul.f32 %v1952, %v2013
      %v2110 = vmul.f32 %v1085, %v2014
      %v2111 = vmul.f32 %v1857, %v2015
      %v2112 = vmul.f32 %v1953, %v2016
      %v2113 = vmul.f32 %v1084, %v2017
      %v2114 = vmul.f32 %v1858, %v2018
      %v2115 = vmul.f32 %v1954, %v2019
      %v2116 = vmul.f32 %v1083, %v2020
      %v2117 = vmul.f32 %v1859, %v2021
      %v2118 = vmul.f32 %v1955, %v2022
      %v2119 = vmul.f32 %v1082, %v2023
      %v2120 = vmul.f32 %v1860, %v2024
      %v2121 = vmul.f32 %v1956, %v2025
      %v2122 = vmul.f32 %v1081, %v2026
      %v2123 = vmul.f32 %v1861, %v2027
      %v2124 = vmul.f32 %v1957, %v2028
      %v2125 = vmul.f32 %v1080, %v2029
      %v2126 = vmul.f32 %v1862, %v2030
      %v2127 = vmul.f32 %v1958, %v2031
      %v2128 = vmul.f32 %v1079, %v2032
      %v2129 = vmul.f32 %v1863, %v2033
      %v2130 = vmul.f32 %v1959, %v2034
      %v2131 = vmul.f32 %v1078, %v2035
      %v2132 = vmul.f32 %v1864, %v2036
      %v2133 = vmul.f32 %v1960, %v2037
      %v2134 = vmul.f32 %v1077, %v2038
      %v2135 = vmul.f32 %v1865, %v2039
      %v2136 = vmul.f32 %v1961, %v2040
      %v2137 = vmul.f32 %v1076, %v2041
      %v2138 = vmul.f32 %v1866, %v2042
      %v2139 = vmul.f32 %v1962, %v2043
      %v2140 = vmul.f32 %v1075, %v2044
      %v2141 = vmul.f32 %v1867, %v2045
      %v2142 = vmul.f32 %v1963, %v2046
      %v2143 = vmul.f32 %v1074, %v2047
      %v2144 = vmul.f32 %v1868, %v2048
      %v2145 = vmul.f32 %v1964, %v2049
      %v2146 = vmul.f32 %v1073, %v2050
      %v2147 = vmul.f32 %v1869, %v2051
      %v2148 = vmul.f32 %v1965, %v2052
      %v2149 = vmul.f32 %v1072, %v2053
      %v2150 = vmul.f32 %v1870, %v2054
      %v2151 = vmul.f32 %v1966, %v2055
      %v2152 = vmul.f32 %v1071, %v2056
      %v2153 = vmul.f32 %v1871, %v2057
      %v2154 = vmul.f32 %v1967, %v2058
      %v2155 = vmul.f32 %v1102, %v2059
      %v2156 = vmul.f32 %v1872, %v2060
      %v2157 = vmul.f32 %v1968, %v2061
      %v2158 = vmul.f32 %v1101, %v2062
      %v2159 = vmul.f32 %v1873, %v2063
      %v2160 = vmul.f32 %v1969, %v2064
      %v2161 = vmul.f32 %v1100, %v2065
      %v2162 = vpack.c.bf16 %v2069, %v2066
      %v2163 = vpack.c.bf16 %v2070, %v2067
      %v2164 = vpack.c.bf16 %v2071, %v2068
      %v2165 = vpack.c.bf16 %v2075, %v2072
      %v2166 = vpack.c.bf16 %v2076, %v2073
      %v2167 = vpack.c.bf16 %v2077, %v2074
      %v2168 = vpack.c.bf16 %v2081, %v2078
      %v2169 = vpack.c.bf16 %v2082, %v2079
      %v2170 = vpack.c.bf16 %v2083, %v2080
      %v2171 = vpack.c.bf16 %v2087, %v2084
      %v2172 = vpack.c.bf16 %v2088, %v2085
      %v2173 = vpack.c.bf16 %v2089, %v2086
      %v2174 = vpack.c.bf16 %v2093, %v2090
      %v2175 = vpack.c.bf16 %v2094, %v2091
      %v2176 = vpack.c.bf16 %v2095, %v2092
      %v2177 = vpack.c.bf16 %v2099, %v2096
      %v2178 = vpack.c.bf16 %v2100, %v2097
      %v2179 = vpack.c.bf16 %v2101, %v2098
      %v2180 = vpack.c.bf16 %v2105, %v2102
      %v2181 = vpack.c.bf16 %v2106, %v2103
      %v2182 = vpack.c.bf16 %v2107, %v2104
      %v2183 = vpack.c.bf16 %v2111, %v2108
      %v2184 = vpack.c.bf16 %v2112, %v2109
      %v2185 = vpack.c.bf16 %v2113, %v2110
      %v2186 = vpack.c.bf16 %v2117, %v2114
      %v2187 = vpack.c.bf16 %v2118, %v2115
      %v2188 = vpack.c.bf16 %v2119, %v2116
      %v2189 = vpack.c.bf16 %v2123, %v2120
      %v2190 = vpack.c.bf16 %v2124, %v2121
      %v2191 = vpack.c.bf16 %v2125, %v2122
      %v2192 = vpack.c.bf16 %v2129, %v2126
      %v2193 = vpack.c.bf16 %v2130, %v2127
      %v2194 = vpack.c.bf16 %v2131, %v2128
      %v2195 = vpack.c.bf16 %v2135, %v2132
      %v2196 = vpack.c.bf16 %v2136, %v2133
      %v2197 = vpack.c.bf16 %v2137, %v2134
      %v2198 = vpack.c.bf16 %v2141, %v2138
      %v2199 = vpack.c.bf16 %v2142, %v2139
      %v2200 = vpack.c.bf16 %v2143, %v2140
      %v2201 = vpack.c.bf16 %v2147, %v2144
      %v2202 = vpack.c.bf16 %v2148, %v2145
      %v2203 = vpack.c.bf16 %v2149, %v2146
      %v2204 = vpack.c.bf16 %v2153, %v2150
      %v2205 = vpack.c.bf16 %v2154, %v2151
      %v2206 = vpack.c.bf16 %v2155, %v2152
      %v2207 = vpack.c.bf16 %v2159, %v2156
      %v2208 = vpack.c.bf16 %v2160, %v2157
      %v2209 = vpack.c.bf16 %v2161, %v2158
      %v2210 = vld [vmem:[%s4] sm:$0xf]
      %v2211 = vld [vmem:[%s4 + $0x4] sm:$0xf]
      %v2212 = vld [vmem:[%s4 + $0x8] sm:$0xf]
      %v2213 = vld [vmem:[%s4 + $0xc] sm:$0xf]
      %v2214 = vld [vmem:[%s4 + $0x10] sm:$0xf]
      %v2215 = vld [vmem:[%s4 + $0x14] sm:$0xf]
      %v2216 = vld [vmem:[%s4 + $0x18] sm:$0xf]
      %v2217 = vld [vmem:[%s4 + $0x1c] sm:$0xf]
      %v2218 = vld [vmem:[%s4 + $0x20] sm:$0xf]
      %v2219 = vld [vmem:[%s4 + $0x24] sm:$0xf]
      %v2220 = vld [vmem:[%s4 + $0x28] sm:$0xf]
      %v2221 = vld [vmem:[%s4 + $0x2c] sm:$0xf]
      %v2222 = vld [vmem:[%s4 + $0x30] sm:$0xf]
      %v2223 = vld [vmem:[%s4 + $0x34] sm:$0xf]
      %v2224 = vld [vmem:[%s4 + $0x38] sm:$0xf]
      %v2225 = vld [vmem:[%s4 + $0x3c] sm:$0xf]
      %v2226 = vld [vmem:[%s4 + $0x40] sm:$0xf]
      %v2227 = vld [vmem:[%s4 + $0x44] sm:$0xf]
      %v2228 = vld [vmem:[%s4 + $0x48] sm:$0xf]
      %v2229 = vld [vmem:[%s4 + $0x4c] sm:$0xf]
      %v2230 = vld [vmem:[%s4 + $0x50] sm:$0xf]
      %v2231 = vld [vmem:[%s4 + $0x54] sm:$0xf]
      %v2232 = vld [vmem:[%s4 + $0x58] sm:$0xf]
      %v2233 = vld [vmem:[%s4 + $0x5c] sm:$0xf]
      %v2234 = vld [vmem:[%s4 + $0x60] sm:$0xf]
      %v2235 = vld [vmem:[%s4 + $0x64] sm:$0xf]
      %v2236 = vld [vmem:[%s4 + $0x68] sm:$0xf]
      %v2237 = vld [vmem:[%s4 + $0x6c] sm:$0xf]
      %v2238 = vld [vmem:[%s4 + $0x70] sm:$0xf]
      %v2239 = vld [vmem:[%s4 + $0x74] sm:$0xf]
      %v2240 = vld [vmem:[%s4 + $0x78] sm:$0xf]
      %v2241 = vld [vmem:[%s4 + $0x7c] sm:$0xf]
      %v2242 = vld [vmem:[%s4 + $0x80] sm:$0xf]
      %v2243 = vld [vmem:[%s4 + $0x84] sm:$0xf]
      %v2244 = vld [vmem:[%s4 + $0x88] sm:$0xf]
      %v2245 = vld [vmem:[%s4 + $0x8c] sm:$0xf]
      %v2246 = vld [vmem:[%s5] sm:$0x1]
      %v2248 = vlaneseq
      %v2249 = vshrl.u32 %v2248, 7
      %v2250 = vsub.s32 0, %v2249
      %v2251 = vrot.slane %v2246, %v2250
      %v2289 = vunpack.c.l.b16 %v2210
      %v2290 = vunpack.c.l.b16 %v2211
      %v2291 = vunpack.c.l.b16 %v2212
      %v2292 = vunpack.c.l.b16 %v2213
      %v2293 = vunpack.c.l.b16 %v2214
      %v2294 = vunpack.c.l.b16 %v2215
      %v2295 = vunpack.c.l.b16 %v2216
      %v2296 = vunpack.c.l.b16 %v2217
      %v2297 = vunpack.c.l.b16 %v2218
      %v2298 = vunpack.c.l.b16 %v2219
      %v2299 = vunpack.c.l.b16 %v2220
      %v2300 = vunpack.c.l.b16 %v2221
      %v2301 = vunpack.c.l.b16 %v2222
      %v2302 = vunpack.c.l.b16 %v2223
      %v2303 = vunpack.c.l.b16 %v2224
      %v2304 = vunpack.c.l.b16 %v2225
      %v2305 = vunpack.c.l.b16 %v2226
      %v2306 = vunpack.c.l.b16 %v2227
      %v2307 = vunpack.c.l.b16 %v2228
      %v2308 = vunpack.c.l.b16 %v2229
      %v2309 = vunpack.c.l.b16 %v2230
      %v2310 = vunpack.c.l.b16 %v2231
      %v2311 = vunpack.c.l.b16 %v2232
      %v2312 = vunpack.c.l.b16 %v2233
      %v2313 = vunpack.c.l.b16 %v2234
      %v2314 = vunpack.c.l.b16 %v2235
      %v2315 = vunpack.c.l.b16 %v2236
      %v2316 = vunpack.c.l.b16 %v2237
      %v2317 = vunpack.c.l.b16 %v2238
      %v2318 = vunpack.c.l.b16 %v2239
      %v2319 = vunpack.c.l.b16 %v2240
      %v2320 = vunpack.c.l.b16 %v2241
      %v2321 = vunpack.c.l.b16 %v2242
      %v2322 = vunpack.c.l.b16 %v2243
      %v2323 = vunpack.c.l.b16 %v2244
      %v2324 = vunpack.c.l.b16 %v2245
      %v2325 = vpack.c.b16 %v2290, %v2289
      %v2326 = vpack.c.b16 %v2292, %v2291
      %v2327 = vpack.c.b16 %v2294, %v2293
      %v2328 = vpack.c.b16 %v2296, %v2295
      %v2329 = vpack.c.b16 %v2298, %v2297
      %v2330 = vpack.c.b16 %v2300, %v2299
      %v2331 = vpack.c.b16 %v2302, %v2301
      %v2332 = vpack.c.b16 %v2304, %v2303
      %v2333 = vpack.c.b16 %v2306, %v2305
      %v2334 = vpack.c.b16 %v2308, %v2307
      %v2335 = vpack.c.b16 %v2310, %v2309
      %v2336 = vpack.c.b16 %v2312, %v2311
      %v2337 = vpack.c.b16 %v2314, %v2313
      %v2338 = vpack.c.b16 %v2316, %v2315
      %v2339 = vpack.c.b16 %v2318, %v2317
      %v2340 = vpack.c.b16 %v2320, %v2319
      %v2341 = vpack.c.b16 %v2322, %v2321
      %v2342 = vpack.c.b16 %v2324, %v2323
      %v2362 = vsel %vm1775, %v2164, 0
      %v2365 = vsel %vm1775, %v2167, 0
      %v2368 = vsel %vm1775, %v2170, 0
      %v2371 = vsel %vm1775, %v2173, 0
      %v2374 = vsel %vm1775, %v2176, 0
      %v2377 = vsel %vm1775, %v2179, 0
      %v2380 = vsel %vm1775, %v2182, 0
      %v2383 = vsel %vm1775, %v2185, 0
      %v2386 = vsel %vm1775, %v2188, 0
      %v2389 = vsel %vm1775, %v2191, 0
      %v2392 = vsel %vm1775, %v2194, 0
      %v2395 = vsel %vm1775, %v2197, 0
      %v2398 = vsel %vm1775, %v2200, 0
      %v2401 = vsel %vm1775, %v2203, 0
      %v2404 = vsel %vm1775, %v2206, 0
      %v2407 = vsel %vm1775, %v2209, 0
      %2409 = vmatprep.subr.bf16.mxu0 0
      %2410 = vmatpush1.bf16.msra.mxu0 %v2325
      %2411 = vmatprep.subr.bf16.mxu0 0
      %2412 = vmatpush1.bf16.msra.mxu0 %v2326
      %2413 = vmatprep.subr.bf16.mxu0 0
      %2414 = vmatpush1.bf16.msra.mxu0 %v2327
      %2415 = vmatprep.subr.bf16.mxu0 0
      %2416 = vmatpush1.bf16.msra.mxu0 %v2328
      %2417 = vmatprep.subr.bf16.mxu0 0
      %2418 = vmatpush1.bf16.msra.mxu0 %v2329
      %2419 = vmatprep.subr.bf16.mxu0 0
      %2420 = vmatpush1.bf16.msra.mxu0 %v2330
      %2421 = vmatprep.subr.bf16.mxu0 0
      %2422 = vmatpush1.bf16.msra.mxu0 %v2331
      %2423 = vmatprep.subr.bf16.mxu0 0
      %2424 = vmatpush1.bf16.msra.mxu0 %v2332
      %2425 = vmatprep.subr.bf16.mxu0 0
      %2426 = vmatpush1.bf16.msra.mxu0 %v2333
      %2427 = vmatprep.subr.bf16.mxu0 0
      %2428 = vmatpush1.bf16.msra.mxu0 %v2334
      %2429 = vmatprep.subr.bf16.mxu0 0
      %2430 = vmatpush1.bf16.msra.mxu0 %v2335
      %2431 = vmatprep.subr.bf16.mxu0 0
      %2432 = vmatpush1.bf16.msra.mxu0 %v2336
      %2433 = vmatprep.subr.bf16.mxu0 0
      %2434 = vmatpush1.bf16.msra.mxu0 %v2337
      %2435 = vmatprep.subr.bf16.mxu0 0
      %2436 = vmatpush1.bf16.msra.mxu0 %v2338
      %2437 = vmatprep.subr.bf16.mxu0 0
      %2438 = vmatpush1.bf16.msra.mxu0 %v2339
      %2439 = vmatprep.subr.bf16.mxu0 0
      %2440 = vmatpush1.bf16.msra.mxu0 %v2340
      %2441 = vmatprep.mubr.bf16.mxu0 %v2163
      %2442 = vmatmul.mubr.bf16.gmra.mrb[0].mxu0 %v2162
      %v2443 = vpop.f32.mrb[0].mxu0
      %v2444 = vadd.f32 %v2251, %v2443
      %v2445 = vpop.f32.mrb[0].mxu0
      %v2446 = vpop.f32.mrb[0].mxu0
      %v2447 = vadd.f32 %v2251, %v2446
      %v2448 = vpop.f32.mrb[0].mxu0
      %2449 = vmatprep.mubr.bf16.mxu0 %v2166
      %2450 = vmatmul.mubr.bf16.gmra.mrb[0].mxu0 %v2165
      %v2451 = vpop.f32.mrb[0].mxu0
      %v2452 = vadd.f32 %v2251, %v2451
      %v2453 = vpop.f32.mrb[0].mxu0
      %v2454 = vpop.f32.mrb[0].mxu0
      %v2455 = vadd.f32 %v2251, %v2454
      %v2456 = vpop.f32.mrb[0].mxu0
      %2457 = vmatprep.mubr.bf16.mxu0 %v2169
      %2458 = vmatmul.mubr.bf16.gmra.mrb[0].mxu0 %v2168
      %v2459 = vpop.f32.mrb[0].mxu0
      %v2460 = vadd.f32 %v2251, %v2459
      %v2461 = vpop.f32.mrb[0].mxu0
      %v2462 = vpop.f32.mrb[0].mxu0
      %v2463 = vadd.f32 %v2251, %v2462
      %v2464 = vpop.f32.mrb[0].mxu0
      %2465 = vmatprep.mubr.bf16.mxu0 %v2172
      %2466 = vmatmul.mubr.bf16.gmra.mrb[0].mxu0 %v2171
      %v2467 = vpop.f32.mrb[0].mxu0
      %v2468 = vadd.f32 %v2251, %v2467
      %v2469 = vpop.f32.mrb[0].mxu0
      %v2470 = vpop.f32.mrb[0].mxu0
      %v2471 = vadd.f32 %v2251, %v2470
      %v2472 = vpop.f32.mrb[0].mxu0
      %2473 = vmatprep.mubr.bf16.mxu0 %v2175
      %2474 = vmatmul.mubr.bf16.gmra.mrb[0].mxu0 %v2174
      %v2475 = vpop.f32.mrb[0].mxu0
      %v2476 = vadd.f32 %v2251, %v2475
      %v2477 = vpop.f32.mrb[0].mxu0
      %v2478 = vpop.f32.mrb[0].mxu0
      %v2479 = vadd.f32 %v2251, %v2478
      %v2480 = vpop.f32.mrb[0].mxu0
      %2481 = vmatprep.mubr.bf16.mxu0 %v2178
      %2482 = vmatmul.mubr.bf16.gmra.mrb[0].mxu0 %v2177
      %v2483 = vpop.f32.mrb[0].mxu0
      %v2484 = vadd.f32 %v2251, %v2483
      %v2485 = vpop.f32.mrb[0].mxu0
      %v2486 = vpop.f32.mrb[0].mxu0
      %v2487 = vadd.f32 %v2251, %v2486
      %v2488 = vpop.f32.mrb[0].mxu0
      %2489 = vmatprep.mubr.bf16.mxu0 %v2181
      %2490 = vmatmul.mubr.bf16.gmra.mrb[0].mxu0 %v2180
      %v2491 = vpop.f32.mrb[0].mxu0
      %v2492 = vadd.f32 %v2251, %v2491
      %v2493 = vpop.f32.mrb[0].mxu0
      %v2494 = vpop.f32.mrb[0].mxu0
      %v2495 = vadd.f32 %v2251, %v2494
      %v2496 = vpop.f32.mrb[0].mxu0
      %2497 = vmatprep.mubr.bf16.mxu0 %v2184
      %2498 = vmatmul.mubr.bf16.gmra.mrb[0].mxu0 %v2183
      %v2499 = vpop.f32.mrb[0].mxu0
      %v2500 = vadd.f32 %v2251, %v2499
      %v2501 = vpop.f32.mrb[0].mxu0
      %v2502 = vpop.f32.mrb[0].mxu0
      %v2503 = vadd.f32 %v2251, %v2502
      %v2504 = vpop.f32.mrb[0].mxu0
      %2505 = vmatprep.mubr.bf16.mxu0 %v2187
      %2506 = vmatmul.mubr.bf16.gmra.mrb[0].mxu0 %v2186
      %v2507 = vpop.f32.mrb[0].mxu0
      %v2508 = vadd.f32 %v2251, %v2507
      %v2509 = vpop.f32.mrb[0].mxu0
      %v2510 = vpop.f32.mrb[0].mxu0
      %v2511 = vadd.f32 %v2251, %v2510
      %v2512 = vpop.f32.mrb[0].mxu0
      %2513 = vmatprep.mubr.bf16.mxu0 %v2190
      %2514 = vmatmul.mubr.bf16.gmra.mrb[0].mxu0 %v2189
      %v2515 = vpop.f32.mrb[0].mxu0
      %v2516 = vadd.f32 %v2251, %v2515
      %v2517 = vpop.f32.mrb[0].mxu0
      %v2518 = vpop.f32.mrb[0].mxu0
      %v2519 = vadd.f32 %v2251, %v2518
      %v2520 = vpop.f32.mrb[0].mxu0
      %2521 = vmatprep.mubr.bf16.mxu0 %v2193
      %2522 = vmatmul.mubr.bf16.gmra.mrb[0].mxu0 %v2192
      %v2523 = vpop.f32.mrb[0].mxu0
      %v2524 = vadd.f32 %v2251, %v2523
      %v2525 = vpop.f32.mrb[0].mxu0
      %v2526 = vpop.f32.mrb[0].mxu0
      %v2527 = vadd.f32 %v2251, %v2526
      %v2528 = vpop.f32.mrb[0].mxu0
      %2529 = vmatprep.mubr.bf16.mxu0 %v2196
      %2530 = vmatmul.mubr.bf16.gmra.mrb[0].mxu0 %v2195
      %v2531 = vpop.f32.mrb[0].mxu0
      %v2532 = vadd.f32 %v2251, %v2531
      %v2533 = vpop.f32.mrb[0].mxu0
      %v2534 = vpop.f32.mrb[0].mxu0
      %v2535 = vadd.f32 %v2251, %v2534
      %v2536 = vpop.f32.mrb[0].mxu0
      %2537 = vmatprep.mubr.bf16.mxu0 %v2199
      %2538 = vmatmul.mubr.bf16.gmra.mrb[0].mxu0 %v2198
      %v2539 = vpop.f32.mrb[0].mxu0
      %v2540 = vadd.f32 %v2251, %v2539
      %v2541 = vpop.f32.mrb[0].mxu0
      %v2542 = vpop.f32.mrb[0].mxu0
      %v2543 = vadd.f32 %v2251, %v2542
      %v2544 = vpop.f32.mrb[0].mxu0
      %2545 = vmatprep.mubr.bf16.mxu0 %v2202
      %2546 = vmatmul.mubr.bf16.gmra.mrb[0].mxu0 %v2201
      %v2547 = vpop.f32.mrb[0].mxu0
      %v2548 = vadd.f32 %v2251, %v2547
      %v2549 = vpop.f32.mrb[0].mxu0
      %v2550 = vpop.f32.mrb[0].mxu0
      %v2551 = vadd.f32 %v2251, %v2550
      %v2552 = vpop.f32.mrb[0].mxu0
      %2553 = vmatprep.mubr.bf16.mxu0 %v2205
      %2554 = vmatmul.mubr.bf16.gmra.mrb[0].mxu0 %v2204
      %v2555 = vpop.f32.mrb[0].mxu0
      %v2556 = vadd.f32 %v2251, %v2555
      %v2557 = vpop.f32.mrb[0].mxu0
      %v2558 = vpop.f32.mrb[0].mxu0
      %v2559 = vadd.f32 %v2251, %v2558
      %v2560 = vpop.f32.mrb[0].mxu0
      %2561 = vmatprep.mubr.bf16.mxu0 %v2208
      %2562 = vmatmul.mubr.bf16.gmra.mrb[0].mxu0 %v2207
      %v2563 = vpop.f32.mrb[0].mxu0
      %v2564 = vadd.f32 %v2251, %v2563
      %v2565 = vpop.f32.mrb[0].mxu0
      %v2566 = vpop.f32.mrb[0].mxu0
      %v2567 = vadd.f32 %v2251, %v2566
      %v2568 = vpop.f32.mrb[0].mxu0
      %2569 = vdwg.mxu0
      %2570 = vmatprep.subr.bf16.mxu0 0
      %2571 = vmatpush1.bf16.msra.mxu0 %v2341
      %2572 = vmatprep.subr.bf16.mxu0 0
      %2573 = vmatpush1.bf16.msra.mxu0 %v2342
      %2574 = vmatprep.subr.bf16.mxu0 0
      %2575 = vmatpush1.bf16.msra.mxu0 0
      %2576 = vmatprep.subr.bf16.mxu0 0
      %2577 = vmatpush1.bf16.msra.mxu0 0
      %2578 = vmatprep.subr.bf16.mxu0 0
      %2579 = vmatpush1.bf16.msra.mxu0 0
      %2580 = vmatprep.subr.bf16.mxu0 0
      %2581 = vmatpush1.bf16.msra.mxu0 0
      %2582 = vmatprep.subr.bf16.mxu0 0
      %2583 = vmatpush1.bf16.msra.mxu0 0
      %2584 = vmatprep.subr.bf16.mxu0 0
      %2585 = vmatpush1.bf16.msra.mxu0 0
      %2586 = vmatprep.subr.bf16.mxu0 0
      %2587 = vmatpush1.bf16.msra.mxu0 0
      %2588 = vmatprep.subr.bf16.mxu0 0
      %2589 = vmatpush1.bf16.msra.mxu0 0
      %2590 = vmatprep.subr.bf16.mxu0 0
      %2591 = vmatpush1.bf16.msra.mxu0 0
      %2592 = vmatprep.subr.bf16.mxu0 0
      %2593 = vmatpush1.bf16.msra.mxu0 0
      %2594 = vmatprep.subr.bf16.mxu0 0
      %2595 = vmatpush1.bf16.msra.mxu0 0
      %2596 = vmatprep.subr.bf16.mxu0 0
      %2597 = vmatpush1.bf16.msra.mxu0 0
      %2598 = vmatprep.subr.bf16.mxu0 0
      %2599 = vmatpush1.bf16.msra.mxu0 0
      %2600 = vmatprep.subr.bf16.mxu0 0
      %2601 = vmatpush1.bf16.msra.mxu0 0
      %2602 = vmatprep.mubr.bf16.mxu0 0
      %2603 = vmatmul.mubr.bf16.gmra.mrb[0].mxu0 %v2362
      %v2604 = vpop.f32.mrb[0].mxu0
      %v2605 = vadd.f32 %v2444, %v2604
      %v2606 = vpop.f32.mrb[0].mxu0
      %v2607 = vpop.f32.mrb[0].mxu0
      %v2608 = vadd.f32 %v2447, %v2607
      %v2609 = vpop.f32.mrb[0].mxu0
      %2610 = vmatprep.mubr.bf16.mxu0 0
      %2611 = vmatmul.mubr.bf16.gmra.mrb[0].mxu0 %v2365
      %v2612 = vpop.f32.mrb[0].mxu0
      %v2613 = vadd.f32 %v2452, %v2612
      %v2614 = vpop.f32.mrb[0].mxu0
      %v2615 = vpop.f32.mrb[0].mxu0
      %v2616 = vadd.f32 %v2455, %v2615
      %v2617 = vpop.f32.mrb[0].mxu0
      %2618 = vmatprep.mubr.bf16.mxu0 0
      %2619 = vmatmul.mubr.bf16.gmra.mrb[0].mxu0 %v2368
      %v2620 = vpop.f32.mrb[0].mxu0
      %v2621 = vadd.f32 %v2460, %v2620
      %v2622 = vpop.f32.mrb[0].mxu0
      %v2623 = vpop.f32.mrb[0].mxu0
      %v2624 = vadd.f32 %v2463, %v2623
      %v2625 = vpop.f32.mrb[0].mxu0
      %2626 = vmatprep.mubr.bf16.mxu0 0
      %2627 = vmatmul.mubr.bf16.gmra.mrb[0].mxu0 %v2371
      %v2628 = vpop.f32.mrb[0].mxu0
      %v2629 = vadd.f32 %v2468, %v2628
      %v2630 = vpop.f32.mrb[0].mxu0
      %v2631 = vpop.f32.mrb[0].mxu0
      %v2632 = vadd.f32 %v2471, %v2631
      %v2633 = vpop.f32.mrb[0].mxu0
      %2634 = vmatprep.mubr.bf16.mxu0 0
      %2635 = vmatmul.mubr.bf16.gmra.mrb[0].mxu0 %v2374
      %v2636 = vpop.f32.mrb[0].mxu0
      %v2637 = vadd.f32 %v2476, %v2636
      %v2638 = vpop.f32.mrb[0].mxu0
      %v2639 = vpop.f32.mrb[0].mxu0
      %v2640 = vadd.f32 %v2479, %v2639
      %v2641 = vpop.f32.mrb[0].mxu0
      %2642 = vmatprep.mubr.bf16.mxu0 0
      %2643 = vmatmul.mubr.bf16.gmra.mrb[0].mxu0 %v2377
      %v2644 = vpop.f32.mrb[0].mxu0
      %v2645 = vadd.f32 %v2484, %v2644
      %v2646 = vpop.f32.mrb[0].mxu0
      %v2647 = vpop.f32.mrb[0].mxu0
      %v2648 = vadd.f32 %v2487, %v2647
      %v2649 = vpop.f32.mrb[0].mxu0
      %2650 = vmatprep.mubr.bf16.mxu0 0
      %2651 = vmatmul.mubr.bf16.gmra.mrb[0].mxu0 %v2380
      %v2652 = vpop.f32.mrb[0].mxu0
      %v2653 = vadd.f32 %v2492, %v2652
      %v2654 = vpop.f32.mrb[0].mxu0
      %v2655 = vpop.f32.mrb[0].mxu0
      %v2656 = vadd.f32 %v2495, %v2655
      %v2657 = vpop.f32.mrb[0].mxu0
      %2658 = vmatprep.mubr.bf16.mxu0 0
      %2659 = vmatmul.mubr.bf16.gmra.mrb[0].mxu0 %v2383
      %v2660 = vpop.f32.mrb[0].mxu0
      %v2661 = vadd.f32 %v2500, %v2660
      %v2662 = vpop.f32.mrb[0].mxu0
      %v2663 = vpop.f32.mrb[0].mxu0
      %v2664 = vadd.f32 %v2503, %v2663
      %v2665 = vpop.f32.mrb[0].mxu0
      %2666 = vmatprep.mubr.bf16.mxu0 0
      %2667 = vmatmul.mubr.bf16.gmra.mrb[0].mxu0 %v2386
      %v2668 = vpop.f32.mrb[0].mxu0
      %v2669 = vadd.f32 %v2508, %v2668
      %v2670 = vpop.f32.mrb[0].mxu0
      %v2671 = vpop.f32.mrb[0].mxu0
      %v2672 = vadd.f32 %v2511, %v2671
      %v2673 = vpop.f32.mrb[0].mxu0
      %2674 = vmatprep.mubr.bf16.mxu0 0
      %2675 = vmatmul.mubr.bf16.gmra.mrb[0].mxu0 %v2389
      %v2676 = vpop.f32.mrb[0].mxu0
      %v2677 = vadd.f32 %v2516, %v2676
      %v2678 = vpop.f32.mrb[0].mxu0
      %v2679 = vpop.f32.mrb[0].mxu0
      %v2680 = vadd.f32 %v2519, %v2679
      %v2681 = vpop.f32.mrb[0].mxu0
      %2682 = vmatprep.mubr.bf16.mxu0 0
      %2683 = vmatmul.mubr.bf16.gmra.mrb[0].mxu0 %v2392
      %v2684 = vpop.f32.mrb[0].mxu0
      %v2685 = vadd.f32 %v2524, %v2684
      %v2686 = vpop.f32.mrb[0].mxu0
      %v2687 = vpop.f32.mrb[0].mxu0
      %v2688 = vadd.f32 %v2527, %v2687
      %v2689 = vpop.f32.mrb[0].mxu0
      %2690 = vmatprep.mubr.bf16.mxu0 0
      %2691 = vmatmul.mubr.bf16.gmra.mrb[0].mxu0 %v2395
      %v2692 = vpop.f32.mrb[0].mxu0
      %v2693 = vadd.f32 %v2532, %v2692
      %v2694 = vpop.f32.mrb[0].mxu0
      %v2695 = vpop.f32.mrb[0].mxu0
      %v2696 = vadd.f32 %v2535, %v2695
      %v2697 = vpop.f32.mrb[0].mxu0
      %2698 = vmatprep.mubr.bf16.mxu0 0
      %2699 = vmatmul.mubr.bf16.gmra.mrb[0].mxu0 %v2398
      %v2700 = vpop.f32.mrb[0].mxu0
      %v2701 = vadd.f32 %v2540, %v2700
      %v2702 = vpop.f32.mrb[0].mxu0
      %v2703 = vpop.f32.mrb[0].mxu0
      %v2704 = vadd.f32 %v2543, %v2703
      %v2705 = vpop.f32.mrb[0].mxu0
      %2706 = vmatprep.mubr.bf16.mxu0 0
      %2707 = vmatmul.mubr.bf16.gmra.mrb[0].mxu0 %v2401
      %v2708 = vpop.f32.mrb[0].mxu0
      %v2709 = vadd.f32 %v2548, %v2708
      %v2710 = vpop.f32.mrb[0].mxu0
      %v2711 = vpop.f32.mrb[0].mxu0
      %v2712 = vadd.f32 %v2551, %v2711
      %v2713 = vpop.f32.mrb[0].mxu0
      %2714 = vmatprep.mubr.bf16.mxu0 0
      %2715 = vmatmul.mubr.bf16.gmra.mrb[0].mxu0 %v2404
      %v2716 = vpop.f32.mrb[0].mxu0
      %v2717 = vadd.f32 %v2556, %v2716
      %v2718 = vpop.f32.mrb[0].mxu0
      %v2719 = vpop.f32.mrb[0].mxu0
      %v2720 = vadd.f32 %v2559, %v2719
      %v2721 = vpop.f32.mrb[0].mxu0
      %2722 = vmatprep.mubr.bf16.mxu0 0
      %2723 = vmatmul.mubr.bf16.gmra.mrb[0].mxu0 %v2407
      %v2724 = vpop.f32.mrb[0].mxu0
      %v2725 = vadd.f32 %v2564, %v2724
      %v2726 = vpop.f32.mrb[0].mxu0
      %v2727 = vpop.f32.mrb[0].mxu0
      %v2728 = vadd.f32 %v2567, %v2727
      %v2729 = vpop.f32.mrb[0].mxu0
      %2730 = vdwg.mxu0
      %v2731 = vmax.f32 %v2605, 0.0
      %v2732 = vmax.f32 %v2608, 0.0
      %v2733 = vmax.f32 %v2613, 0.0
      %v2734 = vmax.f32 %v2616, 0.0
      %v2735 = vmax.f32 %v2621, 0.0
      %v2736 = vmax.f32 %v2624, 0.0
      %v2737 = vmax.f32 %v2629, 0.0
      %v2738 = vmax.f32 %v2632, 0.0
      %v2739 = vmax.f32 %v2637, 0.0
      %v2740 = vmax.f32 %v2640, 0.0
      %v2741 = vmax.f32 %v2645, 0.0
      %v2742 = vmax.f32 %v2648, 0.0
      %v2743 = vmax.f32 %v2653, 0.0
      %v2744 = vmax.f32 %v2656, 0.0
      %v2745 = vmax.f32 %v2661, 0.0
      %v2746 = vmax.f32 %v2664, 0.0
      %v2747 = vmax.f32 %v2669, 0.0
      %v2748 = vmax.f32 %v2672, 0.0
      %v2749 = vmax.f32 %v2677, 0.0
      %v2750 = vmax.f32 %v2680, 0.0
      %v2751 = vmax.f32 %v2685, 0.0
      %v2752 = vmax.f32 %v2688, 0.0
      %v2753 = vmax.f32 %v2693, 0.0
      %v2754 = vmax.f32 %v2696, 0.0
      %v2755 = vmax.f32 %v2701, 0.0
      %v2756 = vmax.f32 %v2704, 0.0
      %v2757 = vmax.f32 %v2709, 0.0
      %v2758 = vmax.f32 %v2712, 0.0
      %v2759 = vmax.f32 %v2717, 0.0
      %v2760 = vmax.f32 %v2720, 0.0
      %v2761 = vmax.f32 %v2725, 0.0
      %v2762 = vmax.f32 %v2728, 0.0
      %2763 = vmatprep.subr.mxu0 0.0
      %2764 = vmatpush1.msra.mxu0 %v2731
      %2765 = vmatprep.subr.mxu0 0.0
      %2766 = vmatpush1.msra.mxu0 %v2732
      %2767 = vmatprep.subr.mxu0 0.0
      %2768 = vmatpush1.msra.mxu0 %v2733
      %2769 = vmatprep.subr.mxu0 0.0
      %2770 = vmatpush1.msra.mxu0 %v2734
      %2771 = vmatprep.subr.mxu0 0.0
      %2772 = vmatpush1.msra.mxu0 %v2735
      %2773 = vmatprep.subr.mxu0 0.0
      %2774 = vmatpush1.msra.mxu0 %v2736
      %2775 = vmatprep.subr.mxu0 0.0
      %2776 = vmatpush1.msra.mxu0 %v2737
      %2777 = vmatprep.subr.mxu0 0.0
      %2778 = vmatpush1.msra.mxu0 %v2738
      %2779 = vmatprep.subr.mxu0 0.0
      %2780 = vmatpush1.msra.mxu0 %v2739
      %2781 = vmatprep.subr.mxu0 0.0
      %2782 = vmatpush1.msra.mxu0 %v2740
      %2783 = vmatprep.subr.mxu0 0.0
      %2784 = vmatpush1.msra.mxu0 %v2741
      %2785 = vmatprep.subr.mxu0 0.0
      %2786 = vmatpush1.msra.mxu0 %v2742
      %2787 = vmatprep.subr.mxu0 0.0
      %2788 = vmatpush1.msra.mxu0 %v2743
      %2789 = vmatprep.subr.mxu0 0.0
      %2790 = vmatpush1.msra.mxu0 %v2744
      %2791 = vmatprep.subr.mxu0 0.0
      %2792 = vmatpush1.msra.mxu0 %v2745
      %2793 = vmatprep.subr.mxu0 0.0
      %2794 = vmatpush1.msra.mxu0 %v2746
      %2795 = vmatprep.subr.mxu0 0.0
      %2796 = vmatpush1.msra.mxu0 %v2747
      %2797 = vmatprep.subr.mxu0 0.0
      %2798 = vmatpush1.msra.mxu0 %v2748
      %2799 = vmatprep.subr.mxu0 0.0
      %2800 = vmatpush1.msra.mxu0 %v2749
      %2801 = vmatprep.subr.mxu0 0.0
      %2802 = vmatpush1.msra.mxu0 %v2750
      %2803 = vmatprep.subr.mxu0 0.0
      %2804 = vmatpush1.msra.mxu0 %v2751
      %2805 = vmatprep.subr.mxu0 0.0
      %2806 = vmatpush1.msra.mxu0 %v2752
      %2807 = vmatprep.subr.mxu0 0.0
      %2808 = vmatpush1.msra.mxu0 %v2753
      %2809 = vmatprep.subr.mxu0 0.0
      %2810 = vmatpush1.msra.mxu0 %v2754
      %2811 = vmatprep.subr.mxu0 0.0
      %2812 = vmatpush1.msra.mxu0 %v2755
      %2813 = vmatprep.subr.mxu0 0.0
      %2814 = vmatpush1.msra.mxu0 %v2756
      %2815 = vmatprep.subr.mxu0 0.0
      %2816 = vmatpush1.msra.mxu0 %v2757
      %2817 = vmatprep.subr.mxu0 0.0
      %2818 = vmatpush1.msra.mxu0 %v2758
      %2819 = vmatprep.subr.mxu0 0.0
      %2820 = vmatpush1.msra.mxu0 %v2759
      %2821 = vmatprep.subr.mxu0 0.0
      %2822 = vmatpush1.msra.mxu0 %v2760
      %2823 = vmatprep.subr.mxu0 0.0
      %2824 = vmatpush1.msra.mxu0 %v2761
      %2825 = vmatprep.subr.mxu0 0.0
      %2826 = vmatpush1.msra.mxu0 %v2762
      %2827 = vmatprep.mubr.f32.mxu0 0.00390625
      %2828 = vmatmul.mubr.f32.gmra.mrb[0].mxu0 0.00390625
      %v2829 = vpop.f32.mrb[0].mxu0
      %v2830 = vadd.f32 0.0, %v2829
      %v2831 = vpop.f32.mrb[0].mxu0
      %2832 = vdwg.mxu0
      %v2833 = vld [vmem:[%s6] sm:$0xff]
      %v2834 = vld [vmem:[%s6 + $0x8] sm:$0xff]
      %v2835 = vld [vmem:[%s6 + $0x10] sm:$0xff]
      %v2836 = vld [vmem:[%s6 + $0x18] sm:$0xff]
      %v2837 = vld [vmem:[%s7] sm:$0x1]
      %v2839 = vsel %vm1775, %v2830, 0
      %2841 = vmatprep.subr.mxu0 0.0
      %2842 = vmatpush1.msra.mxu0 %v2833
      %2843 = vmatprep.subr.mxu0 0.0
      %2844 = vmatpush1.msra.mxu0 %v2834
      %2845 = vmatprep.subr.mxu0 0.0
      %2846 = vmatpush1.msra.mxu0 %v2835
      %2847 = vmatprep.subr.mxu0 0.0
      %2848 = vmatpush1.msra.mxu0 %v2836
      %2849 = vmatprep.subr.mxu0 0.0
      %2850 = vmatpush1.msra.mxu0 0.0
      %2851 = vmatprep.subr.mxu0 0.0
      %2852 = vmatpush1.msra.mxu0 0.0
      %2853 = vmatprep.subr.mxu0 0.0
      %2854 = vmatpush1.msra.mxu0 0.0
      %2855 = vmatprep.subr.mxu0 0.0
      %2856 = vmatpush1.msra.mxu0 0.0
      %2857 = vmatprep.subr.mxu0 0.0
      %2858 = vmatpush1.msra.mxu0 0.0
      %2859 = vmatprep.subr.mxu0 0.0
      %2860 = vmatpush1.msra.mxu0 0.0
      %2861 = vmatprep.subr.mxu0 0.0
      %2862 = vmatpush1.msra.mxu0 0.0
      %2863 = vmatprep.subr.mxu0 0.0
      %2864 = vmatpush1.msra.mxu0 0.0
      %2865 = vmatprep.subr.mxu0 0.0
      %2866 = vmatpush1.msra.mxu0 0.0
      %2867 = vmatprep.subr.mxu0 0.0
      %2868 = vmatpush1.msra.mxu0 0.0
      %2869 = vmatprep.subr.mxu0 0.0
      %2870 = vmatpush1.msra.mxu0 0.0
      %2871 = vmatprep.subr.mxu0 0.0
      %2872 = vmatpush1.msra.mxu0 0.0
      %2873 = vmatprep.subr.mxu0 0.0
      %2874 = vmatpush1.msra.mxu0 0.0
      %2875 = vmatprep.subr.mxu0 0.0
      %2876 = vmatpush1.msra.mxu0 0.0
      %2877 = vmatprep.subr.mxu0 0.0
      %2878 = vmatpush1.msra.mxu0 0.0
      %2879 = vmatprep.subr.mxu0 0.0
      %2880 = vmatpush1.msra.mxu0 0.0
      %2881 = vmatprep.subr.mxu0 0.0
      %2882 = vmatpush1.msra.mxu0 0.0
      %2883 = vmatprep.subr.mxu0 0.0
      %2884 = vmatpush1.msra.mxu0 0.0
      %2885 = vmatprep.subr.mxu0 0.0
      %2886 = vmatpush1.msra.mxu0 0.0
      %2887 = vmatprep.subr.mxu0 0.0
      %2888 = vmatpush1.msra.mxu0 0.0
      %2889 = vmatprep.subr.mxu0 0.0
      %2890 = vmatpush1.msra.mxu0 0.0
      %2891 = vmatprep.subr.mxu0 0.0
      %2892 = vmatpush1.msra.mxu0 0.0
      %2893 = vmatprep.subr.mxu0 0.0
      %2894 = vmatpush1.msra.mxu0 0.0
      %2895 = vmatprep.subr.mxu0 0.0
      %2896 = vmatpush1.msra.mxu0 0.0
      %2897 = vmatprep.subr.mxu0 0.0
      %2898 = vmatpush1.msra.mxu0 0.0
      %2899 = vmatprep.subr.mxu0 0.0
      %2900 = vmatpush1.msra.mxu0 0.0
      %2901 = vmatprep.subr.mxu0 0.0
      %2902 = vmatpush1.msra.mxu0 0.0
      %2903 = vmatprep.subr.mxu0 0.0
      %2904 = vmatpush1.msra.mxu0 0.0
      %2905 = vmatprep.mubr.f32.mxu0 0.0
      %2906 = vmatmul.mubr.f32.gmra.mrb[0].mxu0 %v2839
      %v2907 = vpop.f32.mrb[0].mxu0
      %v2908 = vadd.f32 %v2837, %v2907
      %v2909 = vpop.f32.mrb[0].mxu0
      %2910 = vdwg.mxu0
      %v2911 = vmax.f32 %v2908, 0.0
      %v2912 = vld [vmem:[%s8] sm:$0xff]
      %v2913 = vld [vmem:[%s8 + $0x8] sm:$0xff]
      %v2914 = vld [vmem:[%s8 + $0x10] sm:$0xff]
      %v2915 = vld [vmem:[%s8 + $0x18] sm:$0xff]
      %v2916 = vld [vmem:[%s8 + $0x20] sm:$0xff]
      %v2917 = vld [vmem:[%s8 + $0x28] sm:$0xff]
      %v2918 = vld [vmem:[%s8 + $0x30] sm:$0xff]
      %v2919 = vld [vmem:[%s8 + $0x38] sm:$0xff]
      %v2920 = vld [vmem:[%s8 + $0x40] sm:$0xff]
      %v2921 = vld [vmem:[%s8 + $0x48] sm:$0xff]
      %v2922 = vld [vmem:[%s8 + $0x50] sm:$0xff]
      %v2923 = vld [vmem:[%s8 + $0x58] sm:$0xff]
      %v2924 = vld [vmem:[%s8 + $0x60] sm:$0xff]
      %v2925 = vld [vmem:[%s8 + $0x68] sm:$0xff]
      %v2926 = vld [vmem:[%s8 + $0x70] sm:$0xff]
      %v2927 = vld [vmem:[%s8 + $0x78] sm:$0xff]
      %v2928 = vld [vmem:[%s9] sm:$0x3]
      %v2930 = vlaneseq
      %v2931 = vshrl.u32 %v2930, 7
      %v2932 = vsub.s32 0, %v2931
      %v2933 = vrot.slane %v2928, %v2932
      %v2934 = vlaneseq
      %v2935 = vshrl.u32 %v2934, 7
      %v2936 = vsub.s32 1, %v2935
      %v2937 = vrot.slane %v2928, %v2936
      %v2941 = vsel %vm1808, %v2911, 0
      %2943 = vmatprep.subr.mxu0 %v2913
      %2944 = vmatpush1.msra.mxu0 %v2912
      %2945 = vmatprep.subr.mxu0 %v2915
      %2946 = vmatpush1.msra.mxu0 %v2914
      %2947 = vmatprep.subr.mxu0 %v2917
      %2948 = vmatpush1.msra.mxu0 %v2916
      %2949 = vmatprep.subr.mxu0 %v2919
      %2950 = vmatpush1.msra.mxu0 %v2918
      %2951 = vmatprep.subr.mxu0 %v2921
      %2952 = vmatpush1.msra.mxu0 %v2920
      %2953 = vmatprep.subr.mxu0 %v2923
      %2954 = vmatpush1.msra.mxu0 %v2922
      %2955 = vmatprep.subr.mxu0 %v2925
      %2956 = vmatpush1.msra.mxu0 %v2924
      %2957 = vmatprep.subr.mxu0 %v2927
      %2958 = vmatpush1.msra.mxu0 %v2926
      %2959 = vmatprep.subr.mxu0 0.0
      %2960 = vmatpush1.msra.mxu0 0.0
      %2961 = vmatprep.subr.mxu0 0.0
      %2962 = vmatpush1.msra.mxu0 0.0
      %2963 = vmatprep.subr.mxu0 0.0
      %2964 = vmatpush1.msra.mxu0 0.0
      %2965 = vmatprep.subr.mxu0 0.0
      %2966 = vmatpush1.msra.mxu0 0.0
      %2967 = vmatprep.subr.mxu0 0.0
      %2968 = vmatpush1.msra.mxu0 0.0
      %2969 = vmatprep.subr.mxu0 0.0
      %2970 = vmatpush1.msra.mxu0 0.0
      %2971 = vmatprep.subr.mxu0 0.0
      %2972 = vmatpush1.msra.mxu0 0.0
      %2973 = vmatprep.subr.mxu0 0.0
      %2974 = vmatpush1.msra.mxu0 0.0
      %2975 = vmatprep.subr.mxu0 0.0
      %2976 = vmatpush1.msra.mxu0 0.0
      %2977 = vmatprep.subr.mxu0 0.0
      %2978 = vmatpush1.msra.mxu0 0.0
      %2979 = vmatprep.subr.mxu0 0.0
      %2980 = vmatpush1.msra.mxu0 0.0
      %2981 = vmatprep.subr.mxu0 0.0
      %2982 = vmatpush1.msra.mxu0 0.0
      %2983 = vmatprep.subr.mxu0 0.0
      %2984 = vmatpush1.msra.mxu0 0.0
      %2985 = vmatprep.subr.mxu0 0.0
      %2986 = vmatpush1.msra.mxu0 0.0
      %2987 = vmatprep.subr.mxu0 0.0
      %2988 = vmatpush1.msra.mxu0 0.0
      %2989 = vmatprep.subr.mxu0 0.0
      %2990 = vmatpush1.msra.mxu0 0.0
      %2991 = vmatprep.subr.mxu0 0.0
      %2992 = vmatpush1.msra.mxu0 0.0
      %2993 = vmatprep.subr.mxu0 0.0
      %2994 = vmatpush1.msra.mxu0 0.0
      %2995 = vmatprep.subr.mxu0 0.0
      %2996 = vmatpush1.msra.mxu0 0.0
      %2997 = vmatprep.subr.mxu0 0.0
      %2998 = vmatpush1.msra.mxu0 0.0
      %2999 = vmatprep.subr.mxu0 0.0
      %3000 = vmatpush1.msra.mxu0 0.0
      %3001 = vmatprep.subr.mxu0 0.0
      %3002 = vmatpush1.msra.mxu0 0.0
      %3003 = vmatprep.subr.mxu0 0.0
      %3004 = vmatpush1.msra.mxu0 0.0
      %3005 = vmatprep.subr.mxu0 0.0
      %3006 = vmatpush1.msra.mxu0 0.0
      %3007 = vmatprep.mubr.f32.mxu0 0.0
      %3008 = vmatmul.mubr.f32.gmra.mrb[0].mxu0 %v2941
      %v3009 = vpop.f32.mrb[0].mxu0
      %v3010 = vadd.f32 %v2933, %v3009
      %v3011 = vpop.f32.mrb[0].mxu0
      %v3012 = vadd.f32 %v2937, %v3011
      %3013 = vdwg.mxu0
      %v3015 = vrot.slane %v3010, 7
      %3016 = vrot.lane.b32.xlu0 %v3015, 64
      %v3017 = vpop.permute.xlu0 %3016
      %v3020 = vrot.slane %v3012, 6
      %vm3022 = vcmask 1040384
      %v3023 = vsel %vm3022, %v3010, %v3017
      %vm3024 = vcmask 1041408
      %v3025 = vsel %vm3024, %v3023, %v3020
      %v3026 = vtanh.pop %v3025
      %v3027 = vrot.slane %v3012, 7
      %3028 = vrot.lane.b32.xlu0 %v3027, 125
      %v3029 = vpop.permute.xlu0 %3028
      %3031 = vrot.lane.b32.xlu0 %v3020, 122
      %v3032 = vpop.permute.xlu0 %3031
      %v3034 = vsel %vm3022, %v3012, %v3029
      %v3035 = vsel %vm3024, %v3034, %v3032
      %v3036 = vld [vmem:[%s16] sm:$0x7]
      %v3037 = vmul.f32 %v3035, 0.1
      %3039 = vrot.lane.b32.xlu0 %v3037, 64
      %v3040 = vpop.permute.xlu0 %3039
      %v3042 = vadd.f32 %v3036, %v3040
      %v3043 = vpack.c.bf16 %v2732, %v2731
      %v3044 = vpack.c.bf16 %v2734, %v2733
      %v3045 = vpack.c.bf16 %v2736, %v2735
      %v3046 = vpack.c.bf16 %v2738, %v2737
      %v3047 = vpack.c.bf16 %v2740, %v2739
      %v3048 = vpack.c.bf16 %v2742, %v2741
      %v3049 = vpack.c.bf16 %v2744, %v2743
      %v3050 = vpack.c.bf16 %v2746, %v2745
      %v3051 = vpack.c.bf16 %v2748, %v2747
      %v3052 = vpack.c.bf16 %v2750, %v2749
      %v3053 = vpack.c.bf16 %v2752, %v2751
      %v3054 = vpack.c.bf16 %v2754, %v2753
      %v3055 = vpack.c.bf16 %v2756, %v2755
      %v3056 = vpack.c.bf16 %v2758, %v2757
      %v3057 = vpack.c.bf16 %v2760, %v2759
      %v3058 = vpack.c.bf16 %v2762, %v2761
      %v3059 = vld [vmem:[%s12] sm:$0xf]
      %v3060 = vld [vmem:[%s12 + $0x4] sm:$0xf]
      %v3061 = vld [vmem:[%s12 + $0x8] sm:$0xf]
      %v3062 = vld [vmem:[%s12 + $0xc] sm:$0xf]
      %v3063 = vld [vmem:[%s13] sm:$0x1]
      %v3065 = vlaneseq
      %v3066 = vshrl.u32 %v3065, 7
      %v3067 = vsub.s32 0, %v3066
      %v3068 = vrot.slane %v3063, %v3067
      %v3074 = vunpack.c.l.b16 %v3059
      %v3075 = vunpack.c.l.b16 %v3060
      %v3076 = vunpack.c.l.b16 %v3061
      %v3077 = vunpack.c.l.b16 %v3062
      %v3078 = vpack.c.b16 %v3075, %v3074
      %v3079 = vpack.c.b16 %v3077, %v3076
      %v3083 = vsel %vm1775, %v3043, 0
      %v3086 = vsel %vm1775, %v3044, 0
      %v3089 = vsel %vm1775, %v3045, 0
      %v3092 = vsel %vm1775, %v3046, 0
      %v3095 = vsel %vm1775, %v3047, 0
      %v3098 = vsel %vm1775, %v3048, 0
      %v3101 = vsel %vm1775, %v3049, 0
      %v3104 = vsel %vm1775, %v3050, 0
      %v3107 = vsel %vm1775, %v3051, 0
      %v3110 = vsel %vm1775, %v3052, 0
      %v3113 = vsel %vm1775, %v3053, 0
      %v3116 = vsel %vm1775, %v3054, 0
      %v3119 = vsel %vm1775, %v3055, 0
      %v3122 = vsel %vm1775, %v3056, 0
      %v3125 = vsel %vm1775, %v3057, 0
      %v3128 = vsel %vm1775, %v3058, 0
      %3130 = vmatprep.subr.bf16.mxu0 0
      %3131 = vmatpush1.bf16.msra.mxu0 %v3078
      %3132 = vmatprep.subr.bf16.mxu0 0
      %3133 = vmatpush1.bf16.msra.mxu0 %v3079
      %3134 = vmatprep.subr.bf16.mxu0 0
      %3135 = vmatpush1.bf16.msra.mxu0 0
      %3136 = vmatprep.subr.bf16.mxu0 0
      %3137 = vmatpush1.bf16.msra.mxu0 0
      %3138 = vmatprep.subr.bf16.mxu0 0
      %3139 = vmatpush1.bf16.msra.mxu0 0
      %3140 = vmatprep.subr.bf16.mxu0 0
      %3141 = vmatpush1.bf16.msra.mxu0 0
      %3142 = vmatprep.subr.bf16.mxu0 0
      %3143 = vmatpush1.bf16.msra.mxu0 0
      %3144 = vmatprep.subr.bf16.mxu0 0
      %3145 = vmatpush1.bf16.msra.mxu0 0
      %3146 = vmatprep.subr.bf16.mxu0 0
      %3147 = vmatpush1.bf16.msra.mxu0 0
      %3148 = vmatprep.subr.bf16.mxu0 0
      %3149 = vmatpush1.bf16.msra.mxu0 0
      %3150 = vmatprep.subr.bf16.mxu0 0
      %3151 = vmatpush1.bf16.msra.mxu0 0
      %3152 = vmatprep.subr.bf16.mxu0 0
      %3153 = vmatpush1.bf16.msra.mxu0 0
      %3154 = vmatprep.subr.bf16.mxu0 0
      %3155 = vmatpush1.bf16.msra.mxu0 0
      %3156 = vmatprep.subr.bf16.mxu0 0
      %3157 = vmatpush1.bf16.msra.mxu0 0
      %3158 = vmatprep.subr.bf16.mxu0 0
      %3159 = vmatpush1.bf16.msra.mxu0 0
      %3160 = vmatprep.subr.bf16.mxu0 0
      %3161 = vmatpush1.bf16.msra.mxu0 0
      %3162 = vmatprep.mubr.bf16.mxu0 0
      %3163 = vmatmul.mubr.bf16.gmra.mrb[0].mxu0 %v3083
      %v3164 = vpop.f32.mrb[0].mxu0
      %v3165 = vadd.f32 %v3068, %v3164
      %v3166 = vpop.f32.mrb[0].mxu0
      %v3167 = vpop.f32.mrb[0].mxu0
      %v3168 = vadd.f32 %v3068, %v3167
      %v3169 = vpop.f32.mrb[0].mxu0
      %3170 = vmatprep.mubr.bf16.mxu0 0
      %3171 = vmatmul.mubr.bf16.gmra.mrb[0].mxu0 %v3086
      %v3172 = vpop.f32.mrb[0].mxu0
      %v3173 = vadd.f32 %v3068, %v3172
      %v3174 = vpop.f32.mrb[0].mxu0
      %v3175 = vpop.f32.mrb[0].mxu0
      %v3176 = vadd.f32 %v3068, %v3175
      %v3177 = vpop.f32.mrb[0].mxu0
      %3178 = vmatprep.mubr.bf16.mxu0 0
      %3179 = vmatmul.mubr.bf16.gmra.mrb[0].mxu0 %v3089
      %v3180 = vpop.f32.mrb[0].mxu0
      %v3181 = vadd.f32 %v3068, %v3180
      %v3182 = vpop.f32.mrb[0].mxu0
      %v3183 = vpop.f32.mrb[0].mxu0
      %v3184 = vadd.f32 %v3068, %v3183
      %v3185 = vpop.f32.mrb[0].mxu0
      %3186 = vmatprep.mubr.bf16.mxu0 0
      %3187 = vmatmul.mubr.bf16.gmra.mrb[0].mxu0 %v3092
      %v3188 = vpop.f32.mrb[0].mxu0
      %v3189 = vadd.f32 %v3068, %v3188
      %v3190 = vpop.f32.mrb[0].mxu0
      %v3191 = vpop.f32.mrb[0].mxu0
      %v3192 = vadd.f32 %v3068, %v3191
      %v3193 = vpop.f32.mrb[0].mxu0
      %3194 = vmatprep.mubr.bf16.mxu0 0
      %3195 = vmatmul.mubr.bf16.gmra.mrb[0].mxu0 %v3095
      %v3196 = vpop.f32.mrb[0].mxu0
      %v3197 = vadd.f32 %v3068, %v3196
      %v3198 = vpop.f32.mrb[0].mxu0
      %v3199 = vpop.f32.mrb[0].mxu0
      %v3200 = vadd.f32 %v3068, %v3199
      %v3201 = vpop.f32.mrb[0].mxu0
      %3202 = vmatprep.mubr.bf16.mxu0 0
      %3203 = vmatmul.mubr.bf16.gmra.mrb[0].mxu0 %v3098
      %v3204 = vpop.f32.mrb[0].mxu0
      %v3205 = vadd.f32 %v3068, %v3204
      %v3206 = vpop.f32.mrb[0].mxu0
      %v3207 = vpop.f32.mrb[0].mxu0
      %v3208 = vadd.f32 %v3068, %v3207
      %v3209 = vpop.f32.mrb[0].mxu0
      %3210 = vmatprep.mubr.bf16.mxu0 0
      %3211 = vmatmul.mubr.bf16.gmra.mrb[0].mxu0 %v3101
      %v3212 = vpop.f32.mrb[0].mxu0
      %v3213 = vadd.f32 %v3068, %v3212
      %v3214 = vpop.f32.mrb[0].mxu0
      %v3215 = vpop.f32.mrb[0].mxu0
      %v3216 = vadd.f32 %v3068, %v3215
      %v3217 = vpop.f32.mrb[0].mxu0
      %3218 = vmatprep.mubr.bf16.mxu0 0
      %3219 = vmatmul.mubr.bf16.gmra.mrb[0].mxu0 %v3104
      %v3220 = vpop.f32.mrb[0].mxu0
      %v3221 = vadd.f32 %v3068, %v3220
      %v3222 = vpop.f32.mrb[0].mxu0
      %v3223 = vpop.f32.mrb[0].mxu0
      %v3224 = vadd.f32 %v3068, %v3223
      %v3225 = vpop.f32.mrb[0].mxu0
      %3226 = vmatprep.mubr.bf16.mxu0 0
      %3227 = vmatmul.mubr.bf16.gmra.mrb[0].mxu0 %v3107
      %v3228 = vpop.f32.mrb[0].mxu0
      %v3229 = vadd.f32 %v3068, %v3228
      %v3230 = vpop.f32.mrb[0].mxu0
      %v3231 = vpop.f32.mrb[0].mxu0
      %v3232 = vadd.f32 %v3068, %v3231
      %v3233 = vpop.f32.mrb[0].mxu0
      %3234 = vmatprep.mubr.bf16.mxu0 0
      %3235 = vmatmul.mubr.bf16.gmra.mrb[0].mxu0 %v3110
      %v3236 = vpop.f32.mrb[0].mxu0
      %v3237 = vadd.f32 %v3068, %v3236
      %v3238 = vpop.f32.mrb[0].mxu0
      %v3239 = vpop.f32.mrb[0].mxu0
      %v3240 = vadd.f32 %v3068, %v3239
      %v3241 = vpop.f32.mrb[0].mxu0
      %3242 = vmatprep.mubr.bf16.mxu0 0
      %3243 = vmatmul.mubr.bf16.gmra.mrb[0].mxu0 %v3113
      %v3244 = vpop.f32.mrb[0].mxu0
      %v3245 = vadd.f32 %v3068, %v3244
      %v3246 = vpop.f32.mrb[0].mxu0
      %v3247 = vpop.f32.mrb[0].mxu0
      %v3248 = vadd.f32 %v3068, %v3247
      %v3249 = vpop.f32.mrb[0].mxu0
      %3250 = vmatprep.mubr.bf16.mxu0 0
      %3251 = vmatmul.mubr.bf16.gmra.mrb[0].mxu0 %v3116
      %v3252 = vpop.f32.mrb[0].mxu0
      %v3253 = vadd.f32 %v3068, %v3252
      %v3254 = vpop.f32.mrb[0].mxu0
      %v3255 = vpop.f32.mrb[0].mxu0
      %v3256 = vadd.f32 %v3068, %v3255
      %v3257 = vpop.f32.mrb[0].mxu0
      %3258 = vmatprep.mubr.bf16.mxu0 0
      %3259 = vmatmul.mubr.bf16.gmra.mrb[0].mxu0 %v3119
      %v3260 = vpop.f32.mrb[0].mxu0
      %v3261 = vadd.f32 %v3068, %v3260
      %v3262 = vpop.f32.mrb[0].mxu0
      %v3263 = vpop.f32.mrb[0].mxu0
      %v3264 = vadd.f32 %v3068, %v3263
      %v3265 = vpop.f32.mrb[0].mxu0
      %3266 = vmatprep.mubr.bf16.mxu0 0
      %3267 = vmatmul.mubr.bf16.gmra.mrb[0].mxu0 %v3122
      %v3268 = vpop.f32.mrb[0].mxu0
      %v3269 = vadd.f32 %v3068, %v3268
      %v3270 = vpop.f32.mrb[0].mxu0
      %v3271 = vpop.f32.mrb[0].mxu0
      %v3272 = vadd.f32 %v3068, %v3271
      %v3273 = vpop.f32.mrb[0].mxu0
      %3274 = vmatprep.mubr.bf16.mxu0 0
      %3275 = vmatmul.mubr.bf16.gmra.mrb[0].mxu0 %v3125
      %v3276 = vpop.f32.mrb[0].mxu0
      %v3277 = vadd.f32 %v3068, %v3276
      %v3278 = vpop.f32.mrb[0].mxu0
      %v3279 = vpop.f32.mrb[0].mxu0
      %v3280 = vadd.f32 %v3068, %v3279
      %v3281 = vpop.f32.mrb[0].mxu0
      %3282 = vmatprep.mubr.bf16.mxu0 0
      %3283 = vmatmul.mubr.bf16.gmra.mrb[0].mxu0 %v3128
      %v3284 = vpop.f32.mrb[0].mxu0
      %v3285 = vadd.f32 %v3068, %v3284
      %v3286 = vpop.f32.mrb[0].mxu0
      %v3287 = vpop.f32.mrb[0].mxu0
      %v3288 = vadd.f32 %v3068, %v3287
      %v3289 = vpop.f32.mrb[0].mxu0
      %3290 = vdwg.mxu0
      %v3291 = vpack.c.bf16 %v3168, %v3165
      %v3292 = vpack.c.bf16 %v3176, %v3173
      %v3293 = vpack.c.bf16 %v3184, %v3181
      %v3294 = vpack.c.bf16 %v3192, %v3189
      %v3295 = vpack.c.bf16 %v3200, %v3197
      %v3296 = vpack.c.bf16 %v3208, %v3205
      %v3297 = vpack.c.bf16 %v3216, %v3213
      %v3298 = vpack.c.bf16 %v3224, %v3221
      %v3299 = vpack.c.bf16 %v3232, %v3229
      %v3300 = vpack.c.bf16 %v3240, %v3237
      %v3301 = vpack.c.bf16 %v3248, %v3245
      %v3302 = vpack.c.bf16 %v3256, %v3253
      %v3303 = vpack.c.bf16 %v3264, %v3261
      %v3304 = vpack.c.bf16 %v3272, %v3269
      %v3305 = vpack.c.bf16 %v3280, %v3277
      %v3306 = vpack.c.bf16 %v3288, %v3285
      %v3307 = vld [vmem:[%s10] sm:$0x7]
      %v3308 = vmul.f32 %v3307, 0.17677669
      %v3309 = vld [vmem:[%s11] sm:$0x1]
      %v3310 = vmul.f32 %v3309, 0.17677669
      %v3312 = vlaneseq
      %v3313 = vshrl.u32 %v3312, 7
      %v3314 = vsub.s32 0, %v3313
      %v3315 = vrot.slane %v3310, %v3314
      %3317 = vxpose.xlu0.b32.start [1/16] %v3026, 128
      %3318 = vxpose.xlu0.b32.cont [2/16] 0.0, 128
      %3319 = vxpose.xlu0.b32.cont [3/16] 0.0, 128
      %3320 = vxpose.xlu0.b32.cont [4/16] 0.0, 128
      %3321 = vxpose.xlu0.b32.cont [5/16] 0.0, 128
      %3322 = vxpose.xlu0.b32.cont [6/16] 0.0, 128
      %3323 = vxpose.xlu0.b32.cont [7/16] 0.0, 128
      %3324 = vxpose.xlu0.b32.cont [8/16] 0.0, 128
      %3325 = vxpose.xlu0.b32.cont [9/16] 0.0, 128
      %3326 = vxpose.xlu0.b32.cont [10/16] 0.0, 128
      %3327 = vxpose.xlu0.b32.cont [11/16] 0.0, 128
      %3328 = vxpose.xlu0.b32.cont [12/16] 0.0, 128
      %3329 = vxpose.xlu0.b32.cont [13/16] 0.0, 128
      %3330 = vxpose.xlu0.b32.cont [14/16] 0.0, 128
      %3331 = vxpose.xlu0.b32.cont [15/16] 0.0, 128
      %3332 = vxpose.xlu0.b32.end [16/16] 0.0, 128
      %v3333 = vpop.trf.xlu0
      %v3334 = vpop.trf.xlu0
      %v3335 = vpop.trf.xlu0
      %v3336 = vpop.trf.xlu0
      %v3337 = vpop.trf.xlu0
      %v3338 = vpop.trf.xlu0
      %v3339 = vpop.trf.xlu0
      %v3340 = vpop.trf.xlu0
      %v3341 = vpop.trf.xlu0
      %v3342 = vpop.trf.xlu0
      %v3343 = vpop.trf.xlu0
      %v3344 = vpop.trf.xlu0
      %v3345 = vpop.trf.xlu0
      %v3346 = vpop.trf.xlu0
      %v3347 = vpop.trf.xlu0
      %v3348 = vpop.trf.xlu0
      %vm3349 = vcmask 23552
      %v3351 = vsel %vm3349, %v3333, 0
      %v3354 = vsel %vm3349, %v3334, 0
      %v3357 = vsel %vm3349, %v3335, 0
      %v3360 = vsel %vm3349, %v3336, 0
      %v3363 = vsel %vm3349, %v3337, 0
      %v3366 = vsel %vm3349, %v3338, 0
      %v3369 = vsel %vm3349, %v3339, 0
      %v3372 = vsel %vm3349, %v3340, 0
      %vm3374 = vcmask 1042432
      %v3376 = vsel %vm3374, %v3308, 0
      %3378 = vmatprep.subr.mxu0 0.0
      %3379 = vmatpush1.msra.mxu0 %v3376
      %3380 = vmatprep.subr.mxu0 0.0
      %3381 = vmatpush1.msra.mxu0 0.0
      %3382 = vmatprep.subr.mxu0 0.0
      %3383 = vmatpush1.msra.mxu0 0.0
      %3384 = vmatprep.subr.mxu0 0.0
      %3385 = vmatpush1.msra.mxu0 0.0
      %3386 = vmatprep.subr.mxu0 0.0
      %3387 = vmatpush1.msra.mxu0 0.0
      %3388 = vmatprep.subr.mxu0 0.0
      %3389 = vmatpush1.msra.mxu0 0.0
      %3390 = vmatprep.subr.mxu0 0.0
      %3391 = vmatpush1.msra.mxu0 0.0
      %3392 = vmatprep.subr.mxu0 0.0
      %3393 = vmatpush1.msra.mxu0 0.0
      %3394 = vmatprep.subr.mxu0 0.0
      %3395 = vmatpush1.msra.mxu0 0.0
      %3396 = vmatprep.subr.mxu0 0.0
      %3397 = vmatpush1.msra.mxu0 0.0
      %3398 = vmatprep.subr.mxu0 0.0
      %3399 = vmatpush1.msra.mxu0 0.0
      %3400 = vmatprep.subr.mxu0 0.0
      %3401 = vmatpush1.msra.mxu0 0.0
      %3402 = vmatprep.subr.mxu0 0.0
      %3403 = vmatpush1.msra.mxu0 0.0
      %3404 = vmatprep.subr.mxu0 0.0
      %3405 = vmatpush1.msra.mxu0 0.0
      %3406 = vmatprep.subr.mxu0 0.0
      %3407 = vmatpush1.msra.mxu0 0.0
      %3408 = vmatprep.subr.mxu0 0.0
      %3409 = vmatpush1.msra.mxu0 0.0
      %3410 = vmatprep.subr.mxu0 0.0
      %3411 = vmatpush1.msra.mxu0 0.0
      %3412 = vmatprep.subr.mxu0 0.0
      %3413 = vmatpush1.msra.mxu0 0.0
      %3414 = vmatprep.subr.mxu0 0.0
      %3415 = vmatpush1.msra.mxu0 0.0
      %3416 = vmatprep.subr.mxu0 0.0
      %3417 = vmatpush1.msra.mxu0 0.0
      %3418 = vmatprep.subr.mxu0 0.0
      %3419 = vmatpush1.msra.mxu0 0.0
      %3420 = vmatprep.subr.mxu0 0.0
      %3421 = vmatpush1.msra.mxu0 0.0
      %3422 = vmatprep.subr.mxu0 0.0
      %3423 = vmatpush1.msra.mxu0 0.0
      %3424 = vmatprep.subr.mxu0 0.0
      %3425 = vmatpush1.msra.mxu0 0.0
      %3426 = vmatprep.subr.mxu0 0.0
      %3427 = vmatpush1.msra.mxu0 0.0
      %3428 = vmatprep.subr.mxu0 0.0
      %3429 = vmatpush1.msra.mxu0 0.0
      %3430 = vmatprep.subr.mxu0 0.0
      %3431 = vmatpush1.msra.mxu0 0.0
      %3432 = vmatprep.subr.mxu0 0.0
      %3433 = vmatpush1.msra.mxu0 0.0
      %3434 = vmatprep.subr.mxu0 0.0
      %3435 = vmatpush1.msra.mxu0 0.0
      %3436 = vmatprep.subr.mxu0 0.0
      %3437 = vmatpush1.msra.mxu0 0.0
      %3438 = vmatprep.subr.mxu0 0.0
      %3439 = vmatpush1.msra.mxu0 0.0
      %3440 = vmatprep.subr.mxu0 0.0
      %3441 = vmatpush1.msra.mxu0 0.0
      %3442 = vmatprep.mubr.f32.mxu0 0.0
      %3443 = vmatmul.mubr.f32.gmra.mrb[0].mxu0 %v3351
      %v3444 = vpop.f32.mrb[0].mxu0
      %v3445 = vadd.f32 %v3315, %v3444
      %v3446 = vpop.f32.mrb[0].mxu0
      %3447 = vmatprep.mubr.f32.mxu0 0.0
      %3448 = vmatmul.mubr.f32.gmra.mrb[0].mxu0 %v3354
      %v3449 = vpop.f32.mrb[0].mxu0
      %v3450 = vadd.f32 %v3315, %v3449
      %v3451 = vpop.f32.mrb[0].mxu0
      %3452 = vmatprep.mubr.f32.mxu0 0.0
      %3453 = vmatmul.mubr.f32.gmra.mrb[0].mxu0 %v3357
      %v3454 = vpop.f32.mrb[0].mxu0
      %v3455 = vadd.f32 %v3315, %v3454
      %v3456 = vpop.f32.mrb[0].mxu0
      %3457 = vmatprep.mubr.f32.mxu0 0.0
      %3458 = vmatmul.mubr.f32.gmra.mrb[0].mxu0 %v3360
      %v3459 = vpop.f32.mrb[0].mxu0
      %v3460 = vadd.f32 %v3315, %v3459
      %v3461 = vpop.f32.mrb[0].mxu0
      %3462 = vmatprep.mubr.f32.mxu0 0.0
      %3463 = vmatmul.mubr.f32.gmra.mrb[0].mxu0 %v3363
      %v3464 = vpop.f32.mrb[0].mxu0
      %v3465 = vadd.f32 %v3315, %v3464
      %v3466 = vpop.f32.mrb[0].mxu0
      %3467 = vmatprep.mubr.f32.mxu0 0.0
      %3468 = vmatmul.mubr.f32.gmra.mrb[0].mxu0 %v3366
      %v3469 = vpop.f32.mrb[0].mxu0
      %v3470 = vadd.f32 %v3315, %v3469
      %v3471 = vpop.f32.mrb[0].mxu0
      %3472 = vmatprep.mubr.f32.mxu0 0.0
      %3473 = vmatmul.mubr.f32.gmra.mrb[0].mxu0 %v3369
      %v3474 = vpop.f32.mrb[0].mxu0
      %v3475 = vadd.f32 %v3315, %v3474
      %v3476 = vpop.f32.mrb[0].mxu0
      %3477 = vmatprep.mubr.f32.mxu0 0.0
      %3478 = vmatmul.mubr.f32.gmra.mrb[0].mxu0 %v3372
      %v3479 = vpop.f32.mrb[0].mxu0
      %v3480 = vadd.f32 %v3315, %v3479
      %v3481 = vpop.f32.mrb[0].mxu0
      %3482 = vdwg.mxu0
      %v3483 = vpack.c.bf16 %v3450, %v3445
      %v3484 = vpack.c.bf16 %v3460, %v3455
      %v3485 = vpack.c.bf16 %v3470, %v3465
      %v3486 = vpack.c.bf16 %v3480, %v3475
      %v3488 = vsel %vm1775, %v3483, 0
      %v3491 = vsel %vm1775, %v3484, 0
      %v3494 = vsel %vm1775, %v3485, 0
      %v3497 = vsel %vm1775, %v3486, 0
      %v3500 = vsel %vm1775, %v3291, 0
      %v3503 = vsel %vm1775, %v3292, 0
      %v3506 = vsel %vm1775, %v3293, 0
      %v3509 = vsel %vm1775, %v3294, 0
      %v3512 = vsel %vm1775, %v3295, 0
      %v3515 = vsel %vm1775, %v3296, 0
      %v3518 = vsel %vm1775, %v3297, 0
      %v3521 = vsel %vm1775, %v3298, 0
      %v3524 = vsel %vm1775, %v3299, 0
      %v3527 = vsel %vm1775, %v3300, 0
      %v3530 = vsel %vm1775, %v3301, 0
      %v3533 = vsel %vm1775, %v3302, 0
      %v3536 = vsel %vm1775, %v3303, 0
      %v3539 = vsel %vm1775, %v3304, 0
      %v3542 = vsel %vm1775, %v3305, 0
      %v3545 = vsel %vm1775, %v3306, 0
      %3547 = vmatprep.subr.bf16.mxu0 0
      %3548 = vmatpush1.bf16.xpose.msra.mxu0 %v3500
      %3549 = vmatprep.subr.bf16.mxu0 0
      %3550 = vmatpush1.bf16.xpose.msra.mxu0 %v3503
      %3551 = vmatprep.subr.bf16.mxu0 0
      %3552 = vmatpush1.bf16.xpose.msra.mxu0 %v3506
      %3553 = vmatprep.subr.bf16.mxu0 0
      %3554 = vmatpush1.bf16.xpose.msra.mxu0 %v3509
      %3555 = vmatprep.subr.bf16.mxu0 0
      %3556 = vmatpush1.bf16.xpose.msra.mxu0 %v3512
      %3557 = vmatprep.subr.bf16.mxu0 0
      %3558 = vmatpush1.bf16.xpose.msra.mxu0 %v3515
      %3559 = vmatprep.subr.bf16.mxu0 0
      %3560 = vmatpush1.bf16.xpose.msra.mxu0 %v3518
      %3561 = vmatprep.subr.bf16.mxu0 0
      %3562 = vmatpush1.bf16.xpose.msra.mxu0 %v3521
      %3563 = vmatprep.subr.bf16.mxu0 0
      %3564 = vmatpush1.bf16.xpose.msra.mxu0 %v3524
      %3565 = vmatprep.subr.bf16.mxu0 0
      %3566 = vmatpush1.bf16.xpose.msra.mxu0 %v3527
      %3567 = vmatprep.subr.bf16.mxu0 0
      %3568 = vmatpush1.bf16.xpose.msra.mxu0 %v3530
      %3569 = vmatprep.subr.bf16.mxu0 0
      %3570 = vmatpush1.bf16.xpose.msra.mxu0 %v3533
      %3571 = vmatprep.subr.bf16.mxu0 0
      %3572 = vmatpush1.bf16.xpose.msra.mxu0 %v3536
      %3573 = vmatprep.subr.bf16.mxu0 0
      %3574 = vmatpush1.bf16.xpose.msra.mxu0 %v3539
      %3575 = vmatprep.subr.bf16.mxu0 0
      %3576 = vmatpush1.bf16.xpose.msra.mxu0 %v3542
      %3577 = vmatprep.subr.bf16.mxu0 0
      %3578 = vmatpush1.bf16.xpose.msra.mxu0 %v3545
      %3579 = vmatprep.mubr.bf16.mxu0 0
      %3580 = vmatmul.mubr.bf16.gmra.mrb[0].mxu0 %v3488
      %v3581 = vpop.f32.mrb[0].mxu0
      %v3582 = vadd.f32 0.0, %v3581
      %v3583 = vpop.f32.mrb[0].mxu0
      %v3584 = vadd.f32 0.0, %v3583
      %v3585 = vpop.f32.mrb[0].mxu0
      %v3586 = vadd.f32 0.0, %v3585
      %v3587 = vpop.f32.mrb[0].mxu0
      %v3588 = vadd.f32 0.0, %v3587
      %3589 = vmatprep.mubr.bf16.mxu0 0
      %3590 = vmatmul.mubr.bf16.gmra.mrb[0].mxu0 %v3491
      %v3591 = vpop.f32.mrb[0].mxu0
      %v3592 = vadd.f32 0.0, %v3591
      %v3593 = vpop.f32.mrb[0].mxu0
      %v3594 = vadd.f32 0.0, %v3593
      %v3595 = vpop.f32.mrb[0].mxu0
      %v3596 = vadd.f32 0.0, %v3595
      %v3597 = vpop.f32.mrb[0].mxu0
      %v3598 = vadd.f32 0.0, %v3597
      %3599 = vmatprep.mubr.bf16.mxu0 0
      %3600 = vmatmul.mubr.bf16.gmra.mrb[0].mxu0 %v3494
      %v3601 = vpop.f32.mrb[0].mxu0
      %v3602 = vadd.f32 0.0, %v3601
      %v3603 = vpop.f32.mrb[0].mxu0
      %v3604 = vadd.f32 0.0, %v3603
      %v3605 = vpop.f32.mrb[0].mxu0
      %v3606 = vadd.f32 0.0, %v3605
      %v3607 = vpop.f32.mrb[0].mxu0
      %v3608 = vadd.f32 0.0, %v3607
      %3609 = vmatprep.mubr.bf16.mxu0 0
      %3610 = vmatmul.mubr.bf16.gmra.mrb[0].mxu0 %v3497
      %v3611 = vpop.f32.mrb[0].mxu0
      %v3612 = vadd.f32 0.0, %v3611
      %v3613 = vpop.f32.mrb[0].mxu0
      %v3614 = vadd.f32 0.0, %v3613
      %v3615 = vpop.f32.mrb[0].mxu0
      %v3616 = vadd.f32 0.0, %v3615
      %v3617 = vpop.f32.mrb[0].mxu0
      %v3618 = vadd.f32 0.0, %v3617
      %3619 = vdwg.mxu0
      %v3620 = vmax.f32 %v3582, %v3584
      %3621 = vmax.xlane.f32.xlu0 %v3620
      %v3622 = vpop.xlane.xlu0 %3621
      %v3623 = vmax.f32 %v3586, %v3588
      %3624 = vmax.xlane.f32.xlu0 %v3623
      %v3625 = vpop.xlane.xlu0 %3624
      %v3626 = vmax.f32 %v3592, %v3594
      %3627 = vmax.xlane.f32.xlu0 %v3626
      %v3628 = vpop.xlane.xlu0 %3627
      %v3629 = vmax.f32 %v3596, %v3598
      %3630 = vmax.xlane.f32.xlu0 %v3629
      %v3631 = vpop.xlane.xlu0 %3630
      %v3632 = vmax.f32 %v3602, %v3604
      %3633 = vmax.xlane.f32.xlu0 %v3632
      %v3634 = vpop.xlane.xlu0 %3633
      %v3635 = vmax.f32 %v3606, %v3608
      %3636 = vmax.xlane.f32.xlu0 %v3635
      %v3637 = vpop.xlane.xlu0 %3636
      %v3638 = vmax.f32 %v3612, %v3614
      %3639 = vmax.xlane.f32.xlu0 %v3638
      %v3640 = vpop.xlane.xlu0 %3639
      %v3641 = vmax.f32 %v3616, %v3618
      %3642 = vmax.xlane.f32.xlu0 %v3641
      %v3643 = vpop.xlane.xlu0 %3642
      %v3644 = vsub.f32 %v3582, %v3622
      %v3645 = vsub.f32 %v3584, %v3622
      %v3646 = vsub.f32 %v3586, %v3625
      %v3647 = vsub.f32 %v3588, %v3625
      %v3648 = vsub.f32 %v3592, %v3628
      %v3649 = vsub.f32 %v3594, %v3628
      %v3650 = vsub.f32 %v3596, %v3631
      %v3651 = vsub.f32 %v3598, %v3631
      %v3652 = vsub.f32 %v3602, %v3634
      %v3653 = vsub.f32 %v3604, %v3634
      %v3654 = vsub.f32 %v3606, %v3637
      %v3655 = vsub.f32 %v3608, %v3637
      %v3656 = vsub.f32 %v3612, %v3640
      %v3657 = vsub.f32 %v3614, %v3640
      %v3658 = vsub.f32 %v3616, %v3643
      %v3659 = vsub.f32 %v3618, %v3643
      %v3660 = vmul.f32 %v3644, 1.442695
      %v3661 = vpow.pop %v3660
      %v3662 = vmul.f32 %v3645, 1.442695
      %v3663 = vpow.pop %v3662
      %v3664 = vmul.f32 %v3646, 1.442695
      %v3665 = vpow.pop %v3664
      %v3666 = vmul.f32 %v3647, 1.442695
      %v3667 = vpow.pop %v3666
      %v3668 = vmul.f32 %v3648, 1.442695
      %v3669 = vpow.pop %v3668
      %v3670 = vmul.f32 %v3649, 1.442695
      %v3671 = vpow.pop %v3670
      %v3672 = vmul.f32 %v3650, 1.442695
      %v3673 = vpow.pop %v3672
      %v3674 = vmul.f32 %v3651, 1.442695
      %v3675 = vpow.pop %v3674
      %v3676 = vmul.f32 %v3652, 1.442695
      %v3677 = vpow.pop %v3676
      %v3678 = vmul.f32 %v3653, 1.442695
      %v3679 = vpow.pop %v3678
      %v3680 = vmul.f32 %v3654, 1.442695
      %v3681 = vpow.pop %v3680
      %v3682 = vmul.f32 %v3655, 1.442695
      %v3683 = vpow.pop %v3682
      %v3684 = vmul.f32 %v3656, 1.442695
      %v3685 = vpow.pop %v3684
      %v3686 = vmul.f32 %v3657, 1.442695
      %v3687 = vpow.pop %v3686
      %v3688 = vmul.f32 %v3658, 1.442695
      %v3689 = vpow.pop %v3688
      %v3690 = vmul.f32 %v3659, 1.442695
      %v3691 = vpow.pop %v3690
      %v3692 = vadd.f32 %v3661, %v3663
      %3693 = vadd.xlane.f32.xlu0 %v3692
      %v3694 = vpop.xlane.xlu0 %3693
      %v3695 = vadd.f32 %v3665, %v3667
      %3696 = vadd.xlane.f32.xlu0 %v3695
      %v3697 = vpop.xlane.xlu0 %3696
      %v3698 = vadd.f32 %v3669, %v3671
      %3699 = vadd.xlane.f32.xlu0 %v3698
      %v3700 = vpop.xlane.xlu0 %3699
      %v3701 = vadd.f32 %v3673, %v3675
      %3702 = vadd.xlane.f32.xlu0 %v3701
      %v3703 = vpop.xlane.xlu0 %3702
      %v3704 = vadd.f32 %v3677, %v3679
      %3705 = vadd.xlane.f32.xlu0 %v3704
      %v3706 = vpop.xlane.xlu0 %3705
      %v3707 = vadd.f32 %v3681, %v3683
      %3708 = vadd.xlane.f32.xlu0 %v3707
      %v3709 = vpop.xlane.xlu0 %3708
      %v3710 = vadd.f32 %v3685, %v3687
      %3711 = vadd.xlane.f32.xlu0 %v3710
      %v3712 = vpop.xlane.xlu0 %3711
      %v3713 = vadd.f32 %v3689, %v3691
      %3714 = vadd.xlane.f32.xlu0 %v3713
      %v3715 = vpop.xlane.xlu0 %3714
      %v3716 = vrcp.pop %v3694
      %v3717 = vrcp.pop %v3697
      %v3718 = vrcp.pop %v3700
      %v3719 = vrcp.pop %v3703
      %v3720 = vrcp.pop %v3706
      %v3721 = vrcp.pop %v3709
      %v3722 = vrcp.pop %v3712
      %v3723 = vrcp.pop %v3715
      %v3724 = vmul.f32 %v3661, %v3716
      %v3725 = vmul.f32 %v3663, %v3716
      %v3726 = vmul.f32 %v3665, %v3717
      %v3727 = vmul.f32 %v3667, %v3717
      %v3728 = vmul.f32 %v3669, %v3718
      %v3729 = vmul.f32 %v3671, %v3718
      %v3730 = vmul.f32 %v3673, %v3719
      %v3731 = vmul.f32 %v3675, %v3719
      %v3732 = vmul.f32 %v3677, %v3720
      %v3733 = vmul.f32 %v3679, %v3720
      %v3734 = vmul.f32 %v3681, %v3721
      %v3735 = vmul.f32 %v3683, %v3721
      %v3736 = vmul.f32 %v3685, %v3722
      %v3737 = vmul.f32 %v3687, %v3722
      %v3738 = vmul.f32 %v3689, %v3723
      %v3739 = vmul.f32 %v3691, %v3723
      %v3740 = vpack.c.bf16 %v3726, %v3724
      %v3741 = vpack.c.bf16 %v3727, %v3725
      %v3742 = vpack.c.bf16 %v3730, %v3728
      %v3743 = vpack.c.bf16 %v3731, %v3729
      %v3744 = vpack.c.bf16 %v3734, %v3732
      %v3745 = vpack.c.bf16 %v3735, %v3733
      %v3746 = vpack.c.bf16 %v3738, %v3736
      %v3747 = vpack.c.bf16 %v3739, %v3737
      %3764 = vrot.lane.b32.xlu0 %v3291, 96
      %v3765 = vpop.permute.xlu0 %3764
      %3766 = vrot.lane.b32.xlu0 %v3292, 96
      %v3767 = vpop.permute.xlu0 %3766
      %3768 = vrot.lane.b32.xlu0 %v3293, 96
      %v3769 = vpop.permute.xlu0 %3768
      %3770 = vrot.lane.b32.xlu0 %v3294, 96
      %v3771 = vpop.permute.xlu0 %3770
      %3772 = vrot.lane.b32.xlu0 %v3295, 96
      %v3773 = vpop.permute.xlu0 %3772
      %3774 = vrot.lane.b32.xlu0 %v3296, 96
      %v3775 = vpop.permute.xlu0 %3774
      %3776 = vrot.lane.b32.xlu0 %v3297, 96
      %v3777 = vpop.permute.xlu0 %3776
      %3778 = vrot.lane.b32.xlu0 %v3298, 96
      %v3779 = vpop.permute.xlu0 %3778
      %3780 = vrot.lane.b32.xlu0 %v3299, 96
      %v3781 = vpop.permute.xlu0 %3780
      %3782 = vrot.lane.b32.xlu0 %v3300, 96
      %v3783 = vpop.permute.xlu0 %3782
      %3784 = vrot.lane.b32.xlu0 %v3301, 96
      %v3785 = vpop.permute.xlu0 %3784
      %3786 = vrot.lane.b32.xlu0 %v3302, 96
      %v3787 = vpop.permute.xlu0 %3786
      %3788 = vrot.lane.b32.xlu0 %v3303, 96
      %v3789 = vpop.permute.xlu0 %3788
      %3790 = vrot.lane.b32.xlu0 %v3304, 96
      %v3791 = vpop.permute.xlu0 %3790
      %3792 = vrot.lane.b32.xlu0 %v3305, 96
      %v3793 = vpop.permute.xlu0 %3792
      %3794 = vrot.lane.b32.xlu0 %v3306, 96
      %v3795 = vpop.permute.xlu0 %3794
      %3812 = vmatprep.subr.bf16.mxu0 0
      %3813 = vmatpush1.bf16.msra.mxu0 %v3765
      %3814 = vmatprep.subr.bf16.mxu0 0
      %3815 = vmatpush1.bf16.msra.mxu0 %v3767
      %3816 = vmatprep.subr.bf16.mxu0 0
      %3817 = vmatpush1.bf16.msra.mxu0 %v3769
      %3818 = vmatprep.subr.bf16.mxu0 0
      %3819 = vmatpush1.bf16.msra.mxu0 %v3771
      %3820 = vmatprep.subr.bf16.mxu0 0
      %3821 = vmatpush1.bf16.msra.mxu0 %v3773
      %3822 = vmatprep.subr.bf16.mxu0 0
      %3823 = vmatpush1.bf16.msra.mxu0 %v3775
      %3824 = vmatprep.subr.bf16.mxu0 0
      %3825 = vmatpush1.bf16.msra.mxu0 %v3777
      %3826 = vmatprep.subr.bf16.mxu0 0
      %3827 = vmatpush1.bf16.msra.mxu0 %v3779
      %3828 = vmatprep.subr.bf16.mxu0 0
      %3829 = vmatpush1.bf16.msra.mxu0 %v3781
      %3830 = vmatprep.subr.bf16.mxu0 0
      %3831 = vmatpush1.bf16.msra.mxu0 %v3783
      %3832 = vmatprep.subr.bf16.mxu0 0
      %3833 = vmatpush1.bf16.msra.mxu0 %v3785
      %3834 = vmatprep.subr.bf16.mxu0 0
      %3835 = vmatpush1.bf16.msra.mxu0 %v3787
      %3836 = vmatprep.subr.bf16.mxu0 0
      %3837 = vmatpush1.bf16.msra.mxu0 %v3789
      %3838 = vmatprep.subr.bf16.mxu0 0
      %3839 = vmatpush1.bf16.msra.mxu0 %v3791
      %3840 = vmatprep.subr.bf16.mxu0 0
      %3841 = vmatpush1.bf16.msra.mxu0 %v3793
      %3842 = vmatprep.subr.bf16.mxu0 0
      %3843 = vmatpush1.bf16.msra.mxu0 %v3795
      %3844 = vmatprep.mubr.bf16.mxu0 %v3741
      %3845 = vmatmul.mubr.bf16.gmra.mrb[0].mxu0 %v3740
      %v3846 = vpop.f32.mrb[0].mxu0
      %v3847 = vadd.f32 0.0, %v3846
      %v3848 = vpop.f32.mrb[0].mxu0
      %v3849 = vpop.f32.mrb[0].mxu0
      %v3850 = vadd.f32 0.0, %v3849
      %v3851 = vpop.f32.mrb[0].mxu0
      %3852 = vmatprep.mubr.bf16.mxu0 %v3743
      %3853 = vmatmul.mubr.bf16.gmra.mrb[0].mxu0 %v3742
      %v3854 = vpop.f32.mrb[0].mxu0
      %v3855 = vadd.f32 0.0, %v3854
      %v3856 = vpop.f32.mrb[0].mxu0
      %v3857 = vpop.f32.mrb[0].mxu0
      %v3858 = vadd.f32 0.0, %v3857
      %v3859 = vpop.f32.mrb[0].mxu0
      %3860 = vmatprep.mubr.bf16.mxu0 %v3745
      %3861 = vmatmul.mubr.bf16.gmra.mrb[0].mxu0 %v3744
      %v3862 = vpop.f32.mrb[0].mxu0
      %v3863 = vadd.f32 0.0, %v3862
      %v3864 = vpop.f32.mrb[0].mxu0
      %v3865 = vpop.f32.mrb[0].mxu0
      %v3866 = vadd.f32 0.0, %v3865
      %v3867 = vpop.f32.mrb[0].mxu0
      %3868 = vmatprep.mubr.bf16.mxu0 %v3747
      %3869 = vmatmul.mubr.bf16.gmra.mrb[0].mxu0 %v3746
      %v3870 = vpop.f32.mrb[0].mxu0
      %v3871 = vadd.f32 0.0, %v3870
      %v3872 = vpop.f32.mrb[0].mxu0
      %v3873 = vpop.f32.mrb[0].mxu0
      %v3874 = vadd.f32 0.0, %v3873
      %v3875 = vpop.f32.mrb[0].mxu0
      %3876 = vdwg.mxu0
      %v3877 = vld [vmem:[%s14] sm:$0xff]
      %v3878 = vld [vmem:[%s14 + $0x8] sm:$0xff]
      %v3879 = vld [vmem:[%s14 + $0x10] sm:$0xff]
      %v3880 = vld [vmem:[%s14 + $0x18] sm:$0xff]
      %v3881 = vld [vmem:[%s15] sm:$0x7]
      %3883 = vset.pattern.permute.xlu0 0
      %3884 = vperm.xlu0 %3883, %v3881
      %v3885 = vpop.permute.xlu0 %3884
      %3887 = vxpose.xlu0.b32.start [1/16] %v3877, 128
      %3888 = vxpose.xlu0.b32.cont [2/16] %v3878, 128
      %3889 = vxpose.xlu0.b32.cont [3/16] %v3879, 128
      %3890 = vxpose.xlu0.b32.cont [4/16] %v3880, 128
      %3891 = vxpose.xlu0.b32.cont [5/16] 0.0, 128
      %3892 = vxpose.xlu0.b32.cont [6/16] 0.0, 128
      %3893 = vxpose.xlu0.b32.cont [7/16] 0.0, 128
      %3894 = vxpose.xlu0.b32.cont [8/16] 0.0, 128
      %3895 = vxpose.xlu0.b32.cont [9/16] 0.0, 128
      %3896 = vxpose.xlu0.b32.cont [10/16] 0.0, 128
      %3897 = vxpose.xlu0.b32.cont [11/16] 0.0, 128
      %3898 = vxpose.xlu0.b32.cont [12/16] 0.0, 128
      %3899 = vxpose.xlu0.b32.cont [13/16] 0.0, 128
      %3900 = vxpose.xlu0.b32.cont [14/16] 0.0, 128
      %3901 = vxpose.xlu0.b32.cont [15/16] 0.0, 128
      %3902 = vxpose.xlu0.b32.end [16/16] 0.0, 128
      %v3903 = vpop.trf.xlu0
      %v3904 = vpop.trf.xlu0
      %v3905 = vpop.trf.xlu0
      %v3906 = vpop.trf.xlu0
      %v3907 = vpop.trf.xlu0
      %v3908 = vpop.trf.xlu0
      %v3909 = vpop.trf.xlu0
      %v3910 = vpop.trf.xlu0
      %v3911 = vpop.trf.xlu0
      %v3912 = vpop.trf.xlu0
      %v3913 = vpop.trf.xlu0
      %v3914 = vpop.trf.xlu0
      %v3915 = vpop.trf.xlu0
      %v3916 = vpop.trf.xlu0
      %v3917 = vpop.trf.xlu0
      %v3918 = vpop.trf.xlu0
      %v3920 = vsel %vm1775, %v3903, 0
      %v3923 = vsel %vm1775, %v3847, 0
      %v3926 = vsel %vm1775, %v3850, 0
      %v3929 = vsel %vm1775, %v3855, 0
      %v3932 = vsel %vm1775, %v3858, 0
      %v3935 = vsel %vm1775, %v3863, 0
      %v3938 = vsel %vm1775, %v3866, 0
      %v3941 = vsel %vm1775, %v3871, 0
      %v3944 = vsel %vm1775, %v3874, 0
      %3946 = vmatprep.subr.mxu0 0.0
      %3947 = vmatpush1.xpose.msra.mxu0 %v3923
      %3948 = vmatprep.subr.mxu0 0.0
      %3949 = vmatpush1.xpose.msra.mxu0 %v3926
      %3950 = vmatprep.subr.mxu0 0.0
      %3951 = vmatpush1.xpose.msra.mxu0 %v3929
      %3952 = vmatprep.subr.mxu0 0.0
      %3953 = vmatpush1.xpose.msra.mxu0 %v3932
      %3954 = vmatprep.subr.mxu0 0.0
      %3955 = vmatpush1.xpose.msra.mxu0 %v3935
      %3956 = vmatprep.subr.mxu0 0.0
      %3957 = vmatpush1.xpose.msra.mxu0 %v3938
      %3958 = vmatprep.subr.mxu0 0.0
      %3959 = vmatpush1.xpose.msra.mxu0 %v3941
      %3960 = vmatprep.subr.mxu0 0.0
      %3961 = vmatpush1.xpose.msra.mxu0 %v3944
      %3962 = vmatprep.subr.mxu0 0.0
      %3963 = vmatpush1.xpose.msra.mxu0 0.0
      %3964 = vmatprep.subr.mxu0 0.0
      %3965 = vmatpush1.xpose.msra.mxu0 0.0
      %3966 = vmatprep.subr.mxu0 0.0
      %3967 = vmatpush1.xpose.msra.mxu0 0.0
      %3968 = vmatprep.subr.mxu0 0.0
      %3969 = vmatpush1.xpose.msra.mxu0 0.0
      %3970 = vmatprep.subr.mxu0 0.0
      %3971 = vmatpush1.xpose.msra.mxu0 0.0
      %3972 = vmatprep.subr.mxu0 0.0
      %3973 = vmatpush1.xpose.msra.mxu0 0.0
      %3974 = vmatprep.subr.mxu0 0.0
      %3975 = vmatpush1.xpose.msra.mxu0 0.0
      %3976 = vmatprep.subr.mxu0 0.0
      %3977 = vmatpush1.xpose.msra.mxu0 0.0
      %3978 = vmatprep.subr.mxu0 0.0
      %3979 = vmatpush1.xpose.msra.mxu0 0.0
      %3980 = vmatprep.subr.mxu0 0.0
      %3981 = vmatpush1.xpose.msra.mxu0 0.0
      %3982 = vmatprep.subr.mxu0 0.0
      %3983 = vmatpush1.xpose.msra.mxu0 0.0
      %3984 = vmatprep.subr.mxu0 0.0
      %3985 = vmatpush1.xpose.msra.mxu0 0.0
      %3986 = vmatprep.subr.mxu0 0.0
      %3987 = vmatpush1.xpose.msra.mxu0 0.0
      %3988 = vmatprep.subr.mxu0 0.0
      %3989 = vmatpush1.xpose.msra.mxu0 0.0
      %3990 = vmatprep.subr.mxu0 0.0
      %3991 = vmatpush1.xpose.msra.mxu0 0.0
      %3992 = vmatprep.subr.mxu0 0.0
      %3993 = vmatpush1.xpose.msra.mxu0 0.0
      %3994 = vmatprep.subr.mxu0 0.0
      %3995 = vmatpush1.xpose.msra.mxu0 0.0
      %3996 = vmatprep.subr.mxu0 0.0
      %3997 = vmatpush1.xpose.msra.mxu0 0.0
      %3998 = vmatprep.subr.mxu0 0.0
      %3999 = vmatpush1.xpose.msra.mxu0 0.0
      %4000 = vmatprep.subr.mxu0 0.0
      %4001 = vmatpush1.xpose.msra.mxu0 0.0
      %4002 = vmatprep.subr.mxu0 0.0
      %4003 = vmatpush1.xpose.msra.mxu0 0.0
      %4004 = vmatprep.subr.mxu0 0.0
      %4005 = vmatpush1.xpose.msra.mxu0 0.0
      %4006 = vmatprep.subr.mxu0 0.0
      %4007 = vmatpush1.xpose.msra.mxu0 0.0
      %4008 = vmatprep.subr.mxu0 0.0
      %4009 = vmatpush1.xpose.msra.mxu0 0.0
      %4010 = vmatprep.mubr.f32.mxu0 0.0
      %4011 = vmatmul.mubr.f32.gmra.mrb[0].mxu0 %v3920
      %v4012 = vpop.f32.mrb[0].mxu0
      %v4013 = vadd.f32 %v3885, %v4012
      %v4014 = vpop.f32.mrb[0].mxu0
      %4015 = vdwg.mxu0
      %v4016 = vtanh.pop %v4013
      %v4017 = vadd.f32 %v3026, %v4016
      %4018 = vxpose.xlu0.b32.start [1/16] %v3042, 128
      %4019 = vxpose.xlu0.b32.cont [2/16] 0.0, 128
      %4020 = vxpose.xlu0.b32.cont [3/16] 0.0, 128
      %4021 = vxpose.xlu0.b32.cont [4/16] 0.0, 128
      %4022 = vxpose.xlu0.b32.cont [5/16] 0.0, 128
      %4023 = vxpose.xlu0.b32.cont [6/16] 0.0, 128
      %4024 = vxpose.xlu0.b32.cont [7/16] 0.0, 128
      %4025 = vxpose.xlu0.b32.cont [8/16] 0.0, 128
      %4026 = vxpose.xlu0.b32.cont [9/16] 0.0, 128
      %4027 = vxpose.xlu0.b32.cont [10/16] 0.0, 128
      %4028 = vxpose.xlu0.b32.cont [11/16] 0.0, 128
      %4029 = vxpose.xlu0.b32.cont [12/16] 0.0, 128
      %4030 = vxpose.xlu0.b32.cont [13/16] 0.0, 128
      %4031 = vxpose.xlu0.b32.cont [14/16] 0.0, 128
      %4032 = vxpose.xlu0.b32.cont [15/16] 0.0, 128
      %4033 = vxpose.xlu0.b32.end [16/16] 0.0, 128
      %v4034 = vpop.trf.xlu0
      %v4035 = vpop.trf.xlu0
      %v4036 = vpop.trf.xlu0
      %v4037 = vpop.trf.xlu0
      %v4038 = vpop.trf.xlu0
      %v4039 = vpop.trf.xlu0
      %v4040 = vpop.trf.xlu0
      %v4041 = vpop.trf.xlu0
      %v4042 = vpop.trf.xlu0
      %v4043 = vpop.trf.xlu0
      %v4044 = vpop.trf.xlu0
      %v4045 = vpop.trf.xlu0
      %v4046 = vpop.trf.xlu0
      %v4047 = vpop.trf.xlu0
      %v4048 = vpop.trf.xlu0
      %v4049 = vpop.trf.xlu0
      %v4051 = vsel %vm3349, %v4034, 0
      %v4054 = vsel %vm3374, %v4017, 0
      %4056 = vmatprep.subr.mxu0 0.0
      %4057 = vmatpush1.msra.mxu0 %v4054
      %4058 = vmatprep.subr.mxu0 0.0
      %4059 = vmatpush1.msra.mxu0 0.0
      %4060 = vmatprep.subr.mxu0 0.0
      %4061 = vmatpush1.msra.mxu0 0.0
      %4062 = vmatprep.subr.mxu0 0.0
      %4063 = vmatpush1.msra.mxu0 0.0
      %4064 = vmatprep.subr.mxu0 0.0
      %4065 = vmatpush1.msra.mxu0 0.0
      %4066 = vmatprep.subr.mxu0 0.0
      %4067 = vmatpush1.msra.mxu0 0.0
      %4068 = vmatprep.subr.mxu0 0.0
      %4069 = vmatpush1.msra.mxu0 0.0
      %4070 = vmatprep.subr.mxu0 0.0
      %4071 = vmatpush1.msra.mxu0 0.0
      %4072 = vmatprep.subr.mxu0 0.0
      %4073 = vmatpush1.msra.mxu0 0.0
      %4074 = vmatprep.subr.mxu0 0.0
      %4075 = vmatpush1.msra.mxu0 0.0
      %4076 = vmatprep.subr.mxu0 0.0
      %4077 = vmatpush1.msra.mxu0 0.0
      %4078 = vmatprep.subr.mxu0 0.0
      %4079 = vmatpush1.msra.mxu0 0.0
      %4080 = vmatprep.subr.mxu0 0.0
      %4081 = vmatpush1.msra.mxu0 0.0
      %4082 = vmatprep.subr.mxu0 0.0
      %4083 = vmatpush1.msra.mxu0 0.0
      %4084 = vmatprep.subr.mxu0 0.0
      %4085 = vmatpush1.msra.mxu0 0.0
      %4086 = vmatprep.subr.mxu0 0.0
      %4087 = vmatpush1.msra.mxu0 0.0
      %4088 = vmatprep.subr.mxu0 0.0
      %4089 = vmatpush1.msra.mxu0 0.0
      %4090 = vmatprep.subr.mxu0 0.0
      %4091 = vmatpush1.msra.mxu0 0.0
      %4092 = vmatprep.subr.mxu0 0.0
      %4093 = vmatpush1.msra.mxu0 0.0
      %4094 = vmatprep.subr.mxu0 0.0
      %4095 = vmatpush1.msra.mxu0 0.0
      %4096 = vmatprep.subr.mxu0 0.0
      %4097 = vmatpush1.msra.mxu0 0.0
      %4098 = vmatprep.subr.mxu0 0.0
      %4099 = vmatpush1.msra.mxu0 0.0
      %4100 = vmatprep.subr.mxu0 0.0
      %4101 = vmatpush1.msra.mxu0 0.0
      %4102 = vmatprep.subr.mxu0 0.0
      %4103 = vmatpush1.msra.mxu0 0.0
      %4104 = vmatprep.subr.mxu0 0.0
      %4105 = vmatpush1.msra.mxu0 0.0
      %4106 = vmatprep.subr.mxu0 0.0
      %4107 = vmatpush1.msra.mxu0 0.0
      %4108 = vmatprep.subr.mxu0 0.0
      %4109 = vmatpush1.msra.mxu0 0.0
      %4110 = vmatprep.subr.mxu0 0.0
      %4111 = vmatpush1.msra.mxu0 0.0
      %4112 = vmatprep.subr.mxu0 0.0
      %4113 = vmatpush1.msra.mxu0 0.0
      %4114 = vmatprep.subr.mxu0 0.0
      %4115 = vmatpush1.msra.mxu0 0.0
      %4116 = vmatprep.subr.mxu0 0.0
      %4117 = vmatpush1.msra.mxu0 0.0
      %4118 = vmatprep.subr.mxu0 0.0
      %4119 = vmatpush1.msra.mxu0 0.0
      %4120 = vmatprep.mubr.f32.mxu0 0.0
      %4121 = vmatmul.mubr.f32.gmra.mrb[0].mxu0 %v4051
      %v4122 = vpop.f32.mrb[0].mxu0
      %v4123 = vadd.f32 0.0, %v4122
      %v4124 = vpop.f32.mrb[0].mxu0
      %4125 = vdwg.mxu0
      %vm4126 = vcmask 518144
      %4127 = vst.msk [vmem:[%s582] sm:$0x7] %vm4126, %v3026
      %4128 = vst.msk [vmem:[%s586] sm:$0x7] %vm4126, %v4123
      %p4129 = scmp.lt.s32.totalorder %s30, 1
      %s4130 = scalar_select %p4129, %s30, 1
      %s4131 = smul.addr %s4130, 4
      %s4132 = scalar_lea.vmem %s17, %s4131
      %p4133 = scmp.lt.s32.totalorder %s30, 1
      %s4134 = scalar_select %p4133, %s30, 1
      %s4135 = smul.addr %s4134, 4
      %s4136 = scalar_lea.vmem %s18, %s4135
      // Predicated region
      $region89: #{point_gen_forward.1} parent=87 // pred_check
        %p4137 = pneg %p410
      $region90: #{point_gen_forward.1} parent=87 // pred_check_branch
        %4139 = sbr.rel (%p4137) target = $region92
      $region91: #{point_gen_forward.1} parent=87 // pred_region
        _
      $region92: #{point_gen_forward.1} parent=87 // pred_fallthru
        _
      // Predicated region
      $region93: #{point_gen_forward.1} parent=87 // pred_check
        %p4140 = pneg %p436
      $region94: #{point_gen_forward.1} parent=87 // pred_check_branch
        %4142 = sbr.rel (%p4140) target = $region96
      $region95: #{point_gen_forward.1} parent=87 // pred_region
        _
      $region96: #{point_gen_forward.1} parent=87 // pred_fallthru
        _
    $region88: #{point_gen_forward.1} parent=5 // pred_fallthru
      _
    %p4143 = scmp.le.s32.totalorder 2, %s25
    // Predicated region
    $region97: #{point_gen_forward.1} parent=5 // pred_check
      %p4144 = pneg %p4143
    $region98: #{point_gen_forward.1} parent=5 // pred_check_branch
      %4146 = sbr.rel (%p4144) target = $region100
    $region99: #{point_gen_forward.1} parent=5 // pred_region
      %s4147 = ssub.s32 %s25, 2
      // Predicated region
      $region101: #{point_gen_forward.1} parent=99 // pred_check
        %p4148 = pneg %p416
      $region102: #{point_gen_forward.1} parent=99 // pred_check_branch
        %4150 = sbr.rel (%p4148) target = $region104
      $region103: #{point_gen_forward.1} parent=99 // pred_region
        %p4151 = scmp.lt.s32.totalorder %s31, 1
        %s4152 = scalar_select %p4151, %s31, 1
        %s4153 = smul.addr %s4152, 4
        %s4154 = scalar_lea.vmem %s17, %s4153
      $region104: #{point_gen_forward.1} parent=99 // pred_fallthru
        _
      // Predicated region
      $region105: #{point_gen_forward.1} parent=99 // pred_check
        %p4155 = pneg %p442
      $region106: #{point_gen_forward.1} parent=99 // pred_check_branch
        %4157 = sbr.rel (%p4155) target = $region108
      $region107: #{point_gen_forward.1} parent=99 // pred_region
        %p4158 = scmp.lt.s32.totalorder %s31, 1
        %s4159 = scalar_select %p4158, %s31, 1
        %s4160 = smul.addr %s4159, 4
        %s4161 = scalar_lea.vmem %s18, %s4160
      $region108: #{point_gen_forward.1} parent=99 // pred_fallthru
        _
    $region100: #{point_gen_forward.1} parent=5 // pred_fallthru
      _
  $region6: #{point_gen_forward.1} parent=0 // loop_footer
    %s29 = sadd.s32 1, %s25
  $region7: #{point_gen_forward.1} parent=0 // loop_footer_branch
    %24 = sbr.rel target = $region3
  $region8: #{point_gen_forward.1} parent=0 // loop_exit
    _

</llo_original>
